<compile_context>
chip_gen: v7x
topology: tpu7x:2x2x1
jax: 0.10.0
libtpu: 0.0.40
codegen_flags: <defaults>
</compile_context>

<pallas_src>
import functools

import jax
import jax.numpy as jnp
from jax.experimental import pallas as pl
from jax.experimental.pallas import tpu as pltpu

LEAKY_SLOPE = 0.01   # torch nn.LeakyReLU default
BN_EPS = 1e-5        # torch nn.BatchNorm2d default


# ---------------------------------------------------------------------------
# Pallas kernels
# ---------------------------------------------------------------------------
def _conv_bn_lrelu_kernel(p_ref, w_ref, b_ref, g_ref, bt_ref, o_ref, *, eps, slope):
    """im2col conv (matmul) + bias + BatchNorm(batch stats) + LeakyReLU.

    p_ref: (M, K) patches, w_ref: (K, C), b/g/bt: (1, C), o_ref: (M, C).
    M = N*OH*OW, so per-channel stats over axis 0 == stats over (N, H, W).
    """
    y = jnp.dot(p_ref[...], w_ref[...], preferred_element_type=jnp.float32)
    y = y + b_ref[...]
    mu = jnp.mean(y, axis=0, keepdims=True)                      # (1, C)
    var = jnp.mean((y - mu) * (y - mu), axis=0, keepdims=True)   # biased var
    y = (y - mu) * jax.lax.rsqrt(var + eps) * g_ref[...] + bt_ref[...]
    o_ref[...] = jnp.where(y > 0, y, slope * y)                  # LeakyReLU


def _linear_kernel(x_ref, w_ref, b_ref, o_ref):
    o_ref[...] = jnp.dot(x_ref[...], w_ref[...],
                         preferred_element_type=jnp.float32) + b_ref[...]


def _conv_sigmoid_kernel(p_ref, w_ref, b_ref, o_ref):
    y = jnp.dot(p_ref[...], w_ref[...], preferred_element_type=jnp.float32)
    y = y + b_ref[...]
    o_ref[...] = 1.0 / (1.0 + jnp.exp(-y))                       # Sigmoid


def _vmem_call(kernel, n_in, out_shape):
    return pl.pallas_call(
        kernel,
        out_shape=out_shape,
        in_specs=[pl.BlockSpec(memory_space=pltpu.VMEM)] * n_in,
        out_specs=pl.BlockSpec(memory_space=pltpu.VMEM),
    )


def conv_bn_lrelu(patches, wmat, bias, gamma, beta):
    m, c = patches.shape[0], wmat.shape[1]
    kernel = functools.partial(_conv_bn_lrelu_kernel, eps=BN_EPS, slope=LEAKY_SLOPE)
    return _vmem_call(kernel, 5, jax.ShapeDtypeStruct((m, c), jnp.float32))(
        patches, wmat, bias.reshape(1, c), gamma.reshape(1, c), beta.reshape(1, c))


def linear(x, wmat, bias):
    m, c = x.shape[0], wmat.shape[1]
    return _vmem_call(_linear_kernel, 3, jax.ShapeDtypeStruct((m, c), jnp.float32))(
        x, wmat, bias.reshape(1, c))


def conv_sigmoid(patches, wmat, bias):
    m, c = patches.shape[0], wmat.shape[1]
    return _vmem_call(_conv_sigmoid_kernel, 3,
                      jax.ShapeDtypeStruct((m, c), jnp.float32))(
        patches, wmat, bias.reshape(1, c))


# ---------------------------------------------------------------------------
# Wrapper-side layout plumbing (pure data movement, no FLOPs)
# ---------------------------------------------------------------------------
def _im2col(x, kh, kw, sh, sw, ph, pw):
    """NCHW -> (N*OH*OW, C*kh*kw), column ordering (c, i, j) to match OIHW."""
    n, c, h, w = x.shape
    xp = jnp.pad(x, ((0, 0), (0, 0), (ph, ph), (pw, pw)))
    oh = (h + 2 * ph - kh) // sh + 1
    ow = (w + 2 * pw - kw) // sw + 1
    cols = []
    for i in range(kh):
        for j in range(kw):
            cols.append(xp[:, :, i:i + sh * oh:sh, j:j + sw * ow:sw])
    pat = jnp.stack(cols, axis=0)            # (kh*kw, N, C, OH, OW)
    pat = pat.transpose(1, 3, 4, 2, 0)       # (N, OH, OW, C, kh*kw)
    return pat.reshape(n * oh * ow, c * kh * kw), oh, ow


def _dilate2d(x, s):
    """Insert (s-1) zeros between elements (conv-transpose as conv)."""
    if s == 1:
        return x
    n, c, h, w = x.shape
    z = jnp.zeros((n, c, (h - 1) * s + 1, (w - 1) * s + 1), x.dtype)
    return z.at[:, :, ::s, ::s].set(x)


def _rows_to_nchw(rows, n, oh, ow):
    c = rows.shape[1]
    return rows.reshape(n, oh, ow, c).transpose(0, 3, 1, 2)


# ---------------------------------------------------------------------------
# Full forward pass: AutoencoderCNN1.forward(x) -> (latent, decoded)
# ---------------------------------------------------------------------------
def autoencoder_forward(x, params, *, hidden):
    n = x.shape[0]

    # ----- encoder -----
    # Conv2d(1, hidden, k=5, s=2, p=2) + BN + LeakyReLU
    p1, oh1, ow1 = _im2col(x, 5, 5, 2, 2, 2, 2)
    w1 = params["W1"].reshape(hidden, 1 * 5 * 5).T
    a1 = conv_bn_lrelu(p1, w1, params["b1"], params["g1"], params["be1"])
    a1 = _rows_to_nchw(a1, n, oh1, ow1)                       # (N, hidden, 9, 6)

    # Conv2d(hidden, hidden, k=3, s=1, p='same') + BN + LeakyReLU
    p2, oh2, ow2 = _im2col(a1, 3, 3, 1, 1, 1, 1)
    w2 = params["W2"].reshape(hidden, hidden * 3 * 3).T
    a2 = conv_bn_lrelu(p2, w2, params["b2"], params["g2"], params["be2"])
    a2 = _rows_to_nchw(a2, n, oh2, ow2)                       # (N, hidden, 9, 6)

    # Flatten + Linear(hidden*9*6 -> latent_dim)
    flat = a2.reshape(n, hidden * 9 * 6)
    latent = linear(flat, params["We"].T, params["bfe"])      # (N, latent_dim)

    # ----- decoder -----
    # Linear(latent_dim -> hidden*9*6) + Reshape(-1, hidden, 9, 6)
    d = linear(latent, params["Wd"].T, params["bfd"])
    d = d.reshape(n, hidden, 9, 6)

    # ConvTranspose2d(hidden, hidden, k=4, s=2, p=1) + BN + LeakyReLU
    # expressed as conv of the stride-dilated input with flipped kernel, pad=k-1-p=2
    z = _dilate2d(d, 2)                                       # (N, hidden, 17, 11)
    wt1 = jnp.flip(params["Wt1"], axis=(2, 3)).transpose(1, 0, 2, 3)
    p3, oh3, ow3 = _im2col(z, 4, 4, 1, 1, 2, 2)
    w3 = wt1.reshape(hidden, hidden * 4 * 4).T
    a3 = conv_bn_lrelu(p3, w3, params["bt1"], params["g3"], params["be3"])
    a3 = _rows_to_nchw(a3, n, oh3, ow3)                       # (N, hidden, 18, 12)

    # ConvTranspose2d(hidden, 1, k=3, s=1, p=1) -> Trim(0, 1) -> Sigmoid
    # (sigmoid is elementwise, so applying it in-kernel before the trim slice
    #  is identical to trim-then-sigmoid)
    wt2 = jnp.flip(params["Wt2"], axis=(2, 3)).transpose(1, 0, 2, 3)
    p4, oh4, ow4 = _im2col(a3, 3, 3, 1, 1, 1, 1)
    w4 = wt2.reshape(1, hidden * 3 * 3).T
    dec = conv_sigmoid(p4, w4, params["bt2"])                 # (N*18*12, 1)
    dec = _rows_to_nchw(dec, n, oh4, ow4)                     # (N, 1, 18, 12)
    decoded = dec[:, :, 0:, 1:]                               # Trim -> (N, 1, 18, 11)
    return latent, decoded


# ---------------------------------------------------------------------------
# Pure-JAX reference (lax convs) mirroring the PyTorch module
# ---------------------------------------------------------------------------
def ref_forward(x, params):
    prec = jax.lax.Precision.HIGHEST

    def conv(t, w, b, stride, pad):
        y = jax.lax.conv_general_dilated(
            t, w, window_strides=(stride, stride),
            padding=[(pad, pad), (pad, pad)],
            dimension_numbers=("NCHW", "OIHW", "NCHW"), precision=prec)
        return y + b.reshape(1, -1, 1, 1)

    def convt(t, w, b, stride, pad, k):
        w2 = jnp.flip(w, axis=(2, 3)).transpose(1, 0, 2, 3)
        y = jax.lax.conv_general_dilated(
            t, w2, window_strides=(1, 1),
            padding=[(k - 1 - pad,) * 2, (k - 1 - pad,) * 2],
            lhs_dilation=(stride, stride),
            dimension_numbers=("NCHW", "OIHW", "NCHW"), precision=prec)
        return y + b.reshape(1, -1, 1, 1)

    def bn(t, g, be):
        mu = jnp.mean(t, axis=(0, 2, 3), keepdims=True)
        var = jnp.mean((t - mu) ** 2, axis=(0, 2, 3), keepdims=True)
        return ((t - mu) * jax.lax.rsqrt(var + BN_EPS) * g.reshape(1, -1, 1, 1)
                + be.reshape(1, -1, 1, 1))

    lrelu = lambda t: jnp.where(t > 0, t, LEAKY_SLOPE * t)

    n = x.shape[0]
    h = lrelu(bn(conv(x, params["W1"], params["b1"], 2, 2), params["g1"], params["be1"]))
    h = lrelu(bn(conv(h, params["W2"], params["b2"], 1, 1), params["g2"], params["be2"]))
    flat = h.reshape(n, -1)
    latent = jnp.dot(flat, params["We"].T, precision=prec) + params["bfe"]
    d = jnp.dot(latent, params["Wd"].T, precision=prec) + params["bfd"]
    d = d.reshape(n, -1, 9, 6)
    d = lrelu(bn(convt(d, params["Wt1"], params["bt1"], 2, 1, 4), params["g3"], params["be3"]))
    d = convt(d, params["Wt2"], params["bt2"], 1, 1, 3)
    d = d[:, :, 0:, 1:]
    return latent, jax.nn.sigmoid(d)


def init_params(key, hidden, latent_dim):
    ks = jax.random.split(key, 12)

    def f(k, shape, scale=0.1):
        return scale * jax.random.normal(k, shape, dtype=jnp.float32)

    flat_dim = hidden * 9 * 6
    return {
        # encoder
        "W1": f(ks[0], (hidden, 1, 5, 5)), "b1": f(ks[1], (hidden,)),
        "g1": jnp.ones((hidden,), jnp.float32), "be1": jnp.zeros((hidden,), jnp.float32),
        "W2": f(ks[2], (hidden, hidden, 3, 3)), "b2": f(ks[3], (hidden,)),
        "g2": jnp.ones((hidden,), jnp.float32), "be2": jnp.zeros((hidden,), jnp.float32),
        "We": f(ks[4], (latent_dim, flat_dim), 0.05), "bfe": f(ks[5], (latent_dim,)),
        # decoder
        "Wd": f(ks[6], (flat_dim, latent_dim), 0.05), "bfd": f(ks[7], (flat_dim,)),
        "Wt1": f(ks[8], (hidden, hidden, 4, 4)), "bt1": f(ks[9], (hidden,)),
        "g3": jnp.ones((hidden,), jnp.float32), "be3": jnp.zeros((hidden,), jnp.float32),
        "Wt2": f(ks[10], (hidden, 1, 3, 3)), "bt2": f(ks[11], (1,)),
    }


if __name__ == "__main__":
    hidden, latent_dim = 32, 32
    # Spatial size (18, 11) is implied by the module: Linear(hidden*9*6, ...)
    # after a stride-2 conv, and Trim(0, 1) on the 18x12 decoder output.
    N, C, H, W = 2, 1, 18, 11

    key = jax.random.PRNGKey(0)
    kx, kp = jax.random.split(key)
    x = jax.random.normal(kx, (N, C, H, W), dtype=jnp.float32)
    params = init_params(kp, hidden, latent_dim)

    fwd = jax.jit(functools.partial(autoencoder_forward, hidden=hidden))
    latent, decoded = fwd(x, params)
    latent, decoded = jax.block_until_ready((latent, decoded))

    assert latent.shape == (N, latent_dim), latent.shape
    assert decoded.shape == (N, 1, 18, 11), decoded.shape

    ref_latent, ref_decoded = ref_forward(x, params)
    assert jnp.allclose(latent, ref_latent, rtol=2e-2, atol=2e-2), (
        float(jnp.max(jnp.abs(latent - ref_latent))))
    assert jnp.allclose(decoded, ref_decoded, rtol=2e-2, atol=2e-2), (
        float(jnp.max(jnp.abs(decoded - ref_decoded))))

    print("KERNEL_OK")
</pallas_src>

<mosaic_0001>
module attributes {stable_mosaic.version = 11 : i64} {
  func.func @_conv_bn_lrelu_kernel(%arg0: memref<108x25xf32, #tpu.memory_space<vmem>>, %arg1: memref<25x32xf32, #tpu.memory_space<vmem>>, %arg2: memref<1x32xf32, #tpu.memory_space<vmem>>, %arg3: memref<1x32xf32, #tpu.memory_space<vmem>>, %arg4: memref<1x32xf32, #tpu.memory_space<vmem>>, %arg5: memref<108x32xf32, #tpu.memory_space<vmem>>) attributes {dimension_semantics = [], scalar_prefetch = 0 : i64, scratch_operands = 0 : i64, tpu.core_type = #tpu.core_type<tc>} {
    %c0 = arith.constant 0 : index
    %c0_0 = arith.constant 0 : index
    %0 = vector.load %arg0[%c0, %c0_0] : memref<108x25xf32, #tpu.memory_space<vmem>>, vector<108x25xf32>
    %c0_1 = arith.constant 0 : index
    %c0_2 = arith.constant 0 : index
    %1 = vector.load %arg1[%c0_1, %c0_2] : memref<25x32xf32, #tpu.memory_space<vmem>>, vector<25x32xf32>
    %cst = arith.constant dense<0.000000e+00> : vector<108x32xf32>
    %2 = tpu.matmul %0, %1, %cst {dimension_numbers = #tpu.dot_dimension_numbers<[1], [0], [0], [1], [0, 0, 1, 1], [], []>} : vector<108x25xf32>, vector<25x32xf32>, vector<108x32xf32> -> vector<108x32xf32>
    %c0_3 = arith.constant 0 : index
    %c0_4 = arith.constant 0 : index
    %3 = vector.load %arg2[%c0_3, %c0_4] : memref<1x32xf32, #tpu.memory_space<vmem>>, vector<1x32xf32>
    %4 = vector.broadcast %3 : vector<1x32xf32> to vector<108x32xf32>
    %5 = arith.addf %2, %4 : vector<108x32xf32>
    %cst_5 = arith.constant dense<0.000000e+00> : vector<32xf32>
    %6 = vector.multi_reduction <add>, %5, %cst_5 [0] : vector<108x32xf32> to vector<32xf32>
    %7 = vector.shape_cast %6 : vector<32xf32> to vector<1x32xf32>
    %cst_6 = arith.constant 1.080000e+02 : f32
    %8 = vector.broadcast %cst_6 : f32 to vector<1x32xf32>
    %9 = arith.divf %7, %8 : vector<1x32xf32>
    %10 = vector.broadcast %9 : vector<1x32xf32> to vector<108x32xf32>
    %11 = arith.subf %5, %10 : vector<108x32xf32>
    %12 = vector.broadcast %9 : vector<1x32xf32> to vector<108x32xf32>
    %13 = arith.subf %5, %12 : vector<108x32xf32>
    %14 = arith.mulf %11, %13 : vector<108x32xf32>
    %cst_7 = arith.constant dense<0.000000e+00> : vector<32xf32>
    %15 = vector.multi_reduction <add>, %14, %cst_7 [0] : vector<108x32xf32> to vector<32xf32>
    %16 = vector.shape_cast %15 : vector<32xf32> to vector<1x32xf32>
    %cst_8 = arith.constant 1.080000e+02 : f32
    %17 = vector.broadcast %cst_8 : f32 to vector<1x32xf32>
    %18 = arith.divf %16, %17 : vector<1x32xf32>
    %19 = vector.broadcast %9 : vector<1x32xf32> to vector<108x32xf32>
    %20 = arith.subf %5, %19 : vector<108x32xf32>
    %cst_9 = arith.constant 9.99999974E-6 : f32
    %21 = vector.broadcast %cst_9 : f32 to vector<1x32xf32>
    %22 = arith.addf %18, %21 : vector<1x32xf32>
    %23 = math.rsqrt %22 : vector<1x32xf32>
    %24 = vector.broadcast %23 : vector<1x32xf32> to vector<108x32xf32>
    %25 = arith.mulf %20, %24 : vector<108x32xf32>
    %c0_10 = arith.constant 0 : index
    %c0_11 = arith.constant 0 : index
    %26 = vector.load %arg3[%c0_10, %c0_11] : memref<1x32xf32, #tpu.memory_space<vmem>>, vector<1x32xf32>
    %27 = vector.broadcast %26 : vector<1x32xf32> to vector<108x32xf32>
    %28 = arith.mulf %25, %27 : vector<108x32xf32>
    %c0_12 = arith.constant 0 : index
    %c0_13 = arith.constant 0 : index
    %29 = vector.load %arg4[%c0_12, %c0_13] : memref<1x32xf32, #tpu.memory_space<vmem>>, vector<1x32xf32>
    %30 = vector.broadcast %29 : vector<1x32xf32> to vector<108x32xf32>
    %31 = arith.addf %28, %30 : vector<108x32xf32>
    %cst_14 = arith.constant 0.000000e+00 : f32
    %32 = vector.broadcast %cst_14 : f32 to vector<108x32xf32>
    %33 = arith.cmpf ogt, %31, %32 : vector<108x32xf32>
    %cst_15 = arith.constant 0.00999999977 : f32
    %34 = vector.broadcast %cst_15 : f32 to vector<108x32xf32>
    %35 = arith.mulf %34, %31 : vector<108x32xf32>
    %36 = arith.select %33, %31, %35 : vector<108x32xi1>, vector<108x32xf32>
    %c0_16 = arith.constant 0 : index
    %c0_17 = arith.constant 0 : index
    %37 = vector.load %arg5[%c0_16, %c0_17] : memref<108x32xf32, #tpu.memory_space<vmem>>, vector<108x32xf32>
    tpu.vector_store %arg5[%c0_16, %c0_17], %36 {strides = array<i32>} : memref<108x32xf32, #tpu.memory_space<vmem>>, vector<108x32xf32>,
    return
  }
}

module attributes {stable_mosaic.version = 11 : i64} {
  func.func @_conv_bn_lrelu_kernel(%arg0: memref<108x288xf32, #tpu.memory_space<vmem>>, %arg1: memref<288x32xf32, #tpu.memory_space<vmem>>, %arg2: memref<1x32xf32, #tpu.memory_space<vmem>>, %arg3: memref<1x32xf32, #tpu.memory_space<vmem>>, %arg4: memref<1x32xf32, #tpu.memory_space<vmem>>, %arg5: memref<108x32xf32, #tpu.memory_space<vmem>>) attributes {dimension_semantics = [], scalar_prefetch = 0 : i64, scratch_operands = 0 : i64, tpu.core_type = #tpu.core_type<tc>} {
    %c0 = arith.constant 0 : index
    %c0_0 = arith.constant 0 : index
    %0 = vector.load %arg0[%c0, %c0_0] : memref<108x288xf32, #tpu.memory_space<vmem>>, vector<108x288xf32>
    %c0_1 = arith.constant 0 : index
    %c0_2 = arith.constant 0 : index
    %1 = vector.load %arg1[%c0_1, %c0_2] : memref<288x32xf32, #tpu.memory_space<vmem>>, vector<288x32xf32>
    %cst = arith.constant dense<0.000000e+00> : vector<108x32xf32>
    %2 = tpu.matmul %0, %1, %cst {dimension_numbers = #tpu.dot_dimension_numbers<[1], [0], [0], [1], [0, 0, 1, 1], [], []>} : vector<108x288xf32>, vector<288x32xf32>, vector<108x32xf32> -> vector<108x32xf32>
    %c0_3 = arith.constant 0 : index
    %c0_4 = arith.constant 0 : index
    %3 = vector.load %arg2[%c0_3, %c0_4] : memref<1x32xf32, #tpu.memory_space<vmem>>, vector<1x32xf32>
    %4 = vector.broadcast %3 : vector<1x32xf32> to vector<108x32xf32>
    %5 = arith.addf %2, %4 : vector<108x32xf32>
    %cst_5 = arith.constant dense<0.000000e+00> : vector<32xf32>
    %6 = vector.multi_reduction <add>, %5, %cst_5 [0] : vector<108x32xf32> to vector<32xf32>
    %7 = vector.shape_cast %6 : vector<32xf32> to vector<1x32xf32>
    %cst_6 = arith.constant 1.080000e+02 : f32
    %8 = vector.broadcast %cst_6 : f32 to vector<1x32xf32>
    %9 = arith.divf %7, %8 : vector<1x32xf32>
    %10 = vector.broadcast %9 : vector<1x32xf32> to vector<108x32xf32>
    %11 = arith.subf %5, %10 : vector<108x32xf32>
    %12 = vector.broadcast %9 : vector<1x32xf32> to vector<108x32xf32>
    %13 = arith.subf %5, %12 : vector<108x32xf32>
    %14 = arith.mulf %11, %13 : vector<108x32xf32>
    %cst_7 = arith.constant dense<0.000000e+00> : vector<32xf32>
    %15 = vector.multi_reduction <add>, %14, %cst_7 [0] : vector<108x32xf32> to vector<32xf32>
    %16 = vector.shape_cast %15 : vector<32xf32> to vector<1x32xf32>
    %cst_8 = arith.constant 1.080000e+02 : f32
    %17 = vector.broadcast %cst_8 : f32 to vector<1x32xf32>
    %18 = arith.divf %16, %17 : vector<1x32xf32>
    %19 = vector.broadcast %9 : vector<1x32xf32> to vector<108x32xf32>
    %20 = arith.subf %5, %19 : vector<108x32xf32>
    %cst_9 = arith.constant 9.99999974E-6 : f32
    %21 = vector.broadcast %cst_9 : f32 to vector<1x32xf32>
    %22 = arith.addf %18, %21 : vector<1x32xf32>
    %23 = math.rsqrt %22 : vector<1x32xf32>
    %24 = vector.broadcast %23 : vector<1x32xf32> to vector<108x32xf32>
    %25 = arith.mulf %20, %24 : vector<108x32xf32>
    %c0_10 = arith.constant 0 : index
    %c0_11 = arith.constant 0 : index
    %26 = vector.load %arg3[%c0_10, %c0_11] : memref<1x32xf32, #tpu.memory_space<vmem>>, vector<1x32xf32>
    %27 = vector.broadcast %26 : vector<1x32xf32> to vector<108x32xf32>
    %28 = arith.mulf %25, %27 : vector<108x32xf32>
    %c0_12 = arith.constant 0 : index
    %c0_13 = arith.constant 0 : index
    %29 = vector.load %arg4[%c0_12, %c0_13] : memref<1x32xf32, #tpu.memory_space<vmem>>, vector<1x32xf32>
    %30 = vector.broadcast %29 : vector<1x32xf32> to vector<108x32xf32>
    %31 = arith.addf %28, %30 : vector<108x32xf32>
    %cst_14 = arith.constant 0.000000e+00 : f32
    %32 = vector.broadcast %cst_14 : f32 to vector<108x32xf32>
    %33 = arith.cmpf ogt, %31, %32 : vector<108x32xf32>
    %cst_15 = arith.constant 0.00999999977 : f32
    %34 = vector.broadcast %cst_15 : f32 to vector<108x32xf32>
    %35 = arith.mulf %34, %31 : vector<108x32xf32>
    %36 = arith.select %33, %31, %35 : vector<108x32xi1>, vector<108x32xf32>
    %c0_16 = arith.constant 0 : index
    %c0_17 = arith.constant 0 : index
    %37 = vector.load %arg5[%c0_16, %c0_17] : memref<108x32xf32, #tpu.memory_space<vmem>>, vector<108x32xf32>
    tpu.vector_store %arg5[%c0_16, %c0_17], %36 {strides = array<i32>} : memref<108x32xf32, #tpu.memory_space<vmem>>, vector<108x32xf32>,
    return
  }
}

module attributes {stable_mosaic.version = 11 : i64} {
  func.func @_linear_kernel(%arg0: memref<2x1728xf32, #tpu.memory_space<vmem>>, %arg1: memref<1728x32xf32, #tpu.memory_space<vmem>>, %arg2: memref<1x32xf32, #tpu.memory_space<vmem>>, %arg3: memref<2x32xf32, #tpu.memory_space<vmem>>) attributes {dimension_semantics = [], scalar_prefetch = 0 : i64, scratch_operands = 0 : i64, tpu.core_type = #tpu.core_type<tc>} {
    %c0 = arith.constant 0 : index
    %c0_0 = arith.constant 0 : index
    %0 = vector.load %arg0[%c0, %c0_0] : memref<2x1728xf32, #tpu.memory_space<vmem>>, vector<2x1728xf32>
    %c0_1 = arith.constant 0 : index
    %c0_2 = arith.constant 0 : index
    %1 = vector.load %arg1[%c0_1, %c0_2] : memref<1728x32xf32, #tpu.memory_space<vmem>>, vector<1728x32xf32>
    %cst = arith.constant dense<0.000000e+00> : vector<2x32xf32>
    %2 = tpu.matmul %0, %1, %cst {dimension_numbers = #tpu.dot_dimension_numbers<[1], [0], [0], [1], [0, 0, 1, 1], [], []>} : vector<2x1728xf32>, vector<1728x32xf32>, vector<2x32xf32> -> vector<2x32xf32>
    %c0_3 = arith.constant 0 : index
    %c0_4 = arith.constant 0 : index
    %3 = vector.load %arg2[%c0_3, %c0_4] : memref<1x32xf32, #tpu.memory_space<vmem>>, vector<1x32xf32>
    %4 = vector.broadcast %3 : vector<1x32xf32> to vector<2x32xf32>
    %5 = arith.addf %2, %4 : vector<2x32xf32>
    %c0_5 = arith.constant 0 : index
    %c0_6 = arith.constant 0 : index
    %6 = vector.load %arg3[%c0_5, %c0_6] : memref<2x32xf32, #tpu.memory_space<vmem>>, vector<2x32xf32>
    tpu.vector_store %arg3[%c0_5, %c0_6], %5 {strides = array<i32>} : memref<2x32xf32, #tpu.memory_space<vmem>>, vector<2x32xf32>,
    return
  }
}

module attributes {stable_mosaic.version = 11 : i64} {
  func.func @_linear_kernel(%arg0: memref<2x32xf32, #tpu.memory_space<vmem>>, %arg1: memref<32x1728xf32, #tpu.memory_space<vmem>>, %arg2: memref<1x1728xf32, #tpu.memory_space<vmem>>, %arg3: memref<2x1728xf32, #tpu.memory_space<vmem>>) attributes {dimension_semantics = [], scalar_prefetch = 0 : i64, scratch_operands = 0 : i64, tpu.core_type = #tpu.core_type<tc>} {
    %c0 = arith.constant 0 : index
    %c0_0 = arith.constant 0 : index
    %0 = vector.load %arg0[%c0, %c0_0] : memref<2x32xf32, #tpu.memory_space<vmem>>, vector<2x32xf32>
    %c0_1 = arith.constant 0 : index
    %c0_2 = arith.constant 0 : index
    %1 = vector.load %arg1[%c0_1, %c0_2] : memref<32x1728xf32, #tpu.memory_space<vmem>>, vector<32x1728xf32>
    %cst = arith.constant dense<0.000000e+00> : vector<2x1728xf32>
    %2 = tpu.matmul %0, %1, %cst {dimension_numbers = #tpu.dot_dimension_numbers<[1], [0], [0], [1], [0, 0, 1, 1], [], []>} : vector<2x32xf32>, vector<32x1728xf32>, vector<2x1728xf32> -> vector<2x1728xf32>
    %c0_3 = arith.constant 0 : index
    %c0_4 = arith.constant 0 : index
    %3 = vector.load %arg2[%c0_3, %c0_4] : memref<1x1728xf32, #tpu.memory_space<vmem>>, vector<1x1728xf32>
    %4 = vector.broadcast %3 : vector<1x1728xf32> to vector<2x1728xf32>
    %5 = arith.addf %2, %4 : vector<2x1728xf32>
    %c0_5 = arith.constant 0 : index
    %c0_6 = arith.constant 0 : index
    %6 = vector.load %arg3[%c0_5, %c0_6] : memref<2x1728xf32, #tpu.memory_space<vmem>>, vector<2x1728xf32>
    tpu.vector_store %arg3[%c0_5, %c0_6], %5 {strides = array<i32>} : memref<2x1728xf32, #tpu.memory_space<vmem>>, vector<2x1728xf32>,
    return
  }
}

module attributes {stable_mosaic.version = 11 : i64} {
  func.func @_conv_bn_lrelu_kernel(%arg0: memref<432x512xf32, #tpu.memory_space<vmem>>, %arg1: memref<512x32xf32, #tpu.memory_space<vmem>>, %arg2: memref<1x32xf32, #tpu.memory_space<vmem>>, %arg3: memref<1x32xf32, #tpu.memory_space<vmem>>, %arg4: memref<1x32xf32, #tpu.memory_space<vmem>>, %arg5: memref<432x32xf32, #tpu.memory_space<vmem>>) attributes {dimension_semantics = [], scalar_prefetch = 0 : i64, scratch_operands = 0 : i64, tpu.core_type = #tpu.core_type<tc>} {
    %c0 = arith.constant 0 : index
    %c0_0 = arith.constant 0 : index
    %0 = vector.load %arg0[%c0, %c0_0] : memref<432x512xf32, #tpu.memory_space<vmem>>, vector<432x512xf32>
    %c0_1 = arith.constant 0 : index
    %c0_2 = arith.constant 0 : index
    %1 = vector.load %arg1[%c0_1, %c0_2] : memref<512x32xf32, #tpu.memory_space<vmem>>, vector<512x32xf32>
    %cst = arith.constant dense<0.000000e+00> : vector<432x32xf32>
    %2 = tpu.matmul %0, %1, %cst {dimension_numbers = #tpu.dot_dimension_numbers<[1], [0], [0], [1], [0, 0, 1, 1], [], []>} : vector<432x512xf32>, vector<512x32xf32>, vector<432x32xf32> -> vector<432x32xf32>
    %c0_3 = arith.constant 0 : index
    %c0_4 = arith.constant 0 : index
    %3 = vector.load %arg2[%c0_3, %c0_4] : memref<1x32xf32, #tpu.memory_space<vmem>>, vector<1x32xf32>
    %4 = vector.broadcast %3 : vector<1x32xf32> to vector<432x32xf32>
    %5 = arith.addf %2, %4 : vector<432x32xf32>
    %cst_5 = arith.constant dense<0.000000e+00> : vector<32xf32>
    %6 = vector.multi_reduction <add>, %5, %cst_5 [0] : vector<432x32xf32> to vector<32xf32>
    %7 = vector.shape_cast %6 : vector<32xf32> to vector<1x32xf32>
    %cst_6 = arith.constant 4.320000e+02 : f32
    %8 = vector.broadcast %cst_6 : f32 to vector<1x32xf32>
    %9 = arith.divf %7, %8 : vector<1x32xf32>
    %10 = vector.broadcast %9 : vector<1x32xf32> to vector<432x32xf32>
    %11 = arith.subf %5, %10 : vector<432x32xf32>
    %12 = vector.broadcast %9 : vector<1x32xf32> to vector<432x32xf32>
    %13 = arith.subf %5, %12 : vector<432x32xf32>
    %14 = arith.mulf %11, %13 : vector<432x32xf32>
    %cst_7 = arith.constant dense<0.000000e+00> : vector<32xf32>
    %15 = vector.multi_reduction <add>, %14, %cst_7 [0] : vector<432x32xf32> to vector<32xf32>
    %16 = vector.shape_cast %15 : vector<32xf32> to vector<1x32xf32>
    %cst_8 = arith.constant 4.320000e+02 : f32
    %17 = vector.broadcast %cst_8 : f32 to vector<1x32xf32>
    %18 = arith.divf %16, %17 : vector<1x32xf32>
    %19 = vector.broadcast %9 : vector<1x32xf32> to vector<432x32xf32>
    %20 = arith.subf %5, %19 : vector<432x32xf32>
    %cst_9 = arith.constant 9.99999974E-6 : f32
    %21 = vector.broadcast %cst_9 : f32 to vector<1x32xf32>
    %22 = arith.addf %18, %21 : vector<1x32xf32>
    %23 = math.rsqrt %22 : vector<1x32xf32>
    %24 = vector.broadcast %23 : vector<1x32xf32> to vector<432x32xf32>
    %25 = arith.mulf %20, %24 : vector<432x32xf32>
    %c0_10 = arith.constant 0 : index
    %c0_11 = arith.constant 0 : index
    %26 = vector.load %arg3[%c0_10, %c0_11] : memref<1x32xf32, #tpu.memory_space<vmem>>, vector<1x32xf32>
    %27 = vector.broadcast %26 : vector<1x32xf32> to vector<432x32xf32>
    %28 = arith.mulf %25, %27 : vector<432x32xf32>
    %c0_12 = arith.constant 0 : index
    %c0_13 = arith.constant 0 : index
    %29 = vector.load %arg4[%c0_12, %c0_13] : memref<1x32xf32, #tpu.memory_space<vmem>>, vector<1x32xf32>
    %30 = vector.broadcast %29 : vector<1x32xf32> to vector<432x32xf32>
    %31 = arith.addf %28, %30 : vector<432x32xf32>
    %cst_14 = arith.constant 0.000000e+00 : f32
    %32 = vector.broadcast %cst_14 : f32 to vector<432x32xf32>
    %33 = arith.cmpf ogt, %31, %32 : vector<432x32xf32>
    %cst_15 = arith.constant 0.00999999977 : f32
    %34 = vector.broadcast %cst_15 : f32 to vector<432x32xf32>
    %35 = arith.mulf %34, %31 : vector<432x32xf32>
    %36 = arith.select %33, %31, %35 : vector<432x32xi1>, vector<432x32xf32>
    %c0_16 = arith.constant 0 : index
    %c0_17 = arith.constant 0 : index
    %37 = vector.load %arg5[%c0_16, %c0_17] : memref<432x32xf32, #tpu.memory_space<vmem>>, vector<432x32xf32>
    tpu.vector_store %arg5[%c0_16, %c0_17], %36 {strides = array<i32>} : memref<432x32xf32, #tpu.memory_space<vmem>>, vector<432x32xf32>,
    return
  }
}

module attributes {stable_mosaic.version = 11 : i64} {
  func.func @_conv_sigmoid_kernel(%arg0: memref<432x288xf32, #tpu.memory_space<vmem>>, %arg1: memref<288x1xf32, #tpu.memory_space<vmem>>, %arg2: memref<1x1xf32, #tpu.memory_space<vmem>>, %arg3: memref<432x1xf32, #tpu.memory_space<vmem>>) attributes {dimension_semantics = [], scalar_prefetch = 0 : i64, scratch_operands = 0 : i64, tpu.core_type = #tpu.core_type<tc>} {
    %c0 = arith.constant 0 : index
    %c0_0 = arith.constant 0 : index
    %0 = vector.load %arg0[%c0, %c0_0] : memref<432x288xf32, #tpu.memory_space<vmem>>, vector<432x288xf32>
    %c0_1 = arith.constant 0 : index
    %c0_2 = arith.constant 0 : index
    %1 = vector.load %arg1[%c0_1, %c0_2] : memref<288x1xf32, #tpu.memory_space<vmem>>, vector<288x1xf32>
    %cst = arith.constant dense<0.000000e+00> : vector<432x1xf32>
    %2 = tpu.matmul %0, %1, %cst {dimension_numbers = #tpu.dot_dimension_numbers<[1], [0], [0], [1], [0, 0, 1, 1], [], []>} : vector<432x288xf32>, vector<288x1xf32>, vector<432x1xf32> -> vector<432x1xf32>
    %c0_3 = arith.constant 0 : index
    %c0_4 = arith.constant 0 : index
    %3 = vector.load %arg2[%c0_3, %c0_4] : memref<1x1xf32, #tpu.memory_space<vmem>>, vector<1x1xf32>
    %4 = vector.broadcast %3 : vector<1x1xf32> to vector<432x1xf32>
    %5 = arith.addf %2, %4 : vector<432x1xf32>
    %cst_5 = arith.constant 0.000000e+00 : f32
    %6 = vector.broadcast %cst_5 : f32 to vector<432x1xf32>
    %7 = arith.subf %6, %5 : vector<432x1xf32>
    %8 = math.exp %7 : vector<432x1xf32>
    %cst_6 = arith.constant 1.000000e+00 : f32
    %9 = vector.broadcast %cst_6 : f32 to vector<432x1xf32>
    %10 = arith.addf %9, %8 : vector<432x1xf32>
    %cst_7 = arith.constant 1.000000e+00 : f32
    %11 = vector.broadcast %cst_7 : f32 to vector<432x1xf32>
    %12 = arith.divf %11, %10 : vector<432x1xf32>
    %c0_8 = arith.constant 0 : index
    %c0_9 = arith.constant 0 : index
    %13 = vector.load %arg3[%c0_8, %c0_9] : memref<432x1xf32, #tpu.memory_space<vmem>>, vector<432x1xf32>
    tpu.vector_store %arg3[%c0_8, %c0_9], %12 {strides = array<i32>} : memref<432x1xf32, #tpu.memory_space<vmem>>, vector<432x1xf32>,
    return
  }
}

</mosaic_0001>

<llo_original>
// kernel: autoencoder_forward.6
$region0: #{autoencoder_forward.6}
  #allocation0 [shape = 'u32[]', space=smem, size = 0x4, offset = 0x4, fixed_abs, tag = 'smem constant byte address 0x4 - core index']
  #allocation1 [shape = 'u32[144,128]{1,0:T(1,128)}', space=vmem, size = 0x12000, scoped, tag = 'internal scratch']
  %s0 = inlined_call_operand.vmem [shape: f32[108,25], index: 0, kind: input, shape index: {}]
  %s1 = inlined_call_operand.vmem [shape: f32[25,32], index: 1, kind: input, shape index: {}]
  %s2 = inlined_call_operand.vmem [shape: f32[1,32], index: 2, kind: input, shape index: {}]
  %s3 = inlined_call_operand.vmem [shape: f32[1,32], index: 3, kind: input, shape index: {}]
  %s4 = inlined_call_operand.vmem [shape: f32[1,32], index: 4, kind: input, shape index: {}]
  %s5 = inlined_call_operand.vmem [shape: f32[108,32], index: 5, kind: output, shape index: {}]
  %s6 = sld [smem:[#allocation0]]
  $region30: #{autoencoder_forward.6} parent=0
    _
  %s8 = ssub.s32 1, %s6
  %s9 = scalar_select 0, %s8, %s6
  // Predicated region
  $region2: #{autoencoder_forward.6} parent=0 // pred_check
    _
  $region3: #{autoencoder_forward.6} parent=0 // pred_check_branch
    %11 = sbr.rel (0) target = $region5
  $region4: #{autoencoder_forward.6} parent=0 // pred_region
    _
  $region5: #{autoencoder_forward.6} parent=0 // pred_fallthru
    _
  // Predicated region
  $region6: #{autoencoder_forward.6} parent=0 // pred_check
    _
  $region7: #{autoencoder_forward.6} parent=0 // pred_check_branch
    %13 = sbr.rel (0) target = $region9
  $region8: #{autoencoder_forward.6} parent=0 // pred_region
    _
  $region9: #{autoencoder_forward.6} parent=0 // pred_fallthru
    _
  // Predicated region
  $region10: #{autoencoder_forward.6} parent=0 // pred_check
    _
  $region11: #{autoencoder_forward.6} parent=0 // pred_check_branch
    %15 = sbr.rel (0) target = $region13
  $region12: #{autoencoder_forward.6} parent=0 // pred_region
    _
  $region13: #{autoencoder_forward.6} parent=0 // pred_fallthru
    _
  // Predicated region
  $region14: #{autoencoder_forward.6} parent=0 // pred_check
    _
  $region15: #{autoencoder_forward.6} parent=0 // pred_check_branch
    %17 = sbr.rel (0) target = $region17
  $region16: #{autoencoder_forward.6} parent=0 // pred_region
    _
  $region17: #{autoencoder_forward.6} parent=0 // pred_fallthru
    _
  // Predicated region
  $region18: #{autoencoder_forward.6} parent=0 // pred_check
    _
  $region19: #{autoencoder_forward.6} parent=0 // pred_check_branch
    %19 = sbr.rel (0) target = $region21
  $region20: #{autoencoder_forward.6} parent=0 // pred_region
    _
  $region21: #{autoencoder_forward.6} parent=0 // pred_fallthru
    _
  %v20 = vld [vmem:[%s0] sm:$0xff]
  %v21 = vld [vmem:[%s0 + $0x8] sm:$0xff]
  %v22 = vld [vmem:[%s0 + $0x10] sm:$0xff]
  %v23 = vld [vmem:[%s0 + $0x18] sm:$0xff]
  %v24 = vld [vmem:[%s0 + $0x20] sm:$0xff]
  %v25 = vld [vmem:[%s0 + $0x28] sm:$0xff]
  %v26 = vld [vmem:[%s0 + $0x30] sm:$0xff]
  %v27 = vld [vmem:[%s0 + $0x38] sm:$0xff]
  %v28 = vld [vmem:[%s0 + $0x40] sm:$0xff]
  %v29 = vld [vmem:[%s0 + $0x48] sm:$0xff]
  %v30 = vld [vmem:[%s0 + $0x50] sm:$0xff]
  %v31 = vld [vmem:[%s0 + $0x58] sm:$0xff]
  %v32 = vld [vmem:[%s0 + $0x60] sm:$0xff]
  %v33 = vld [vmem:[%s0 + $0x68] sm:$0xf]
  %v34 = vld [vmem:[%s1] sm:$0xff]
  %v35 = vld [vmem:[%s1 + $0x8] sm:$0xff]
  %v36 = vld [vmem:[%s1 + $0x10] sm:$0xff]
  %v37 = vld [vmem:[%s1 + $0x18] sm:$0x1]
  %v38 = vld [vmem:[%s2] sm:$0x1]
  %v40 = vlaneseq
  %v41 = vshrl.u32 %v40, 7
  %v42 = vsub.s32 0, %v41
  %v43 = vrot.slane %v38, %v42
  %vm45 = vcmask 203776
  %v47 = vsel %vm45, %v20, 0
  %v50 = vsel %vm45, %v21, 0
  %v53 = vsel %vm45, %v22, 0
  %v56 = vsel %vm45, %v23, 0
  %v59 = vsel %vm45, %v24, 0
  %v62 = vsel %vm45, %v25, 0
  %v65 = vsel %vm45, %v26, 0
  %v68 = vsel %vm45, %v27, 0
  %v71 = vsel %vm45, %v28, 0
  %v74 = vsel %vm45, %v29, 0
  %v77 = vsel %vm45, %v30, 0
  %v80 = vsel %vm45, %v31, 0
  %v83 = vsel %vm45, %v32, 0
  %v86 = vsel %vm45, %v33, 0
  %vm88 = vcmask 1040384
  %v90 = vsel %vm88, %v37, 0
  %92 = vmatprep.subr.mxu0 0.0
  %93 = vmatpush1.msra.mxu0 %v34
  %94 = vmatprep.subr.mxu0 0.0
  %95 = vmatpush1.msra.mxu0 %v35
  %96 = vmatprep.subr.mxu0 0.0
  %97 = vmatpush1.msra.mxu0 %v36
  %98 = vmatprep.subr.mxu0 0.0
  %99 = vmatpush1.msra.mxu0 %v90
  %100 = vmatprep.subr.mxu0 0.0
  %101 = vmatpush1.msra.mxu0 0.0
  %102 = vmatprep.subr.mxu0 0.0
  %103 = vmatpush1.msra.mxu0 0.0
  %104 = vmatprep.subr.mxu0 0.0
  %105 = vmatpush1.msra.mxu0 0.0
  %106 = vmatprep.subr.mxu0 0.0
  %107 = vmatpush1.msra.mxu0 0.0
  %108 = vmatprep.subr.mxu0 0.0
  %109 = vmatpush1.msra.mxu0 0.0
  %110 = vmatprep.subr.mxu0 0.0
  %111 = vmatpush1.msra.mxu0 0.0
  %112 = vmatprep.subr.mxu0 0.0
  %113 = vmatpush1.msra.mxu0 0.0
  %114 = vmatprep.subr.mxu0 0.0
  %115 = vmatpush1.msra.mxu0 0.0
  %116 = vmatprep.subr.mxu0 0.0
  %117 = vmatpush1.msra.mxu0 0.0
  %118 = vmatprep.subr.mxu0 0.0
  %119 = vmatpush1.msra.mxu0 0.0
  %120 = vmatprep.subr.mxu0 0.0
  %121 = vmatpush1.msra.mxu0 0.0
  %122 = vmatprep.subr.mxu0 0.0
  %123 = vmatpush1.msra.mxu0 0.0
  %124 = vmatprep.subr.mxu0 0.0
  %125 = vmatpush1.msra.mxu0 0.0
  %126 = vmatprep.subr.mxu0 0.0
  %127 = vmatpush1.msra.mxu0 0.0
  %128 = vmatprep.subr.mxu0 0.0
  %129 = vmatpush1.msra.mxu0 0.0
  %130 = vmatprep.subr.mxu0 0.0
  %131 = vmatpush1.msra.mxu0 0.0
  %132 = vmatprep.subr.mxu0 0.0
  %133 = vmatpush1.msra.mxu0 0.0
  %134 = vmatprep.subr.mxu0 0.0
  %135 = vmatpush1.msra.mxu0 0.0
  %136 = vmatprep.subr.mxu0 0.0
  %137 = vmatpush1.msra.mxu0 0.0
  %138 = vmatprep.subr.mxu0 0.0
  %139 = vmatpush1.msra.mxu0 0.0
  %140 = vmatprep.subr.mxu0 0.0
  %141 = vmatpush1.msra.mxu0 0.0
  %142 = vmatprep.subr.mxu0 0.0
  %143 = vmatpush1.msra.mxu0 0.0
  %144 = vmatprep.subr.mxu0 0.0
  %145 = vmatpush1.msra.mxu0 0.0
  %146 = vmatprep.subr.mxu0 0.0
  %147 = vmatpush1.msra.mxu0 0.0
  %148 = vmatprep.subr.mxu0 0.0
  %149 = vmatpush1.msra.mxu0 0.0
  %150 = vmatprep.subr.mxu0 0.0
  %151 = vmatpush1.msra.mxu0 0.0
  %152 = vmatprep.subr.mxu0 0.0
  %153 = vmatpush1.msra.mxu0 0.0
  %154 = vmatprep.subr.mxu0 0.0
  %155 = vmatpush1.msra.mxu0 0.0
  %156 = vmatprep.mubr.f32.mxu0 0.0
  %157 = vmatmul.mubr.f32.gmra.mrb[0].mxu0 %v47
  %v158 = vpop.f32.mrb[0].mxu0
  %v159 = vadd.f32 %v43, %v158
  %v160 = vpop.f32.mrb[0].mxu0
  %161 = vmatprep.mubr.f32.mxu0 0.0
  %162 = vmatmul.mubr.f32.gmra.mrb[0].mxu0 %v50
  %v163 = vpop.f32.mrb[0].mxu0
  %v164 = vadd.f32 %v43, %v163
  %v165 = vpop.f32.mrb[0].mxu0
  %166 = vmatprep.mubr.f32.mxu0 0.0
  %167 = vmatmul.mubr.f32.gmra.mrb[0].mxu0 %v53
  %v168 = vpop.f32.mrb[0].mxu0
  %v169 = vadd.f32 %v43, %v168
  %v170 = vpop.f32.mrb[0].mxu0
  %171 = vmatprep.mubr.f32.mxu0 0.0
  %172 = vmatmul.mubr.f32.gmra.mrb[0].mxu0 %v56
  %v173 = vpop.f32.mrb[0].mxu0
  %v174 = vadd.f32 %v43, %v173
  %v175 = vpop.f32.mrb[0].mxu0
  %176 = vmatprep.mubr.f32.mxu0 0.0
  %177 = vmatmul.mubr.f32.gmra.mrb[0].mxu0 %v59
  %v178 = vpop.f32.mrb[0].mxu0
  %v179 = vadd.f32 %v43, %v178
  %v180 = vpop.f32.mrb[0].mxu0
  %181 = vmatprep.mubr.f32.mxu0 0.0
  %182 = vmatmul.mubr.f32.gmra.mrb[0].mxu0 %v62
  %v183 = vpop.f32.mrb[0].mxu0
  %v184 = vadd.f32 %v43, %v183
  %v185 = vpop.f32.mrb[0].mxu0
  %186 = vmatprep.mubr.f32.mxu0 0.0
  %187 = vmatmul.mubr.f32.gmra.mrb[0].mxu0 %v65
  %v188 = vpop.f32.mrb[0].mxu0
  %v189 = vadd.f32 %v43, %v188
  %v190 = vpop.f32.mrb[0].mxu0
  %191 = vmatprep.mubr.f32.mxu0 0.0
  %192 = vmatmul.mubr.f32.gmra.mrb[0].mxu0 %v68
  %v193 = vpop.f32.mrb[0].mxu0
  %v194 = vadd.f32 %v43, %v193
  %v195 = vpop.f32.mrb[0].mxu0
  %196 = vmatprep.mubr.f32.mxu0 0.0
  %197 = vmatmul.mubr.f32.gmra.mrb[0].mxu0 %v71
  %v198 = vpop.f32.mrb[0].mxu0
  %v199 = vadd.f32 %v43, %v198
  %v200 = vpop.f32.mrb[0].mxu0
  %201 = vmatprep.mubr.f32.mxu0 0.0
  %202 = vmatmul.mubr.f32.gmra.mrb[0].mxu0 %v74
  %v203 = vpop.f32.mrb[0].mxu0
  %v204 = vadd.f32 %v43, %v203
  %v205 = vpop.f32.mrb[0].mxu0
  %206 = vmatprep.mubr.f32.mxu0 0.0
  %207 = vmatmul.mubr.f32.gmra.mrb[0].mxu0 %v77
  %v208 = vpop.f32.mrb[0].mxu0
  %v209 = vadd.f32 %v43, %v208
  %v210 = vpop.f32.mrb[0].mxu0
  %211 = vmatprep.mubr.f32.mxu0 0.0
  %212 = vmatmul.mubr.f32.gmra.mrb[0].mxu0 %v80
  %v213 = vpop.f32.mrb[0].mxu0
  %v214 = vadd.f32 %v43, %v213
  %v215 = vpop.f32.mrb[0].mxu0
  %216 = vmatprep.mubr.f32.mxu0 0.0
  %217 = vmatmul.mubr.f32.gmra.mrb[0].mxu0 %v83
  %v218 = vpop.f32.mrb[0].mxu0
  %v219 = vadd.f32 %v43, %v218
  %v220 = vpop.f32.mrb[0].mxu0
  %221 = vmatprep.mubr.f32.mxu0 0.0
  %222 = vmatmul.mubr.f32.gmra.mrb[0].mxu0 %v86
  %v223 = vpop.f32.mrb[0].mxu0
  %v224 = vadd.f32 %v43, %v223
  %v225 = vpop.f32.mrb[0].mxu0
  %226 = vdwg.mxu0
  %vm227 = vcmask 261120
  %v228 = vsel %vm227, %v159, 0.0
  %v229 = vsel %vm227, %v164, 0.0
  %v230 = vadd.f32 %v228, %v229
  %v231 = vsel %vm227, %v169, 0.0
  %v232 = vadd.f32 %v230, %v231
  %v233 = vsel %vm227, %v174, 0.0
  %v234 = vadd.f32 %v232, %v233
  %v235 = vsel %vm227, %v179, 0.0
  %v236 = vadd.f32 %v234, %v235
  %v237 = vsel %vm227, %v184, 0.0
  %v238 = vadd.f32 %v236, %v237
  %v239 = vsel %vm227, %v189, 0.0
  %v240 = vadd.f32 %v238, %v239
  %v241 = vsel %vm227, %v194, 0.0
  %v242 = vadd.f32 %v240, %v241
  %v243 = vsel %vm227, %v199, 0.0
  %v244 = vadd.f32 %v242, %v243
  %v245 = vsel %vm227, %v204, 0.0
  %v246 = vadd.f32 %v244, %v245
  %v247 = vsel %vm227, %v209, 0.0
  %v248 = vadd.f32 %v246, %v247
  %v249 = vsel %vm227, %v214, 0.0
  %v250 = vadd.f32 %v248, %v249
  %v251 = vsel %vm227, %v219, 0.0
  %v252 = vadd.f32 %v250, %v251
  %vm253 = vcmask 257024
  %v254 = vsel %vm253, %v224, 0.0
  %v255 = vadd.f32 %v252, %v254
  %v256 = vrot.slane %v255, 4
  %v257 = vadd.f32 %v255, %v256
  %v258 = vrot.slane %v257, 2
  %v259 = vadd.f32 %v257, %v258
  %v260 = vrot.slane %v259, 1
  %v261 = vadd.f32 %v259, %v260
  %v262 = vrcp.pop 108.0
  %v263 = vmul.f32 %v261, %v262
  %v264 = vsub.f32 %v159, %v263
  %v265 = vsub.f32 %v164, %v263
  %v266 = vsub.f32 %v169, %v263
  %v267 = vsub.f32 %v174, %v263
  %v268 = vsub.f32 %v179, %v263
  %v269 = vsub.f32 %v184, %v263
  %v270 = vsub.f32 %v189, %v263
  %v271 = vsub.f32 %v194, %v263
  %v272 = vsub.f32 %v199, %v263
  %v273 = vsub.f32 %v204, %v263
  %v274 = vsub.f32 %v209, %v263
  %v275 = vsub.f32 %v214, %v263
  %v276 = vsub.f32 %v219, %v263
  %v277 = vsub.f32 %v224, %v263
  %v278 = vmul.f32 %v264, %v264
  %v279 = vmul.f32 %v265, %v265
  %v280 = vmul.f32 %v266, %v266
  %v281 = vmul.f32 %v267, %v267
  %v282 = vmul.f32 %v268, %v268
  %v283 = vmul.f32 %v269, %v269
  %v284 = vmul.f32 %v270, %v270
  %v285 = vmul.f32 %v271, %v271
  %v286 = vmul.f32 %v272, %v272
  %v287 = vmul.f32 %v273, %v273
  %v288 = vmul.f32 %v274, %v274
  %v289 = vmul.f32 %v275, %v275
  %v290 = vmul.f32 %v276, %v276
  %v291 = vmul.f32 %v277, %v277
  %v292 = vsel %vm227, %v278, 0.0
  %v293 = vsel %vm227, %v279, 0.0
  %v294 = vadd.f32 %v292, %v293
  %v295 = vsel %vm227, %v280, 0.0
  %v296 = vadd.f32 %v294, %v295
  %v297 = vsel %vm227, %v281, 0.0
  %v298 = vadd.f32 %v296, %v297
  %v299 = vsel %vm227, %v282, 0.0
  %v300 = vadd.f32 %v298, %v299
  %v301 = vsel %vm227, %v283, 0.0
  %v302 = vadd.f32 %v300, %v301
  %v303 = vsel %vm227, %v284, 0.0
  %v304 = vadd.f32 %v302, %v303
  %v305 = vsel %vm227, %v285, 0.0
  %v306 = vadd.f32 %v304, %v305
  %v307 = vsel %vm227, %v286, 0.0
  %v308 = vadd.f32 %v306, %v307
  %v309 = vsel %vm227, %v287, 0.0
  %v310 = vadd.f32 %v308, %v309
  %v311 = vsel %vm227, %v288, 0.0
  %v312 = vadd.f32 %v310, %v311
  %v313 = vsel %vm227, %v289, 0.0
  %v314 = vadd.f32 %v312, %v313
  %v315 = vsel %vm227, %v290, 0.0
  %v316 = vadd.f32 %v314, %v315
  %v317 = vsel %vm253, %v291, 0.0
  %v318 = vadd.f32 %v316, %v317
  %v319 = vrot.slane %v318, 4
  %v320 = vadd.f32 %v318, %v319
  %v321 = vrot.slane %v320, 2
  %v322 = vadd.f32 %v320, %v321
  %v323 = vrot.slane %v322, 1
  %v324 = vadd.f32 %v322, %v323
  %v325 = vmul.f32 %v324, %v262
  %v326 = vadd.f32 %v325, 1e-05
  %v327 = vrsqrt.pop %v326
  %v328 = vmul.f32 %v264, %v327
  %v329 = vmul.f32 %v265, %v327
  %v330 = vmul.f32 %v266, %v327
  %v331 = vmul.f32 %v267, %v327
  %v332 = vmul.f32 %v268, %v327
  %v333 = vmul.f32 %v269, %v327
  %v334 = vmul.f32 %v270, %v327
  %v335 = vmul.f32 %v271, %v327
  %v336 = vmul.f32 %v272, %v327
  %v337 = vmul.f32 %v273, %v327
  %v338 = vmul.f32 %v274, %v327
  %v339 = vmul.f32 %v275, %v327
  %v340 = vmul.f32 %v276, %v327
  %v341 = vmul.f32 %v277, %v327
  %v342 = vld [vmem:[%s3] sm:$0x1]
  %v344 = vlaneseq
  %v345 = vshrl.u32 %v344, 7
  %v346 = vsub.s32 0, %v345
  %v347 = vrot.slane %v342, %v346
  %v349 = vmul.f32 %v328, %v347
  %v350 = vmul.f32 %v329, %v347
  %v351 = vmul.f32 %v330, %v347
  %v352 = vmul.f32 %v331, %v347
  %v353 = vmul.f32 %v332, %v347
  %v354 = vmul.f32 %v333, %v347
  %v355 = vmul.f32 %v334, %v347
  %v356 = vmul.f32 %v335, %v347
  %v357 = vmul.f32 %v336, %v347
  %v358 = vmul.f32 %v337, %v347
  %v359 = vmul.f32 %v338, %v347
  %v360 = vmul.f32 %v339, %v347
  %v361 = vmul.f32 %v340, %v347
  %v362 = vmul.f32 %v341, %v347
  %v363 = vld [vmem:[%s4] sm:$0x1]
  %v365 = vlaneseq
  %v366 = vshrl.u32 %v365, 7
  %v367 = vsub.s32 0, %v366
  %v368 = vrot.slane %v363, %v367
  %v370 = vadd.f32 %v349, %v368
  %v371 = vadd.f32 %v350, %v368
  %v372 = vadd.f32 %v351, %v368
  %v373 = vadd.f32 %v352, %v368
  %v374 = vadd.f32 %v353, %v368
  %v375 = vadd.f32 %v354, %v368
  %v376 = vadd.f32 %v355, %v368
  %v377 = vadd.f32 %v356, %v368
  %v378 = vadd.f32 %v357, %v368
  %v379 = vadd.f32 %v358, %v368
  %v380 = vadd.f32 %v359, %v368
  %v381 = vadd.f32 %v360, %v368
  %v382 = vadd.f32 %v361, %v368
  %v383 = vadd.f32 %v362, %v368
  %vm384 = vcmp.gt.f32.partialorder %v370, 0.0
  %vm385 = vcmp.gt.f32.partialorder %v371, 0.0
  %vm386 = vcmp.gt.f32.partialorder %v372, 0.0
  %vm387 = vcmp.gt.f32.partialorder %v373, 0.0
  %vm388 = vcmp.gt.f32.partialorder %v374, 0.0
  %vm389 = vcmp.gt.f32.partialorder %v375, 0.0
  %vm390 = vcmp.gt.f32.partialorder %v376, 0.0
  %vm391 = vcmp.gt.f32.partialorder %v377, 0.0
  %vm392 = vcmp.gt.f32.partialorder %v378, 0.0
  %vm393 = vcmp.gt.f32.partialorder %v379, 0.0
  %vm394 = vcmp.gt.f32.partialorder %v380, 0.0
  %vm395 = vcmp.gt.f32.partialorder %v381, 0.0
  %vm396 = vcmp.gt.f32.partialorder %v382, 0.0
  %vm397 = vcmp.gt.f32.partialorder %v383, 0.0
  %v398 = vmul.f32 %v370, 0.01
  %v399 = vmul.f32 %v371, 0.01
  %v400 = vmul.f32 %v372, 0.01
  %v401 = vmul.f32 %v373, 0.01
  %v402 = vmul.f32 %v374, 0.01
  %v403 = vmul.f32 %v375, 0.01
  %v404 = vmul.f32 %v376, 0.01
  %v405 = vmul.f32 %v377, 0.01
  %v406 = vmul.f32 %v378, 0.01
  %v407 = vmul.f32 %v379, 0.01
  %v408 = vmul.f32 %v380, 0.01
  %v409 = vmul.f32 %v381, 0.01
  %v410 = vmul.f32 %v382, 0.01
  %v411 = vmul.f32 %v383, 0.01
  %v412 = vsel %vm384, %v370, %v398
  %v413 = vsel %vm385, %v371, %v399
  %v414 = vsel %vm386, %v372, %v400
  %v415 = vsel %vm387, %v373, %v401
  %v416 = vsel %vm388, %v374, %v402
  %v417 = vsel %vm389, %v375, %v403
  %v418 = vsel %vm390, %v376, %v404
  %v419 = vsel %vm391, %v377, %v405
  %v420 = vsel %vm392, %v378, %v406
  %v421 = vsel %vm393, %v379, %v407
  %v422 = vsel %vm394, %v380, %v408
  %v423 = vsel %vm395, %v381, %v409
  %v424 = vsel %vm396, %v382, %v410
  %v425 = vsel %vm397, %v383, %v411
  %426 = vst.msk [vmem:[%s5] sm:$0xff] %vm227, %v412
  %427 = vst.msk [vmem:[%s5 + $0x8] sm:$0xff] %vm227, %v413
  %428 = vst.msk [vmem:[%s5 + $0x10] sm:$0xff] %vm227, %v414
  %429 = vst.msk [vmem:[%s5 + $0x18] sm:$0xff] %vm227, %v415
  %430 = vst.msk [vmem:[%s5 + $0x20] sm:$0xff] %vm227, %v416
  %431 = vst.msk [vmem:[%s5 + $0x28] sm:$0xff] %vm227, %v417
  %432 = vst.msk [vmem:[%s5 + $0x30] sm:$0xff] %vm227, %v418
  %433 = vst.msk [vmem:[%s5 + $0x38] sm:$0xff] %vm227, %v419
  %434 = vst.msk [vmem:[%s5 + $0x40] sm:$0xff] %vm227, %v420
  %435 = vst.msk [vmem:[%s5 + $0x48] sm:$0xff] %vm227, %v421
  %436 = vst.msk [vmem:[%s5 + $0x50] sm:$0xff] %vm227, %v422
  %437 = vst.msk [vmem:[%s5 + $0x58] sm:$0xff] %vm227, %v423
  %438 = vst.msk [vmem:[%s5 + $0x60] sm:$0xff] %vm227, %v424
  %439 = vst.msk [vmem:[%s5 + $0x68] sm:$0xf] %vm253, %v425
  // Predicated region
  $region22: #{autoencoder_forward.6} parent=0 // pred_check
    _
  $region23: #{autoencoder_forward.6} parent=0 // pred_check_branch
    %441 = sbr.rel (0) target = $region25
  $region24: #{autoencoder_forward.6} parent=0 // pred_region
    _
  $region25: #{autoencoder_forward.6} parent=0 // pred_fallthru
    _
  // Predicated region
  $region26: #{autoencoder_forward.6} parent=0 // pred_check
    _
  $region27: #{autoencoder_forward.6} parent=0 // pred_check_branch
    %443 = sbr.rel (0) target = $region29
  $region28: #{autoencoder_forward.6} parent=0 // pred_region
    _
  $region29: #{autoencoder_forward.6} parent=0 // pred_fallthru
    _

// kernel: autoencoder_forward.7
$region0: #{autoencoder_forward.7}
  #allocation0 [shape = 'u32[]', space=smem, size = 0x4, offset = 0x4, fixed_abs, tag = 'smem constant byte address 0x4 - core index']
  #allocation1 [shape = 'u32[144,128]{1,0:T(1,128)}', space=vmem, size = 0x12000, scoped, tag = 'internal scratch']
  %s0 = inlined_call_operand.vmem [shape: f32[108,288], index: 0, kind: input, shape index: {}]
  %s1 = inlined_call_operand.vmem [shape: f32[288,32], index: 1, kind: input, shape index: {}]
  %s2 = inlined_call_operand.vmem [shape: f32[1,32], index: 2, kind: input, shape index: {}]
  %s3 = inlined_call_operand.vmem [shape: f32[1,32], index: 3, kind: input, shape index: {}]
  %s4 = inlined_call_operand.vmem [shape: f32[1,32], index: 4, kind: input, shape index: {}]
  %s5 = inlined_call_operand.vmem [shape: f32[108,32], index: 5, kind: output, shape index: {}]
  %s6 = sld [smem:[#allocation0]]
  $region30: #{autoencoder_forward.7} parent=0
    _
  %s8 = ssub.s32 1, %s6
  %s9 = scalar_select 0, %s8, %s6
  // Predicated region
  $region2: #{autoencoder_forward.7} parent=0 // pred_check
    _
  $region3: #{autoencoder_forward.7} parent=0 // pred_check_branch
    %11 = sbr.rel (0) target = $region5
  $region4: #{autoencoder_forward.7} parent=0 // pred_region
    _
  $region5: #{autoencoder_forward.7} parent=0 // pred_fallthru
    _
  // Predicated region
  $region6: #{autoencoder_forward.7} parent=0 // pred_check
    _
  $region7: #{autoencoder_forward.7} parent=0 // pred_check_branch
    %13 = sbr.rel (0) target = $region9
  $region8: #{autoencoder_forward.7} parent=0 // pred_region
    _
  $region9: #{autoencoder_forward.7} parent=0 // pred_fallthru
    _
  // Predicated region
  $region10: #{autoencoder_forward.7} parent=0 // pred_check
    _
  $region11: #{autoencoder_forward.7} parent=0 // pred_check_branch
    %15 = sbr.rel (0) target = $region13
  $region12: #{autoencoder_forward.7} parent=0 // pred_region
    _
  $region13: #{autoencoder_forward.7} parent=0 // pred_fallthru
    _
  // Predicated region
  $region14: #{autoencoder_forward.7} parent=0 // pred_check
    _
  $region15: #{autoencoder_forward.7} parent=0 // pred_check_branch
    %17 = sbr.rel (0) target = $region17
  $region16: #{autoencoder_forward.7} parent=0 // pred_region
    _
  $region17: #{autoencoder_forward.7} parent=0 // pred_fallthru
    _
  // Predicated region
  $region18: #{autoencoder_forward.7} parent=0 // pred_check
    _
  $region19: #{autoencoder_forward.7} parent=0 // pred_check_branch
    %19 = sbr.rel (0) target = $region21
  $region20: #{autoencoder_forward.7} parent=0 // pred_region
    _
  $region21: #{autoencoder_forward.7} parent=0 // pred_fallthru
    _
  %v20 = vld [vmem:[%s0] sm:$0xff]
  %v21 = vld [vmem:[%s0 + $0x8] sm:$0xff]
  %v22 = vld [vmem:[%s0 + $0x10] sm:$0xff]
  %v23 = vld [vmem:[%s0 + $0x18] sm:$0xff]
  %v24 = vld [vmem:[%s0 + $0x20] sm:$0xff]
  %v25 = vld [vmem:[%s0 + $0x28] sm:$0xff]
  %v26 = vld [vmem:[%s0 + $0x30] sm:$0xff]
  %v27 = vld [vmem:[%s0 + $0x38] sm:$0xff]
  %v28 = vld [vmem:[%s0 + $0x40] sm:$0xff]
  %v29 = vld [vmem:[%s0 + $0x48] sm:$0xff]
  %v30 = vld [vmem:[%s0 + $0x50] sm:$0xff]
  %v31 = vld [vmem:[%s0 + $0x58] sm:$0xff]
  %v32 = vld [vmem:[%s0 + $0x60] sm:$0xff]
  %v33 = vld [vmem:[%s0 + $0x68] sm:$0xff]
  %v34 = vld [vmem:[%s0 + $0x70] sm:$0xff]
  %v35 = vld [vmem:[%s0 + $0x78] sm:$0xff]
  %v36 = vld [vmem:[%s0 + $0x80] sm:$0xff]
  %v37 = vld [vmem:[%s0 + $0x88] sm:$0xff]
  %v38 = vld [vmem:[%s0 + $0x90] sm:$0xff]
  %v39 = vld [vmem:[%s0 + $0x98] sm:$0xff]
  %v40 = vld [vmem:[%s0 + $0xa0] sm:$0xff]
  %v41 = vld [vmem:[%s0 + $0xa8] sm:$0xff]
  %v42 = vld [vmem:[%s0 + $0xb0] sm:$0xff]
  %v43 = vld [vmem:[%s0 + $0xb8] sm:$0xff]
  %v44 = vld [vmem:[%s0 + $0xc0] sm:$0xff]
  %v45 = vld [vmem:[%s0 + $0xc8] sm:$0xff]
  %v46 = vld [vmem:[%s0 + $0xd0] sm:$0xff]
  %v47 = vld [vmem:[%s0 + $0xd8] sm:$0xff]
  %v48 = vld [vmem:[%s0 + $0xe0] sm:$0xff]
  %v49 = vld [vmem:[%s0 + $0xe8] sm:$0xff]
  %v50 = vld [vmem:[%s0 + $0xf0] sm:$0xff]
  %v51 = vld [vmem:[%s0 + $0xf8] sm:$0xff]
  %v52 = vld [vmem:[%s0 + $0x100] sm:$0xff]
  %v53 = vld [vmem:[%s0 + $0x108] sm:$0xff]
  %v54 = vld [vmem:[%s0 + $0x110] sm:$0xff]
  %v55 = vld [vmem:[%s0 + $0x118] sm:$0xff]
  %v56 = vld [vmem:[%s0 + $0x120] sm:$0xff]
  %v57 = vld [vmem:[%s0 + $0x128] sm:$0xff]
  %v58 = vld [vmem:[%s0 + $0x130] sm:$0xff]
  %v59 = vld [vmem:[%s0 + $0x138] sm:$0xf]
  %v60 = vld [vmem:[%s0 + $0x140] sm:$0xf]
  %v61 = vld [vmem:[%s0 + $0x148] sm:$0xf]
  %v62 = vld [vmem:[%s1] sm:$0xff]
  %v63 = vld [vmem:[%s1 + $0x8] sm:$0xff]
  %v64 = vld [vmem:[%s1 + $0x10] sm:$0xff]
  %v65 = vld [vmem:[%s1 + $0x18] sm:$0xff]
  %v66 = vld [vmem:[%s1 + $0x20] sm:$0xff]
  %v67 = vld [vmem:[%s1 + $0x28] sm:$0xff]
  %v68 = vld [vmem:[%s1 + $0x30] sm:$0xff]
  %v69 = vld [vmem:[%s1 + $0x38] sm:$0xff]
  %v70 = vld [vmem:[%s1 + $0x40] sm:$0xff]
  %v71 = vld [vmem:[%s1 + $0x48] sm:$0xff]
  %v72 = vld [vmem:[%s1 + $0x50] sm:$0xff]
  %v73 = vld [vmem:[%s1 + $0x58] sm:$0xff]
  %v74 = vld [vmem:[%s1 + $0x60] sm:$0xff]
  %v75 = vld [vmem:[%s1 + $0x68] sm:$0xff]
  %v76 = vld [vmem:[%s1 + $0x70] sm:$0xff]
  %v77 = vld [vmem:[%s1 + $0x78] sm:$0xff]
  %v78 = vld [vmem:[%s1 + $0x80] sm:$0xff]
  %v79 = vld [vmem:[%s1 + $0x88] sm:$0xff]
  %v80 = vld [vmem:[%s1 + $0x90] sm:$0xff]
  %v81 = vld [vmem:[%s1 + $0x98] sm:$0xff]
  %v82 = vld [vmem:[%s1 + $0xa0] sm:$0xff]
  %v83 = vld [vmem:[%s1 + $0xa8] sm:$0xff]
  %v84 = vld [vmem:[%s1 + $0xb0] sm:$0xff]
  %v85 = vld [vmem:[%s1 + $0xb8] sm:$0xff]
  %v86 = vld [vmem:[%s1 + $0xc0] sm:$0xff]
  %v87 = vld [vmem:[%s1 + $0xc8] sm:$0xff]
  %v88 = vld [vmem:[%s1 + $0xd0] sm:$0xff]
  %v89 = vld [vmem:[%s1 + $0xd8] sm:$0xff]
  %v90 = vld [vmem:[%s1 + $0xe0] sm:$0xff]
  %v91 = vld [vmem:[%s1 + $0xe8] sm:$0xff]
  %v92 = vld [vmem:[%s1 + $0xf0] sm:$0xff]
  %v93 = vld [vmem:[%s1 + $0xf8] sm:$0xff]
  %v94 = vld [vmem:[%s1 + $0x100] sm:$0xff]
  %v95 = vld [vmem:[%s1 + $0x108] sm:$0xff]
  %v96 = vld [vmem:[%s1 + $0x110] sm:$0xff]
  %v97 = vld [vmem:[%s1 + $0x118] sm:$0xff]
  %v98 = vld [vmem:[%s2] sm:$0x1]
  %v100 = vlaneseq
  %v101 = vshrl.u32 %v100, 7
  %v102 = vsub.s32 0, %v101
  %v103 = vrot.slane %v98, %v102
  %vm105 = vcmask 261120
  %v107 = vsel %vm105, %v22, 0
  %v110 = vsel %vm105, %v25, 0
  %v113 = vsel %vm105, %v28, 0
  %v116 = vsel %vm105, %v31, 0
  %v119 = vsel %vm105, %v34, 0
  %v122 = vsel %vm105, %v37, 0
  %v125 = vsel %vm105, %v40, 0
  %v128 = vsel %vm105, %v43, 0
  %v131 = vsel %vm105, %v46, 0
  %v134 = vsel %vm105, %v49, 0
  %v137 = vsel %vm105, %v52, 0
  %v140 = vsel %vm105, %v55, 0
  %v143 = vsel %vm105, %v58, 0
  %v146 = vsel %vm105, %v61, 0
  %148 = vmatprep.subr.mxu0 0.0
  %149 = vmatpush1.msra.mxu0 %v62
  %150 = vmatprep.subr.mxu0 0.0
  %151 = vmatpush1.msra.mxu0 %v63
  %152 = vmatprep.subr.mxu0 0.0
  %153 = vmatpush1.msra.mxu0 %v64
  %154 = vmatprep.subr.mxu0 0.0
  %155 = vmatpush1.msra.mxu0 %v65
  %156 = vmatprep.subr.mxu0 0.0
  %157 = vmatpush1.msra.mxu0 %v66
  %158 = vmatprep.subr.mxu0 0.0
  %159 = vmatpush1.msra.mxu0 %v67
  %160 = vmatprep.subr.mxu0 0.0
  %161 = vmatpush1.msra.mxu0 %v68
  %162 = vmatprep.subr.mxu0 0.0
  %163 = vmatpush1.msra.mxu0 %v69
  %164 = vmatprep.subr.mxu0 0.0
  %165 = vmatpush1.msra.mxu0 %v70
  %166 = vmatprep.subr.mxu0 0.0
  %167 = vmatpush1.msra.mxu0 %v71
  %168 = vmatprep.subr.mxu0 0.0
  %169 = vmatpush1.msra.mxu0 %v72
  %170 = vmatprep.subr.mxu0 0.0
  %171 = vmatpush1.msra.mxu0 %v73
  %172 = vmatprep.subr.mxu0 0.0
  %173 = vmatpush1.msra.mxu0 %v74
  %174 = vmatprep.subr.mxu0 0.0
  %175 = vmatpush1.msra.mxu0 %v75
  %176 = vmatprep.subr.mxu0 0.0
  %177 = vmatpush1.msra.mxu0 %v76
  %178 = vmatprep.subr.mxu0 0.0
  %179 = vmatpush1.msra.mxu0 %v77
  %180 = vmatprep.subr.mxu0 0.0
  %181 = vmatpush1.msra.mxu0 %v78
  %182 = vmatprep.subr.mxu0 0.0
  %183 = vmatpush1.msra.mxu0 %v79
  %184 = vmatprep.subr.mxu0 0.0
  %185 = vmatpush1.msra.mxu0 %v80
  %186 = vmatprep.subr.mxu0 0.0
  %187 = vmatpush1.msra.mxu0 %v81
  %188 = vmatprep.subr.mxu0 0.0
  %189 = vmatpush1.msra.mxu0 %v82
  %190 = vmatprep.subr.mxu0 0.0
  %191 = vmatpush1.msra.mxu0 %v83
  %192 = vmatprep.subr.mxu0 0.0
  %193 = vmatpush1.msra.mxu0 %v84
  %194 = vmatprep.subr.mxu0 0.0
  %195 = vmatpush1.msra.mxu0 %v85
  %196 = vmatprep.subr.mxu0 0.0
  %197 = vmatpush1.msra.mxu0 %v86
  %198 = vmatprep.subr.mxu0 0.0
  %199 = vmatpush1.msra.mxu0 %v87
  %200 = vmatprep.subr.mxu0 0.0
  %201 = vmatpush1.msra.mxu0 %v88
  %202 = vmatprep.subr.mxu0 0.0
  %203 = vmatpush1.msra.mxu0 %v89
  %204 = vmatprep.subr.mxu0 0.0
  %205 = vmatpush1.msra.mxu0 %v90
  %206 = vmatprep.subr.mxu0 0.0
  %207 = vmatpush1.msra.mxu0 %v91
  %208 = vmatprep.subr.mxu0 0.0
  %209 = vmatpush1.msra.mxu0 %v92
  %210 = vmatprep.subr.mxu0 0.0
  %211 = vmatpush1.msra.mxu0 %v93
  %212 = vmatprep.mubr.f32.mxu0 %v21
  %213 = vmatmul.mubr.f32.gmra.mrb[0].mxu0 %v20
  %v214 = vpop.f32.mrb[0].mxu0
  %v215 = vadd.f32 %v103, %v214
  %v216 = vpop.f32.mrb[0].mxu0
  %217 = vmatprep.mubr.f32.mxu0 %v24
  %218 = vmatmul.mubr.f32.gmra.mrb[0].mxu0 %v23
  %v219 = vpop.f32.mrb[0].mxu0
  %v220 = vadd.f32 %v103, %v219
  %v221 = vpop.f32.mrb[0].mxu0
  %222 = vmatprep.mubr.f32.mxu0 %v27
  %223 = vmatmul.mubr.f32.gmra.mrb[0].mxu0 %v26
  %v224 = vpop.f32.mrb[0].mxu0
  %v225 = vadd.f32 %v103, %v224
  %v226 = vpop.f32.mrb[0].mxu0
  %227 = vmatprep.mubr.f32.mxu0 %v30
  %228 = vmatmul.mubr.f32.gmra.mrb[0].mxu0 %v29
  %v229 = vpop.f32.mrb[0].mxu0
  %v230 = vadd.f32 %v103, %v229
  %v231 = vpop.f32.mrb[0].mxu0
  %232 = vmatprep.mubr.f32.mxu0 %v33
  %233 = vmatmul.mubr.f32.gmra.mrb[0].mxu0 %v32
  %v234 = vpop.f32.mrb[0].mxu0
  %v235 = vadd.f32 %v103, %v234
  %v236 = vpop.f32.mrb[0].mxu0
  %237 = vmatprep.mubr.f32.mxu0 %v36
  %238 = vmatmul.mubr.f32.gmra.mrb[0].mxu0 %v35
  %v239 = vpop.f32.mrb[0].mxu0
  %v240 = vadd.f32 %v103, %v239
  %v241 = vpop.f32.mrb[0].mxu0
  %242 = vmatprep.mubr.f32.mxu0 %v39
  %243 = vmatmul.mubr.f32.gmra.mrb[0].mxu0 %v38
  %v244 = vpop.f32.mrb[0].mxu0
  %v245 = vadd.f32 %v103, %v244
  %v246 = vpop.f32.mrb[0].mxu0
  %247 = vmatprep.mubr.f32.mxu0 %v42
  %248 = vmatmul.mubr.f32.gmra.mrb[0].mxu0 %v41
  %v249 = vpop.f32.mrb[0].mxu0
  %v250 = vadd.f32 %v103, %v249
  %v251 = vpop.f32.mrb[0].mxu0
  %252 = vmatprep.mubr.f32.mxu0 %v45
  %253 = vmatmul.mubr.f32.gmra.mrb[0].mxu0 %v44
  %v254 = vpop.f32.mrb[0].mxu0
  %v255 = vadd.f32 %v103, %v254
  %v256 = vpop.f32.mrb[0].mxu0
  %257 = vmatprep.mubr.f32.mxu0 %v48
  %258 = vmatmul.mubr.f32.gmra.mrb[0].mxu0 %v47
  %v259 = vpop.f32.mrb[0].mxu0
  %v260 = vadd.f32 %v103, %v259
  %v261 = vpop.f32.mrb[0].mxu0
  %262 = vmatprep.mubr.f32.mxu0 %v51
  %263 = vmatmul.mubr.f32.gmra.mrb[0].mxu0 %v50
  %v264 = vpop.f32.mrb[0].mxu0
  %v265 = vadd.f32 %v103, %v264
  %v266 = vpop.f32.mrb[0].mxu0
  %267 = vmatprep.mubr.f32.mxu0 %v54
  %268 = vmatmul.mubr.f32.gmra.mrb[0].mxu0 %v53
  %v269 = vpop.f32.mrb[0].mxu0
  %v270 = vadd.f32 %v103, %v269
  %v271 = vpop.f32.mrb[0].mxu0
  %272 = vmatprep.mubr.f32.mxu0 %v57
  %273 = vmatmul.mubr.f32.gmra.mrb[0].mxu0 %v56
  %v274 = vpop.f32.mrb[0].mxu0
  %v275 = vadd.f32 %v103, %v274
  %v276 = vpop.f32.mrb[0].mxu0
  %277 = vmatprep.mubr.f32.mxu0 %v60
  %278 = vmatmul.mubr.f32.gmra.mrb[0].mxu0 %v59
  %v279 = vpop.f32.mrb[0].mxu0
  %v280 = vadd.f32 %v103, %v279
  %v281 = vpop.f32.mrb[0].mxu0
  %282 = vdwg.mxu0
  %283 = vmatprep.subr.mxu0 0.0
  %284 = vmatpush1.msra.mxu0 %v94
  %285 = vmatprep.subr.mxu0 0.0
  %286 = vmatpush1.msra.mxu0 %v95
  %287 = vmatprep.subr.mxu0 0.0
  %288 = vmatpush1.msra.mxu0 %v96
  %289 = vmatprep.subr.mxu0 0.0
  %290 = vmatpush1.msra.mxu0 %v97
  %291 = vmatprep.subr.mxu0 0.0
  %292 = vmatpush1.msra.mxu0 0.0
  %293 = vmatprep.subr.mxu0 0.0
  %294 = vmatpush1.msra.mxu0 0.0
  %295 = vmatprep.subr.mxu0 0.0
  %296 = vmatpush1.msra.mxu0 0.0
  %297 = vmatprep.subr.mxu0 0.0
  %298 = vmatpush1.msra.mxu0 0.0
  %299 = vmatprep.subr.mxu0 0.0
  %300 = vmatpush1.msra.mxu0 0.0
  %301 = vmatprep.subr.mxu0 0.0
  %302 = vmatpush1.msra.mxu0 0.0
  %303 = vmatprep.subr.mxu0 0.0
  %304 = vmatpush1.msra.mxu0 0.0
  %305 = vmatprep.subr.mxu0 0.0
  %306 = vmatpush1.msra.mxu0 0.0
  %307 = vmatprep.subr.mxu0 0.0
  %308 = vmatpush1.msra.mxu0 0.0
  %309 = vmatprep.subr.mxu0 0.0
  %310 = vmatpush1.msra.mxu0 0.0
  %311 = vmatprep.subr.mxu0 0.0
  %312 = vmatpush1.msra.mxu0 0.0
  %313 = vmatprep.subr.mxu0 0.0
  %314 = vmatpush1.msra.mxu0 0.0
  %315 = vmatprep.subr.mxu0 0.0
  %316 = vmatpush1.msra.mxu0 0.0
  %317 = vmatprep.subr.mxu0 0.0
  %318 = vmatpush1.msra.mxu0 0.0
  %319 = vmatprep.subr.mxu0 0.0
  %320 = vmatpush1.msra.mxu0 0.0
  %321 = vmatprep.subr.mxu0 0.0
  %322 = vmatpush1.msra.mxu0 0.0
  %323 = vmatprep.subr.mxu0 0.0
  %324 = vmatpush1.msra.mxu0 0.0
  %325 = vmatprep.subr.mxu0 0.0
  %326 = vmatpush1.msra.mxu0 0.0
  %327 = vmatprep.subr.mxu0 0.0
  %328 = vmatpush1.msra.mxu0 0.0
  %329 = vmatprep.subr.mxu0 0.0
  %330 = vmatpush1.msra.mxu0 0.0
  %331 = vmatprep.subr.mxu0 0.0
  %332 = vmatpush1.msra.mxu0 0.0
  %333 = vmatprep.subr.mxu0 0.0
  %334 = vmatpush1.msra.mxu0 0.0
  %335 = vmatprep.subr.mxu0 0.0
  %336 = vmatpush1.msra.mxu0 0.0
  %337 = vmatprep.subr.mxu0 0.0
  %338 = vmatpush1.msra.mxu0 0.0
  %339 = vmatprep.subr.mxu0 0.0
  %340 = vmatpush1.msra.mxu0 0.0
  %341 = vmatprep.subr.mxu0 0.0
  %342 = vmatpush1.msra.mxu0 0.0
  %343 = vmatprep.subr.mxu0 0.0
  %344 = vmatpush1.msra.mxu0 0.0
  %345 = vmatprep.subr.mxu0 0.0
  %346 = vmatpush1.msra.mxu0 0.0
  %347 = vmatprep.mubr.f32.mxu0 0.0
  %348 = vmatmul.mubr.f32.gmra.mrb[0].mxu0 %v107
  %v349 = vpop.f32.mrb[0].mxu0
  %v350 = vadd.f32 %v215, %v349
  %v351 = vpop.f32.mrb[0].mxu0
  %352 = vmatprep.mubr.f32.mxu0 0.0
  %353 = vmatmul.mubr.f32.gmra.mrb[0].mxu0 %v110
  %v354 = vpop.f32.mrb[0].mxu0
  %v355 = vadd.f32 %v220, %v354
  %v356 = vpop.f32.mrb[0].mxu0
  %357 = vmatprep.mubr.f32.mxu0 0.0
  %358 = vmatmul.mubr.f32.gmra.mrb[0].mxu0 %v113
  %v359 = vpop.f32.mrb[0].mxu0
  %v360 = vadd.f32 %v225, %v359
  %v361 = vpop.f32.mrb[0].mxu0
  %362 = vmatprep.mubr.f32.mxu0 0.0
  %363 = vmatmul.mubr.f32.gmra.mrb[0].mxu0 %v116
  %v364 = vpop.f32.mrb[0].mxu0
  %v365 = vadd.f32 %v230, %v364
  %v366 = vpop.f32.mrb[0].mxu0
  %367 = vmatprep.mubr.f32.mxu0 0.0
  %368 = vmatmul.mubr.f32.gmra.mrb[0].mxu0 %v119
  %v369 = vpop.f32.mrb[0].mxu0
  %v370 = vadd.f32 %v235, %v369
  %v371 = vpop.f32.mrb[0].mxu0
  %372 = vmatprep.mubr.f32.mxu0 0.0
  %373 = vmatmul.mubr.f32.gmra.mrb[0].mxu0 %v122
  %v374 = vpop.f32.mrb[0].mxu0
  %v375 = vadd.f32 %v240, %v374
  %v376 = vpop.f32.mrb[0].mxu0
  %377 = vmatprep.mubr.f32.mxu0 0.0
  %378 = vmatmul.mubr.f32.gmra.mrb[0].mxu0 %v125
  %v379 = vpop.f32.mrb[0].mxu0
  %v380 = vadd.f32 %v245, %v379
  %v381 = vpop.f32.mrb[0].mxu0
  %382 = vmatprep.mubr.f32.mxu0 0.0
  %383 = vmatmul.mubr.f32.gmra.mrb[0].mxu0 %v128
  %v384 = vpop.f32.mrb[0].mxu0
  %v385 = vadd.f32 %v250, %v384
  %v386 = vpop.f32.mrb[0].mxu0
  %387 = vmatprep.mubr.f32.mxu0 0.0
  %388 = vmatmul.mubr.f32.gmra.mrb[0].mxu0 %v131
  %v389 = vpop.f32.mrb[0].mxu0
  %v390 = vadd.f32 %v255, %v389
  %v391 = vpop.f32.mrb[0].mxu0
  %392 = vmatprep.mubr.f32.mxu0 0.0
  %393 = vmatmul.mubr.f32.gmra.mrb[0].mxu0 %v134
  %v394 = vpop.f32.mrb[0].mxu0
  %v395 = vadd.f32 %v260, %v394
  %v396 = vpop.f32.mrb[0].mxu0
  %397 = vmatprep.mubr.f32.mxu0 0.0
  %398 = vmatmul.mubr.f32.gmra.mrb[0].mxu0 %v137
  %v399 = vpop.f32.mrb[0].mxu0
  %v400 = vadd.f32 %v265, %v399
  %v401 = vpop.f32.mrb[0].mxu0
  %402 = vmatprep.mubr.f32.mxu0 0.0
  %403 = vmatmul.mubr.f32.gmra.mrb[0].mxu0 %v140
  %v404 = vpop.f32.mrb[0].mxu0
  %v405 = vadd.f32 %v270, %v404
  %v406 = vpop.f32.mrb[0].mxu0
  %407 = vmatprep.mubr.f32.mxu0 0.0
  %408 = vmatmul.mubr.f32.gmra.mrb[0].mxu0 %v143
  %v409 = vpop.f32.mrb[0].mxu0
  %v410 = vadd.f32 %v275, %v409
  %v411 = vpop.f32.mrb[0].mxu0
  %412 = vmatprep.mubr.f32.mxu0 0.0
  %413 = vmatmul.mubr.f32.gmra.mrb[0].mxu0 %v146
  %v414 = vpop.f32.mrb[0].mxu0
  %v415 = vadd.f32 %v280, %v414
  %v416 = vpop.f32.mrb[0].mxu0
  %417 = vdwg.mxu0
  %v418 = vsel %vm105, %v350, 0.0
  %v419 = vsel %vm105, %v355, 0.0
  %v420 = vadd.f32 %v418, %v419
  %v421 = vsel %vm105, %v360, 0.0
  %v422 = vadd.f32 %v420, %v421
  %v423 = vsel %vm105, %v365, 0.0
  %v424 = vadd.f32 %v422, %v423
  %v425 = vsel %vm105, %v370, 0.0
  %v426 = vadd.f32 %v424, %v425
  %v427 = vsel %vm105, %v375, 0.0
  %v428 = vadd.f32 %v426, %v427
  %v429 = vsel %vm105, %v380, 0.0
  %v430 = vadd.f32 %v428, %v429
  %v431 = vsel %vm105, %v385, 0.0
  %v432 = vadd.f32 %v430, %v431
  %v433 = vsel %vm105, %v390, 0.0
  %v434 = vadd.f32 %v432, %v433
  %v435 = vsel %vm105, %v395, 0.0
  %v436 = vadd.f32 %v434, %v435
  %v437 = vsel %vm105, %v400, 0.0
  %v438 = vadd.f32 %v436, %v437
  %v439 = vsel %vm105, %v405, 0.0
  %v440 = vadd.f32 %v438, %v439
  %v441 = vsel %vm105, %v410, 0.0
  %v442 = vadd.f32 %v440, %v441
  %vm443 = vcmask 257024
  %v444 = vsel %vm443, %v415, 0.0
  %v445 = vadd.f32 %v442, %v444
  %v446 = vrot.slane %v445, 4
  %v447 = vadd.f32 %v445, %v446
  %v448 = vrot.slane %v447, 2
  %v449 = vadd.f32 %v447, %v448
  %v450 = vrot.slane %v449, 1
  %v451 = vadd.f32 %v449, %v450
  %v452 = vrcp.pop 108.0
  %v453 = vmul.f32 %v451, %v452
  %v454 = vsub.f32 %v350, %v453
  %v455 = vsub.f32 %v355, %v453
  %v456 = vsub.f32 %v360, %v453
  %v457 = vsub.f32 %v365, %v453
  %v458 = vsub.f32 %v370, %v453
  %v459 = vsub.f32 %v375, %v453
  %v460 = vsub.f32 %v380, %v453
  %v461 = vsub.f32 %v385, %v453
  %v462 = vsub.f32 %v390, %v453
  %v463 = vsub.f32 %v395, %v453
  %v464 = vsub.f32 %v400, %v453
  %v465 = vsub.f32 %v405, %v453
  %v466 = vsub.f32 %v410, %v453
  %v467 = vsub.f32 %v415, %v453
  %v468 = vmul.f32 %v454, %v454
  %v469 = vmul.f32 %v455, %v455
  %v470 = vmul.f32 %v456, %v456
  %v471 = vmul.f32 %v457, %v457
  %v472 = vmul.f32 %v458, %v458
  %v473 = vmul.f32 %v459, %v459
  %v474 = vmul.f32 %v460, %v460
  %v475 = vmul.f32 %v461, %v461
  %v476 = vmul.f32 %v462, %v462
  %v477 = vmul.f32 %v463, %v463
  %v478 = vmul.f32 %v464, %v464
  %v479 = vmul.f32 %v465, %v465
  %v480 = vmul.f32 %v466, %v466
  %v481 = vmul.f32 %v467, %v467
  %v482 = vsel %vm105, %v468, 0.0
  %v483 = vsel %vm105, %v469, 0.0
  %v484 = vadd.f32 %v482, %v483
  %v485 = vsel %vm105, %v470, 0.0
  %v486 = vadd.f32 %v484, %v485
  %v487 = vsel %vm105, %v471, 0.0
  %v488 = vadd.f32 %v486, %v487
  %v489 = vsel %vm105, %v472, 0.0
  %v490 = vadd.f32 %v488, %v489
  %v491 = vsel %vm105, %v473, 0.0
  %v492 = vadd.f32 %v490, %v491
  %v493 = vsel %vm105, %v474, 0.0
  %v494 = vadd.f32 %v492, %v493
  %v495 = vsel %vm105, %v475, 0.0
  %v496 = vadd.f32 %v494, %v495
  %v497 = vsel %vm105, %v476, 0.0
  %v498 = vadd.f32 %v496, %v497
  %v499 = vsel %vm105, %v477, 0.0
  %v500 = vadd.f32 %v498, %v499
  %v501 = vsel %vm105, %v478, 0.0
  %v502 = vadd.f32 %v500, %v501
  %v503 = vsel %vm105, %v479, 0.0
  %v504 = vadd.f32 %v502, %v503
  %v505 = vsel %vm105, %v480, 0.0
  %v506 = vadd.f32 %v504, %v505
  %v507 = vsel %vm443, %v481, 0.0
  %v508 = vadd.f32 %v506, %v507
  %v509 = vrot.slane %v508, 4
  %v510 = vadd.f32 %v508, %v509
  %v511 = vrot.slane %v510, 2
  %v512 = vadd.f32 %v510, %v511
  %v513 = vrot.slane %v512, 1
  %v514 = vadd.f32 %v512, %v513
  %v515 = vmul.f32 %v514, %v452
  %v516 = vadd.f32 %v515, 1e-05
  %v517 = vrsqrt.pop %v516
  %v518 = vmul.f32 %v454, %v517
  %v519 = vmul.f32 %v455, %v517
  %v520 = vmul.f32 %v456, %v517
  %v521 = vmul.f32 %v457, %v517
  %v522 = vmul.f32 %v458, %v517
  %v523 = vmul.f32 %v459, %v517
  %v524 = vmul.f32 %v460, %v517
  %v525 = vmul.f32 %v461, %v517
  %v526 = vmul.f32 %v462, %v517
  %v527 = vmul.f32 %v463, %v517
  %v528 = vmul.f32 %v464, %v517
  %v529 = vmul.f32 %v465, %v517
  %v530 = vmul.f32 %v466, %v517
  %v531 = vmul.f32 %v467, %v517
  %v532 = vld [vmem:[%s3] sm:$0x1]
  %v534 = vlaneseq
  %v535 = vshrl.u32 %v534, 7
  %v536 = vsub.s32 0, %v535
  %v537 = vrot.slane %v532, %v536
  %v539 = vmul.f32 %v518, %v537
  %v540 = vmul.f32 %v519, %v537
  %v541 = vmul.f32 %v520, %v537
  %v542 = vmul.f32 %v521, %v537
  %v543 = vmul.f32 %v522, %v537
  %v544 = vmul.f32 %v523, %v537
  %v545 = vmul.f32 %v524, %v537
  %v546 = vmul.f32 %v525, %v537
  %v547 = vmul.f32 %v526, %v537
  %v548 = vmul.f32 %v527, %v537
  %v549 = vmul.f32 %v528, %v537
  %v550 = vmul.f32 %v529, %v537
  %v551 = vmul.f32 %v530, %v537
  %v552 = vmul.f32 %v531, %v537
  %v553 = vld [vmem:[%s4] sm:$0x1]
  %v555 = vlaneseq
  %v556 = vshrl.u32 %v555, 7
  %v557 = vsub.s32 0, %v556
  %v558 = vrot.slane %v553, %v557
  %v560 = vadd.f32 %v539, %v558
  %v561 = vadd.f32 %v540, %v558
  %v562 = vadd.f32 %v541, %v558
  %v563 = vadd.f32 %v542, %v558
  %v564 = vadd.f32 %v543, %v558
  %v565 = vadd.f32 %v544, %v558
  %v566 = vadd.f32 %v545, %v558
  %v567 = vadd.f32 %v546, %v558
  %v568 = vadd.f32 %v547, %v558
  %v569 = vadd.f32 %v548, %v558
  %v570 = vadd.f32 %v549, %v558
  %v571 = vadd.f32 %v550, %v558
  %v572 = vadd.f32 %v551, %v558
  %v573 = vadd.f32 %v552, %v558
  %vm574 = vcmp.gt.f32.partialorder %v560, 0.0
  %vm575 = vcmp.gt.f32.partialorder %v561, 0.0
  %vm576 = vcmp.gt.f32.partialorder %v562, 0.0
  %vm577 = vcmp.gt.f32.partialorder %v563, 0.0
  %vm578 = vcmp.gt.f32.partialorder %v564, 0.0
  %vm579 = vcmp.gt.f32.partialorder %v565, 0.0
  %vm580 = vcmp.gt.f32.partialorder %v566, 0.0
  %vm581 = vcmp.gt.f32.partialorder %v567, 0.0
  %vm582 = vcmp.gt.f32.partialorder %v568, 0.0
  %vm583 = vcmp.gt.f32.partialorder %v569, 0.0
  %vm584 = vcmp.gt.f32.partialorder %v570, 0.0
  %vm585 = vcmp.gt.f32.partialorder %v571, 0.0
  %vm586 = vcmp.gt.f32.partialorder %v572, 0.0
  %vm587 = vcmp.gt.f32.partialorder %v573, 0.0
  %v588 = vmul.f32 %v560, 0.01
  %v589 = vmul.f32 %v561, 0.01
  %v590 = vmul.f32 %v562, 0.01
  %v591 = vmul.f32 %v563, 0.01
  %v592 = vmul.f32 %v564, 0.01
  %v593 = vmul.f32 %v565, 0.01
  %v594 = vmul.f32 %v566, 0.01
  %v595 = vmul.f32 %v567, 0.01
  %v596 = vmul.f32 %v568, 0.01
  %v597 = vmul.f32 %v569, 0.01
  %v598 = vmul.f32 %v570, 0.01
  %v599 = vmul.f32 %v571, 0.01
  %v600 = vmul.f32 %v572, 0.01
  %v601 = vmul.f32 %v573, 0.01
  %v602 = vsel %vm574, %v560, %v588
  %v603 = vsel %vm575, %v561, %v589
  %v604 = vsel %vm576, %v562, %v590
  %v605 = vsel %vm577, %v563, %v591
  %v606 = vsel %vm578, %v564, %v592
  %v607 = vsel %vm579, %v565, %v593
  %v608 = vsel %vm580, %v566, %v594
  %v609 = vsel %vm581, %v567, %v595
  %v610 = vsel %vm582, %v568, %v596
  %v611 = vsel %vm583, %v569, %v597
  %v612 = vsel %vm584, %v570, %v598
  %v613 = vsel %vm585, %v571, %v599
  %v614 = vsel %vm586, %v572, %v600
  %v615 = vsel %vm587, %v573, %v601
  %616 = vst.msk [vmem:[%s5] sm:$0xff] %vm105, %v602
  %617 = vst.msk [vmem:[%s5 + $0x8] sm:$0xff] %vm105, %v603
  %618 = vst.msk [vmem:[%s5 + $0x10] sm:$0xff] %vm105, %v604
  %619 = vst.msk [vmem:[%s5 + $0x18] sm:$0xff] %vm105, %v605
  %620 = vst.msk [vmem:[%s5 + $0x20] sm:$0xff] %vm105, %v606
  %621 = vst.msk [vmem:[%s5 + $0x28] sm:$0xff] %vm105, %v607
  %622 = vst.msk [vmem:[%s5 + $0x30] sm:$0xff] %vm105, %v608
  %623 = vst.msk [vmem:[%s5 + $0x38] sm:$0xff] %vm105, %v609
  %624 = vst.msk [vmem:[%s5 + $0x40] sm:$0xff] %vm105, %v610
  %625 = vst.msk [vmem:[%s5 + $0x48] sm:$0xff] %vm105, %v611
  %626 = vst.msk [vmem:[%s5 + $0x50] sm:$0xff] %vm105, %v612
  %627 = vst.msk [vmem:[%s5 + $0x58] sm:$0xff] %vm105, %v613
  %628 = vst.msk [vmem:[%s5 + $0x60] sm:$0xff] %vm105, %v614
  %629 = vst.msk [vmem:[%s5 + $0x68] sm:$0xf] %vm443, %v615
  // Predicated region
  $region22: #{autoencoder_forward.7} parent=0 // pred_check
    _
  $region23: #{autoencoder_forward.7} parent=0 // pred_check_branch
    %631 = sbr.rel (0) target = $region25
  $region24: #{autoencoder_forward.7} parent=0 // pred_region
    _
  $region25: #{autoencoder_forward.7} parent=0 // pred_fallthru
    _
  // Predicated region
  $region26: #{autoencoder_forward.7} parent=0 // pred_check
    _
  $region27: #{autoencoder_forward.7} parent=0 // pred_check_branch
    %633 = sbr.rel (0) target = $region29
  $region28: #{autoencoder_forward.7} parent=0 // pred_region
    _
  $region29: #{autoencoder_forward.7} parent=0 // pred_fallthru
    _

// kernel: autoencoder_forward.8
$region0: #{autoencoder_forward.8}
  #allocation0 [shape = 'u32[]', space=smem, size = 0x4, offset = 0x4, fixed_abs, tag = 'smem constant byte address 0x4 - core index']
  #allocation1 [shape = 'u32[144,128]{1,0:T(1,128)}', space=vmem, size = 0x12000, scoped, tag = 'internal scratch']
  %s0 = inlined_call_operand.vmem [shape: f32[2,1728], index: 0, kind: input, shape index: {}]
  %s1 = inlined_call_operand.vmem [shape: f32[1728,32], index: 1, kind: input, shape index: {}]
  %s2 = inlined_call_operand.vmem [shape: f32[1,32], index: 2, kind: input, shape index: {}]
  %s3 = inlined_call_operand.vmem [shape: f32[2,32], index: 3, kind: output, shape index: {}]
  %s4 = sld [smem:[#allocation0]]
  $region22: #{autoencoder_forward.8} parent=0
    _
  %s6 = ssub.s32 1, %s4
  %s7 = scalar_select 0, %s6, %s4
  // Predicated region
  $region2: #{autoencoder_forward.8} parent=0 // pred_check
    _
  $region3: #{autoencoder_forward.8} parent=0 // pred_check_branch
    %9 = sbr.rel (0) target = $region5
  $region4: #{autoencoder_forward.8} parent=0 // pred_region
    _
  $region5: #{autoencoder_forward.8} parent=0 // pred_fallthru
    _
  // Predicated region
  $region6: #{autoencoder_forward.8} parent=0 // pred_check
    _
  $region7: #{autoencoder_forward.8} parent=0 // pred_check_branch
    %11 = sbr.rel (0) target = $region9
  $region8: #{autoencoder_forward.8} parent=0 // pred_region
    _
  $region9: #{autoencoder_forward.8} parent=0 // pred_fallthru
    _
  // Predicated region
  $region10: #{autoencoder_forward.8} parent=0 // pred_check
    _
  $region11: #{autoencoder_forward.8} parent=0 // pred_check_branch
    %13 = sbr.rel (0) target = $region13
  $region12: #{autoencoder_forward.8} parent=0 // pred_region
    _
  $region13: #{autoencoder_forward.8} parent=0 // pred_fallthru
    _
  %v14 = vld [vmem:[%s0] sm:$0xff]
  %v15 = vld [vmem:[%s0 + $0x8] sm:$0xff]
  %v16 = vld [vmem:[%s0 + $0x10] sm:$0xff]
  %v17 = vld [vmem:[%s0 + $0x18] sm:$0xf]
  %v18 = vld [vmem:[%s1] sm:$0xff]
  %v19 = vld [vmem:[%s1 + $0x8] sm:$0xff]
  %v20 = vld [vmem:[%s1 + $0x10] sm:$0xff]
  %v21 = vld [vmem:[%s1 + $0x18] sm:$0xff]
  %v22 = vld [vmem:[%s1 + $0x20] sm:$0xff]
  %v23 = vld [vmem:[%s1 + $0x28] sm:$0xff]
  %v24 = vld [vmem:[%s1 + $0x30] sm:$0xff]
  %v25 = vld [vmem:[%s1 + $0x38] sm:$0xff]
  %v26 = vld [vmem:[%s1 + $0x40] sm:$0xff]
  %v27 = vld [vmem:[%s1 + $0x48] sm:$0xff]
  %v28 = vld [vmem:[%s1 + $0x50] sm:$0xff]
  %v29 = vld [vmem:[%s1 + $0x58] sm:$0xff]
  %v30 = vld [vmem:[%s1 + $0x60] sm:$0xff]
  %v31 = vld [vmem:[%s1 + $0x68] sm:$0xff]
  %v32 = vld [vmem:[%s1 + $0x70] sm:$0xff]
  %v33 = vld [vmem:[%s1 + $0x78] sm:$0xff]
  %v34 = vld [vmem:[%s1 + $0x80] sm:$0xff]
  %v35 = vld [vmem:[%s1 + $0x88] sm:$0xff]
  %v36 = vld [vmem:[%s1 + $0x90] sm:$0xff]
  %v37 = vld [vmem:[%s1 + $0x98] sm:$0xff]
  %v38 = vld [vmem:[%s1 + $0xa0] sm:$0xff]
  %v39 = vld [vmem:[%s1 + $0xa8] sm:$0xff]
  %v40 = vld [vmem:[%s1 + $0xb0] sm:$0xff]
  %v41 = vld [vmem:[%s1 + $0xb8] sm:$0xff]
  %v42 = vld [vmem:[%s1 + $0xc0] sm:$0xff]
  %v43 = vld [vmem:[%s1 + $0xc8] sm:$0xff]
  %v44 = vld [vmem:[%s1 + $0xd0] sm:$0xff]
  %v45 = vld [vmem:[%s1 + $0xd8] sm:$0xff]
  %v46 = vld [vmem:[%s1 + $0xe0] sm:$0xff]
  %v47 = vld [vmem:[%s1 + $0xe8] sm:$0xff]
  %v48 = vld [vmem:[%s1 + $0xf0] sm:$0xff]
  %v49 = vld [vmem:[%s1 + $0xf8] sm:$0xff]
  %v50 = vld [vmem:[%s1 + $0x100] sm:$0xff]
  %v51 = vld [vmem:[%s1 + $0x108] sm:$0xff]
  %v52 = vld [vmem:[%s1 + $0x110] sm:$0xff]
  %v53 = vld [vmem:[%s1 + $0x118] sm:$0xff]
  %v54 = vld [vmem:[%s1 + $0x120] sm:$0xff]
  %v55 = vld [vmem:[%s1 + $0x128] sm:$0xff]
  %v56 = vld [vmem:[%s1 + $0x130] sm:$0xff]
  %v57 = vld [vmem:[%s1 + $0x138] sm:$0xff]
  %v58 = vld [vmem:[%s1 + $0x140] sm:$0xff]
  %v59 = vld [vmem:[%s1 + $0x148] sm:$0xff]
  %v60 = vld [vmem:[%s1 + $0x150] sm:$0xff]
  %v61 = vld [vmem:[%s1 + $0x158] sm:$0xff]
  %v62 = vld [vmem:[%s1 + $0x160] sm:$0xff]
  %v63 = vld [vmem:[%s1 + $0x168] sm:$0xff]
  %v64 = vld [vmem:[%s1 + $0x170] sm:$0xff]
  %v65 = vld [vmem:[%s1 + $0x178] sm:$0xff]
  %v66 = vld [vmem:[%s1 + $0x180] sm:$0xff]
  %v67 = vld [vmem:[%s1 + $0x188] sm:$0xff]
  %v68 = vld [vmem:[%s1 + $0x190] sm:$0xff]
  %v69 = vld [vmem:[%s1 + $0x198] sm:$0xff]
  %v70 = vld [vmem:[%s1 + $0x1a0] sm:$0xff]
  %v71 = vld [vmem:[%s1 + $0x1a8] sm:$0xff]
  %v72 = vld [vmem:[%s1 + $0x1b0] sm:$0xff]
  %v73 = vld [vmem:[%s1 + $0x1b8] sm:$0xff]
  %v74 = vld [vmem:[%s1 + $0x1c0] sm:$0xff]
  %v75 = vld [vmem:[%s1 + $0x1c8] sm:$0xff]
  %v76 = vld [vmem:[%s1 + $0x1d0] sm:$0xff]
  %v77 = vld [vmem:[%s1 + $0x1d8] sm:$0xff]
  %v78 = vld [vmem:[%s1 + $0x1e0] sm:$0xff]
  %v79 = vld [vmem:[%s1 + $0x1e8] sm:$0xff]
  %v80 = vld [vmem:[%s1 + $0x1f0] sm:$0xff]
  %v81 = vld [vmem:[%s1 + $0x1f8] sm:$0xff]
  %v82 = vld [vmem:[%s1 + $0x200] sm:$0xff]
  %v83 = vld [vmem:[%s1 + $0x208] sm:$0xff]
  %v84 = vld [vmem:[%s1 + $0x210] sm:$0xff]
  %v85 = vld [vmem:[%s1 + $0x218] sm:$0xff]
  %v86 = vld [vmem:[%s1 + $0x220] sm:$0xff]
  %v87 = vld [vmem:[%s1 + $0x228] sm:$0xff]
  %v88 = vld [vmem:[%s1 + $0x230] sm:$0xff]
  %v89 = vld [vmem:[%s1 + $0x238] sm:$0xff]
  %v90 = vld [vmem:[%s1 + $0x240] sm:$0xff]
  %v91 = vld [vmem:[%s1 + $0x248] sm:$0xff]
  %v92 = vld [vmem:[%s1 + $0x250] sm:$0xff]
  %v93 = vld [vmem:[%s1 + $0x258] sm:$0xff]
  %v94 = vld [vmem:[%s1 + $0x260] sm:$0xff]
  %v95 = vld [vmem:[%s1 + $0x268] sm:$0xff]
  %v96 = vld [vmem:[%s1 + $0x270] sm:$0xff]
  %v97 = vld [vmem:[%s1 + $0x278] sm:$0xff]
  %v98 = vld [vmem:[%s1 + $0x280] sm:$0xff]
  %v99 = vld [vmem:[%s1 + $0x288] sm:$0xff]
  %v100 = vld [vmem:[%s1 + $0x290] sm:$0xff]
  %v101 = vld [vmem:[%s1 + $0x298] sm:$0xff]
  %v102 = vld [vmem:[%s1 + $0x2a0] sm:$0xff]
  %v103 = vld [vmem:[%s1 + $0x2a8] sm:$0xff]
  %v104 = vld [vmem:[%s1 + $0x2b0] sm:$0xff]
  %v105 = vld [vmem:[%s1 + $0x2b8] sm:$0xff]
  %v106 = vld [vmem:[%s1 + $0x2c0] sm:$0xff]
  %v107 = vld [vmem:[%s1 + $0x2c8] sm:$0xff]
  %v108 = vld [vmem:[%s1 + $0x2d0] sm:$0xff]
  %v109 = vld [vmem:[%s1 + $0x2d8] sm:$0xff]
  %v110 = vld [vmem:[%s1 + $0x2e0] sm:$0xff]
  %v111 = vld [vmem:[%s1 + $0x2e8] sm:$0xff]
  %v112 = vld [vmem:[%s1 + $0x2f0] sm:$0xff]
  %v113 = vld [vmem:[%s1 + $0x2f8] sm:$0xff]
  %v114 = vld [vmem:[%s1 + $0x300] sm:$0xff]
  %v115 = vld [vmem:[%s1 + $0x308] sm:$0xff]
  %v116 = vld [vmem:[%s1 + $0x310] sm:$0xff]
  %v117 = vld [vmem:[%s1 + $0x318] sm:$0xff]
  %v118 = vld [vmem:[%s1 + $0x320] sm:$0xff]
  %v119 = vld [vmem:[%s1 + $0x328] sm:$0xff]
  %v120 = vld [vmem:[%s1 + $0x330] sm:$0xff]
  %v121 = vld [vmem:[%s1 + $0x338] sm:$0xff]
  %v122 = vld [vmem:[%s1 + $0x340] sm:$0xff]
  %v123 = vld [vmem:[%s1 + $0x348] sm:$0xff]
  %v124 = vld [vmem:[%s1 + $0x350] sm:$0xff]
  %v125 = vld [vmem:[%s1 + $0x358] sm:$0xff]
  %v126 = vld [vmem:[%s1 + $0x360] sm:$0xff]
  %v127 = vld [vmem:[%s1 + $0x368] sm:$0xff]
  %v128 = vld [vmem:[%s1 + $0x370] sm:$0xff]
  %v129 = vld [vmem:[%s1 + $0x378] sm:$0xff]
  %v130 = vld [vmem:[%s1 + $0x380] sm:$0xff]
  %v131 = vld [vmem:[%s1 + $0x388] sm:$0xff]
  %v132 = vld [vmem:[%s1 + $0x390] sm:$0xff]
  %v133 = vld [vmem:[%s1 + $0x398] sm:$0xff]
  %v134 = vld [vmem:[%s1 + $0x3a0] sm:$0xff]
  %v135 = vld [vmem:[%s1 + $0x3a8] sm:$0xff]
  %v136 = vld [vmem:[%s1 + $0x3b0] sm:$0xff]
  %v137 = vld [vmem:[%s1 + $0x3b8] sm:$0xff]
  %v138 = vld [vmem:[%s1 + $0x3c0] sm:$0xff]
  %v139 = vld [vmem:[%s1 + $0x3c8] sm:$0xff]
  %v140 = vld [vmem:[%s1 + $0x3d0] sm:$0xff]
  %v141 = vld [vmem:[%s1 + $0x3d8] sm:$0xff]
  %v142 = vld [vmem:[%s1 + $0x3e0] sm:$0xff]
  %v143 = vld [vmem:[%s1 + $0x3e8] sm:$0xff]
  %v144 = vld [vmem:[%s1 + $0x3f0] sm:$0xff]
  %v145 = vld [vmem:[%s1 + $0x3f8] sm:$0xff]
  %v146 = vld [vmem:[%s1 + $0x400] sm:$0xff]
  %v147 = vld [vmem:[%s1 + $0x408] sm:$0xff]
  %v148 = vld [vmem:[%s1 + $0x410] sm:$0xff]
  %v149 = vld [vmem:[%s1 + $0x418] sm:$0xff]
  %v150 = vld [vmem:[%s1 + $0x420] sm:$0xff]
  %v151 = vld [vmem:[%s1 + $0x428] sm:$0xff]
  %v152 = vld [vmem:[%s1 + $0x430] sm:$0xff]
  %v153 = vld [vmem:[%s1 + $0x438] sm:$0xff]
  %v154 = vld [vmem:[%s1 + $0x440] sm:$0xff]
  %v155 = vld [vmem:[%s1 + $0x448] sm:$0xff]
  %v156 = vld [vmem:[%s1 + $0x450] sm:$0xff]
  %v157 = vld [vmem:[%s1 + $0x458] sm:$0xff]
  %v158 = vld [vmem:[%s1 + $0x460] sm:$0xff]
  %v159 = vld [vmem:[%s1 + $0x468] sm:$0xff]
  %v160 = vld [vmem:[%s1 + $0x470] sm:$0xff]
  %v161 = vld [vmem:[%s1 + $0x478] sm:$0xff]
  %v162 = vld [vmem:[%s1 + $0x480] sm:$0xff]
  %v163 = vld [vmem:[%s1 + $0x488] sm:$0xff]
  %v164 = vld [vmem:[%s1 + $0x490] sm:$0xff]
  %v165 = vld [vmem:[%s1 + $0x498] sm:$0xff]
  %v166 = vld [vmem:[%s1 + $0x4a0] sm:$0xff]
  %v167 = vld [vmem:[%s1 + $0x4a8] sm:$0xff]
  %v168 = vld [vmem:[%s1 + $0x4b0] sm:$0xff]
  %v169 = vld [vmem:[%s1 + $0x4b8] sm:$0xff]
  %v170 = vld [vmem:[%s1 + $0x4c0] sm:$0xff]
  %v171 = vld [vmem:[%s1 + $0x4c8] sm:$0xff]
  %v172 = vld [vmem:[%s1 + $0x4d0] sm:$0xff]
  %v173 = vld [vmem:[%s1 + $0x4d8] sm:$0xff]
  %v174 = vld [vmem:[%s1 + $0x4e0] sm:$0xff]
  %v175 = vld [vmem:[%s1 + $0x4e8] sm:$0xff]
  %v176 = vld [vmem:[%s1 + $0x4f0] sm:$0xff]
  %v177 = vld [vmem:[%s1 + $0x4f8] sm:$0xff]
  %v178 = vld [vmem:[%s1 + $0x500] sm:$0xff]
  %v179 = vld [vmem:[%s1 + $0x508] sm:$0xff]
  %v180 = vld [vmem:[%s1 + $0x510] sm:$0xff]
  %v181 = vld [vmem:[%s1 + $0x518] sm:$0xff]
  %v182 = vld [vmem:[%s1 + $0x520] sm:$0xff]
  %v183 = vld [vmem:[%s1 + $0x528] sm:$0xff]
  %v184 = vld [vmem:[%s1 + $0x530] sm:$0xff]
  %v185 = vld [vmem:[%s1 + $0x538] sm:$0xff]
  %v186 = vld [vmem:[%s1 + $0x540] sm:$0xff]
  %v187 = vld [vmem:[%s1 + $0x548] sm:$0xff]
  %v188 = vld [vmem:[%s1 + $0x550] sm:$0xff]
  %v189 = vld [vmem:[%s1 + $0x558] sm:$0xff]
  %v190 = vld [vmem:[%s1 + $0x560] sm:$0xff]
  %v191 = vld [vmem:[%s1 + $0x568] sm:$0xff]
  %v192 = vld [vmem:[%s1 + $0x570] sm:$0xff]
  %v193 = vld [vmem:[%s1 + $0x578] sm:$0xff]
  %v194 = vld [vmem:[%s1 + $0x580] sm:$0xff]
  %v195 = vld [vmem:[%s1 + $0x588] sm:$0xff]
  %v196 = vld [vmem:[%s1 + $0x590] sm:$0xff]
  %v197 = vld [vmem:[%s1 + $0x598] sm:$0xff]
  %v198 = vld [vmem:[%s1 + $0x5a0] sm:$0xff]
  %v199 = vld [vmem:[%s1 + $0x5a8] sm:$0xff]
  %v200 = vld [vmem:[%s1 + $0x5b0] sm:$0xff]
  %v201 = vld [vmem:[%s1 + $0x5b8] sm:$0xff]
  %v202 = vld [vmem:[%s1 + $0x5c0] sm:$0xff]
  %v203 = vld [vmem:[%s1 + $0x5c8] sm:$0xff]
  %v204 = vld [vmem:[%s1 + $0x5d0] sm:$0xff]
  %v205 = vld [vmem:[%s1 + $0x5d8] sm:$0xff]
  %v206 = vld [vmem:[%s1 + $0x5e0] sm:$0xff]
  %v207 = vld [vmem:[%s1 + $0x5e8] sm:$0xff]
  %v208 = vld [vmem:[%s1 + $0x5f0] sm:$0xff]
  %v209 = vld [vmem:[%s1 + $0x5f8] sm:$0xff]
  %v210 = vld [vmem:[%s1 + $0x600] sm:$0xff]
  %v211 = vld [vmem:[%s1 + $0x608] sm:$0xff]
  %v212 = vld [vmem:[%s1 + $0x610] sm:$0xff]
  %v213 = vld [vmem:[%s1 + $0x618] sm:$0xff]
  %v214 = vld [vmem:[%s1 + $0x620] sm:$0xff]
  %v215 = vld [vmem:[%s1 + $0x628] sm:$0xff]
  %v216 = vld [vmem:[%s1 + $0x630] sm:$0xff]
  %v217 = vld [vmem:[%s1 + $0x638] sm:$0xff]
  %v218 = vld [vmem:[%s1 + $0x640] sm:$0xff]
  %v219 = vld [vmem:[%s1 + $0x648] sm:$0xff]
  %v220 = vld [vmem:[%s1 + $0x650] sm:$0xff]
  %v221 = vld [vmem:[%s1 + $0x658] sm:$0xff]
  %v222 = vld [vmem:[%s1 + $0x660] sm:$0xff]
  %v223 = vld [vmem:[%s1 + $0x668] sm:$0xff]
  %v224 = vld [vmem:[%s1 + $0x670] sm:$0xff]
  %v225 = vld [vmem:[%s1 + $0x678] sm:$0xff]
  %v226 = vld [vmem:[%s1 + $0x680] sm:$0xff]
  %v227 = vld [vmem:[%s1 + $0x688] sm:$0xff]
  %v228 = vld [vmem:[%s1 + $0x690] sm:$0xff]
  %v229 = vld [vmem:[%s1 + $0x698] sm:$0xff]
  %v230 = vld [vmem:[%s1 + $0x6a0] sm:$0xff]
  %v231 = vld [vmem:[%s1 + $0x6a8] sm:$0xff]
  %v232 = vld [vmem:[%s1 + $0x6b0] sm:$0xff]
  %v233 = vld [vmem:[%s1 + $0x6b8] sm:$0xff]
  %v234 = vld [vmem:[%s2] sm:$0x1]
  %v236 = vlaneseq
  %v237 = vshrl.u32 %v236, 7
  %v238 = vsub.s32 0, %v237
  %v239 = vrot.slane %v234, %v238
  %v245 = vcombine.high %v14, %v14
  %v247 = vunpack.c.l.s4 1983009808
  %v248 = vunpack.c.0.s8 %v247
  %v249 = vlaneseq
  %v250 = vshrl.u32 %v249, 7
  %v251 = vsub.s32 %v248, %v250
  %v252 = vrot.slane %v14, %v251
  %v254 = vunpack.c.l.s4 1983009808
  %v255 = vunpack.c.0.s8 %v254
  %v256 = vlaneseq
  %v257 = vshrl.u32 %v256, 7
  %v258 = vsub.s32 %v255, %v257
  %v259 = vrot.slane %v245, %v258
  %v260 = vcombine.high %v252, %v252
  %v261 = vcombine.high %v259, %v259
  %v262 = vcombine.high %v15, %v15
  %v264 = vunpack.c.l.s4 1983009808
  %v265 = vunpack.c.0.s8 %v264
  %v266 = vlaneseq
  %v267 = vshrl.u32 %v266, 7
  %v268 = vsub.s32 %v265, %v267
  %v269 = vrot.slane %v15, %v268
  %v271 = vunpack.c.l.s4 1983009808
  %v272 = vunpack.c.0.s8 %v271
  %v273 = vlaneseq
  %v274 = vshrl.u32 %v273, 7
  %v275 = vsub.s32 %v272, %v274
  %v276 = vrot.slane %v262, %v275
  %v277 = vcombine.high %v269, %v269
  %v278 = vcombine.high %v276, %v276
  %v279 = vcombine.high %v16, %v16
  %v281 = vunpack.c.l.s4 1983009808
  %v282 = vunpack.c.0.s8 %v281
  %v283 = vlaneseq
  %v284 = vshrl.u32 %v283, 7
  %v285 = vsub.s32 %v282, %v284
  %v286 = vrot.slane %v16, %v285
  %v288 = vunpack.c.l.s4 1983009808
  %v289 = vunpack.c.0.s8 %v288
  %v290 = vlaneseq
  %v291 = vshrl.u32 %v290, 7
  %v292 = vsub.s32 %v289, %v291
  %v293 = vrot.slane %v279, %v292
  %v294 = vcombine.high %v286, %v286
  %v295 = vcombine.high %v293, %v293
  %v297 = vunpack.c.l.s4 1983009808
  %v298 = vunpack.c.0.s8 %v297
  %v299 = vlaneseq
  %v300 = vshrl.u32 %v299, 7
  %v301 = vsub.s32 %v298, %v300
  %v302 = vrot.slane %v17, %v301
  %v303 = vcombine.high %v302, %v302
  %vm317 = vcmask 523264
  %v318 = vsel %vm317, %v303, 0
  %320 = vmatprep.subr.mxu0 0.0
  %321 = vmatpush1.msra.mxu0 %v18
  %322 = vmatprep.subr.mxu0 0.0
  %323 = vmatpush1.msra.mxu0 %v19
  %324 = vmatprep.subr.mxu0 0.0
  %325 = vmatpush1.msra.mxu0 %v20
  %326 = vmatprep.subr.mxu0 0.0
  %327 = vmatpush1.msra.mxu0 %v21
  %328 = vmatprep.subr.mxu0 0.0
  %329 = vmatpush1.msra.mxu0 %v22
  %330 = vmatprep.subr.mxu0 0.0
  %331 = vmatpush1.msra.mxu0 %v23
  %332 = vmatprep.subr.mxu0 0.0
  %333 = vmatpush1.msra.mxu0 %v24
  %334 = vmatprep.subr.mxu0 0.0
  %335 = vmatpush1.msra.mxu0 %v25
  %336 = vmatprep.subr.mxu0 0.0
  %337 = vmatpush1.msra.mxu0 %v26
  %338 = vmatprep.subr.mxu0 0.0
  %339 = vmatpush1.msra.mxu0 %v27
  %340 = vmatprep.subr.mxu0 0.0
  %341 = vmatpush1.msra.mxu0 %v28
  %342 = vmatprep.subr.mxu0 0.0
  %343 = vmatpush1.msra.mxu0 %v29
  %344 = vmatprep.subr.mxu0 0.0
  %345 = vmatpush1.msra.mxu0 %v30
  %346 = vmatprep.subr.mxu0 0.0
  %347 = vmatpush1.msra.mxu0 %v31
  %348 = vmatprep.subr.mxu0 0.0
  %349 = vmatpush1.msra.mxu0 %v32
  %350 = vmatprep.subr.mxu0 0.0
  %351 = vmatpush1.msra.mxu0 %v33
  %352 = vmatprep.subr.mxu0 0.0
  %353 = vmatpush1.msra.mxu0 %v34
  %354 = vmatprep.subr.mxu0 0.0
  %355 = vmatpush1.msra.mxu0 %v35
  %356 = vmatprep.subr.mxu0 0.0
  %357 = vmatpush1.msra.mxu0 %v36
  %358 = vmatprep.subr.mxu0 0.0
  %359 = vmatpush1.msra.mxu0 %v37
  %360 = vmatprep.subr.mxu0 0.0
  %361 = vmatpush1.msra.mxu0 %v38
  %362 = vmatprep.subr.mxu0 0.0
  %363 = vmatpush1.msra.mxu0 %v39
  %364 = vmatprep.subr.mxu0 0.0
  %365 = vmatpush1.msra.mxu0 %v40
  %366 = vmatprep.subr.mxu0 0.0
  %367 = vmatpush1.msra.mxu0 %v41
  %368 = vmatprep.subr.mxu0 0.0
  %369 = vmatpush1.msra.mxu0 %v42
  %370 = vmatprep.subr.mxu0 0.0
  %371 = vmatpush1.msra.mxu0 %v43
  %372 = vmatprep.subr.mxu0 0.0
  %373 = vmatpush1.msra.mxu0 %v44
  %374 = vmatprep.subr.mxu0 0.0
  %375 = vmatpush1.msra.mxu0 %v45
  %376 = vmatprep.subr.mxu0 0.0
  %377 = vmatpush1.msra.mxu0 %v46
  %378 = vmatprep.subr.mxu0 0.0
  %379 = vmatpush1.msra.mxu0 %v47
  %380 = vmatprep.subr.mxu0 0.0
  %381 = vmatpush1.msra.mxu0 %v48
  %382 = vmatprep.subr.mxu0 0.0
  %383 = vmatpush1.msra.mxu0 %v49
  %384 = vmatprep.mubr.f32.mxu0 %v260
  %385 = vmatmul.mubr.f32.gmra.mrb[0].mxu0 %v252
  %v386 = vpop.f32.mrb[0].mxu0
  %v387 = vadd.f32 %v239, %v386
  %v388 = vpop.f32.mrb[0].mxu0
  %389 = vdwg.mxu0
  %390 = vmatprep.subr.mxu0 0.0
  %391 = vmatpush1.msra.mxu0 %v50
  %392 = vmatprep.subr.mxu0 0.0
  %393 = vmatpush1.msra.mxu0 %v51
  %394 = vmatprep.subr.mxu0 0.0
  %395 = vmatpush1.msra.mxu0 %v52
  %396 = vmatprep.subr.mxu0 0.0
  %397 = vmatpush1.msra.mxu0 %v53
  %398 = vmatprep.subr.mxu0 0.0
  %399 = vmatpush1.msra.mxu0 %v54
  %400 = vmatprep.subr.mxu0 0.0
  %401 = vmatpush1.msra.mxu0 %v55
  %402 = vmatprep.subr.mxu0 0.0
  %403 = vmatpush1.msra.mxu0 %v56
  %404 = vmatprep.subr.mxu0 0.0
  %405 = vmatpush1.msra.mxu0 %v57
  %406 = vmatprep.subr.mxu0 0.0
  %407 = vmatpush1.msra.mxu0 %v58
  %408 = vmatprep.subr.mxu0 0.0
  %409 = vmatpush1.msra.mxu0 %v59
  %410 = vmatprep.subr.mxu0 0.0
  %411 = vmatpush1.msra.mxu0 %v60
  %412 = vmatprep.subr.mxu0 0.0
  %413 = vmatpush1.msra.mxu0 %v61
  %414 = vmatprep.subr.mxu0 0.0
  %415 = vmatpush1.msra.mxu0 %v62
  %416 = vmatprep.subr.mxu0 0.0
  %417 = vmatpush1.msra.mxu0 %v63
  %418 = vmatprep.subr.mxu0 0.0
  %419 = vmatpush1.msra.mxu0 %v64
  %420 = vmatprep.subr.mxu0 0.0
  %421 = vmatpush1.msra.mxu0 %v65
  %422 = vmatprep.subr.mxu0 0.0
  %423 = vmatpush1.msra.mxu0 %v66
  %424 = vmatprep.subr.mxu0 0.0
  %425 = vmatpush1.msra.mxu0 %v67
  %426 = vmatprep.subr.mxu0 0.0
  %427 = vmatpush1.msra.mxu0 %v68
  %428 = vmatprep.subr.mxu0 0.0
  %429 = vmatpush1.msra.mxu0 %v69
  %430 = vmatprep.subr.mxu0 0.0
  %431 = vmatpush1.msra.mxu0 %v70
  %432 = vmatprep.subr.mxu0 0.0
  %433 = vmatpush1.msra.mxu0 %v71
  %434 = vmatprep.subr.mxu0 0.0
  %435 = vmatpush1.msra.mxu0 %v72
  %436 = vmatprep.subr.mxu0 0.0
  %437 = vmatpush1.msra.mxu0 %v73
  %438 = vmatprep.subr.mxu0 0.0
  %439 = vmatpush1.msra.mxu0 %v74
  %440 = vmatprep.subr.mxu0 0.0
  %441 = vmatpush1.msra.mxu0 %v75
  %442 = vmatprep.subr.mxu0 0.0
  %443 = vmatpush1.msra.mxu0 %v76
  %444 = vmatprep.subr.mxu0 0.0
  %445 = vmatpush1.msra.mxu0 %v77
  %446 = vmatprep.subr.mxu0 0.0
  %447 = vmatpush1.msra.mxu0 %v78
  %448 = vmatprep.subr.mxu0 0.0
  %449 = vmatpush1.msra.mxu0 %v79
  %450 = vmatprep.subr.mxu0 0.0
  %451 = vmatpush1.msra.mxu0 %v80
  %452 = vmatprep.subr.mxu0 0.0
  %453 = vmatpush1.msra.mxu0 %v81
  %454 = vmatprep.mubr.f32.mxu0 %v261
  %455 = vmatmul.mubr.f32.gmra.mrb[0].mxu0 %v259
  %v456 = vpop.f32.mrb[0].mxu0
  %v457 = vadd.f32 %v387, %v456
  %v458 = vpop.f32.mrb[0].mxu0
  %459 = vdwg.mxu0
  %460 = vmatprep.subr.mxu0 0.0
  %461 = vmatpush1.msra.mxu0 %v82
  %462 = vmatprep.subr.mxu0 0.0
  %463 = vmatpush1.msra.mxu0 %v83
  %464 = vmatprep.subr.mxu0 0.0
  %465 = vmatpush1.msra.mxu0 %v84
  %466 = vmatprep.subr.mxu0 0.0
  %467 = vmatpush1.msra.mxu0 %v85
  %468 = vmatprep.subr.mxu0 0.0
  %469 = vmatpush1.msra.mxu0 %v86
  %470 = vmatprep.subr.mxu0 0.0
  %471 = vmatpush1.msra.mxu0 %v87
  %472 = vmatprep.subr.mxu0 0.0
  %473 = vmatpush1.msra.mxu0 %v88
  %474 = vmatprep.subr.mxu0 0.0
  %475 = vmatpush1.msra.mxu0 %v89
  %476 = vmatprep.subr.mxu0 0.0
  %477 = vmatpush1.msra.mxu0 %v90
  %478 = vmatprep.subr.mxu0 0.0
  %479 = vmatpush1.msra.mxu0 %v91
  %480 = vmatprep.subr.mxu0 0.0
  %481 = vmatpush1.msra.mxu0 %v92
  %482 = vmatprep.subr.mxu0 0.0
  %483 = vmatpush1.msra.mxu0 %v93
  %484 = vmatprep.subr.mxu0 0.0
  %485 = vmatpush1.msra.mxu0 %v94
  %486 = vmatprep.subr.mxu0 0.0
  %487 = vmatpush1.msra.mxu0 %v95
  %488 = vmatprep.subr.mxu0 0.0
  %489 = vmatpush1.msra.mxu0 %v96
  %490 = vmatprep.subr.mxu0 0.0
  %491 = vmatpush1.msra.mxu0 %v97
  %492 = vmatprep.subr.mxu0 0.0
  %493 = vmatpush1.msra.mxu0 %v98
  %494 = vmatprep.subr.mxu0 0.0
  %495 = vmatpush1.msra.mxu0 %v99
  %496 = vmatprep.subr.mxu0 0.0
  %497 = vmatpush1.msra.mxu0 %v100
  %498 = vmatprep.subr.mxu0 0.0
  %499 = vmatpush1.msra.mxu0 %v101
  %500 = vmatprep.subr.mxu0 0.0
  %501 = vmatpush1.msra.mxu0 %v102
  %502 = vmatprep.subr.mxu0 0.0
  %503 = vmatpush1.msra.mxu0 %v103
  %504 = vmatprep.subr.mxu0 0.0
  %505 = vmatpush1.msra.mxu0 %v104
  %506 = vmatprep.subr.mxu0 0.0
  %507 = vmatpush1.msra.mxu0 %v105
  %508 = vmatprep.subr.mxu0 0.0
  %509 = vmatpush1.msra.mxu0 %v106
  %510 = vmatprep.subr.mxu0 0.0
  %511 = vmatpush1.msra.mxu0 %v107
  %512 = vmatprep.subr.mxu0 0.0
  %513 = vmatpush1.msra.mxu0 %v108
  %514 = vmatprep.subr.mxu0 0.0
  %515 = vmatpush1.msra.mxu0 %v109
  %516 = vmatprep.subr.mxu0 0.0
  %517 = vmatpush1.msra.mxu0 %v110
  %518 = vmatprep.subr.mxu0 0.0
  %519 = vmatpush1.msra.mxu0 %v111
  %520 = vmatprep.subr.mxu0 0.0
  %521 = vmatpush1.msra.mxu0 %v112
  %522 = vmatprep.subr.mxu0 0.0
  %523 = vmatpush1.msra.mxu0 %v113
  %524 = vmatprep.mubr.f32.mxu0 %v277
  %525 = vmatmul.mubr.f32.gmra.mrb[0].mxu0 %v269
  %v526 = vpop.f32.mrb[0].mxu0
  %v527 = vadd.f32 %v457, %v526
  %v528 = vpop.f32.mrb[0].mxu0
  %529 = vdwg.mxu0
  %530 = vmatprep.subr.mxu0 0.0
  %531 = vmatpush1.msra.mxu0 %v114
  %532 = vmatprep.subr.mxu0 0.0
  %533 = vmatpush1.msra.mxu0 %v115
  %534 = vmatprep.subr.mxu0 0.0
  %535 = vmatpush1.msra.mxu0 %v116
  %536 = vmatprep.subr.mxu0 0.0
  %537 = vmatpush1.msra.mxu0 %v117
  %538 = vmatprep.subr.mxu0 0.0
  %539 = vmatpush1.msra.mxu0 %v118
  %540 = vmatprep.subr.mxu0 0.0
  %541 = vmatpush1.msra.mxu0 %v119
  %542 = vmatprep.subr.mxu0 0.0
  %543 = vmatpush1.msra.mxu0 %v120
  %544 = vmatprep.subr.mxu0 0.0
  %545 = vmatpush1.msra.mxu0 %v121
  %546 = vmatprep.subr.mxu0 0.0
  %547 = vmatpush1.msra.mxu0 %v122
  %548 = vmatprep.subr.mxu0 0.0
  %549 = vmatpush1.msra.mxu0 %v123
  %550 = vmatprep.subr.mxu0 0.0
  %551 = vmatpush1.msra.mxu0 %v124
  %552 = vmatprep.subr.mxu0 0.0
  %553 = vmatpush1.msra.mxu0 %v125
  %554 = vmatprep.subr.mxu0 0.0
  %555 = vmatpush1.msra.mxu0 %v126
  %556 = vmatprep.subr.mxu0 0.0
  %557 = vmatpush1.msra.mxu0 %v127
  %558 = vmatprep.subr.mxu0 0.0
  %559 = vmatpush1.msra.mxu0 %v128
  %560 = vmatprep.subr.mxu0 0.0
  %561 = vmatpush1.msra.mxu0 %v129
  %562 = vmatprep.subr.mxu0 0.0
  %563 = vmatpush1.msra.mxu0 %v130
  %564 = vmatprep.subr.mxu0 0.0
  %565 = vmatpush1.msra.mxu0 %v131
  %566 = vmatprep.subr.mxu0 0.0
  %567 = vmatpush1.msra.mxu0 %v132
  %568 = vmatprep.subr.mxu0 0.0
  %569 = vmatpush1.msra.mxu0 %v133
  %570 = vmatprep.subr.mxu0 0.0
  %571 = vmatpush1.msra.mxu0 %v134
  %572 = vmatprep.subr.mxu0 0.0
  %573 = vmatpush1.msra.mxu0 %v135
  %574 = vmatprep.subr.mxu0 0.0
  %575 = vmatpush1.msra.mxu0 %v136
  %576 = vmatprep.subr.mxu0 0.0
  %577 = vmatpush1.msra.mxu0 %v137
  %578 = vmatprep.subr.mxu0 0.0
  %579 = vmatpush1.msra.mxu0 %v138
  %580 = vmatprep.subr.mxu0 0.0
  %581 = vmatpush1.msra.mxu0 %v139
  %582 = vmatprep.subr.mxu0 0.0
  %583 = vmatpush1.msra.mxu0 %v140
  %584 = vmatprep.subr.mxu0 0.0
  %585 = vmatpush1.msra.mxu0 %v141
  %586 = vmatprep.subr.mxu0 0.0
  %587 = vmatpush1.msra.mxu0 %v142
  %588 = vmatprep.subr.mxu0 0.0
  %589 = vmatpush1.msra.mxu0 %v143
  %590 = vmatprep.subr.mxu0 0.0
  %591 = vmatpush1.msra.mxu0 %v144
  %592 = vmatprep.subr.mxu0 0.0
  %593 = vmatpush1.msra.mxu0 %v145
  %594 = vmatprep.mubr.f32.mxu0 %v278
  %595 = vmatmul.mubr.f32.gmra.mrb[0].mxu0 %v276
  %v596 = vpop.f32.mrb[0].mxu0
  %v597 = vadd.f32 %v527, %v596
  %v598 = vpop.f32.mrb[0].mxu0
  %599 = vdwg.mxu0
  %600 = vmatprep.subr.mxu0 0.0
  %601 = vmatpush1.msra.mxu0 %v146
  %602 = vmatprep.subr.mxu0 0.0
  %603 = vmatpush1.msra.mxu0 %v147
  %604 = vmatprep.subr.mxu0 0.0
  %605 = vmatpush1.msra.mxu0 %v148
  %606 = vmatprep.subr.mxu0 0.0
  %607 = vmatpush1.msra.mxu0 %v149
  %608 = vmatprep.subr.mxu0 0.0
  %609 = vmatpush1.msra.mxu0 %v150
  %610 = vmatprep.subr.mxu0 0.0
  %611 = vmatpush1.msra.mxu0 %v151
  %612 = vmatprep.subr.mxu0 0.0
  %613 = vmatpush1.msra.mxu0 %v152
  %614 = vmatprep.subr.mxu0 0.0
  %615 = vmatpush1.msra.mxu0 %v153
  %616 = vmatprep.subr.mxu0 0.0
  %617 = vmatpush1.msra.mxu0 %v154
  %618 = vmatprep.subr.mxu0 0.0
  %619 = vmatpush1.msra.mxu0 %v155
  %620 = vmatprep.subr.mxu0 0.0
  %621 = vmatpush1.msra.mxu0 %v156
  %622 = vmatprep.subr.mxu0 0.0
  %623 = vmatpush1.msra.mxu0 %v157
  %624 = vmatprep.subr.mxu0 0.0
  %625 = vmatpush1.msra.mxu0 %v158
  %626 = vmatprep.subr.mxu0 0.0
  %627 = vmatpush1.msra.mxu0 %v159
  %628 = vmatprep.subr.mxu0 0.0
  %629 = vmatpush1.msra.mxu0 %v160
  %630 = vmatprep.subr.mxu0 0.0
  %631 = vmatpush1.msra.mxu0 %v161
  %632 = vmatprep.subr.mxu0 0.0
  %633 = vmatpush1.msra.mxu0 %v162
  %634 = vmatprep.subr.mxu0 0.0
  %635 = vmatpush1.msra.mxu0 %v163
  %636 = vmatprep.subr.mxu0 0.0
  %637 = vmatpush1.msra.mxu0 %v164
  %638 = vmatprep.subr.mxu0 0.0
  %639 = vmatpush1.msra.mxu0 %v165
  %640 = vmatprep.subr.mxu0 0.0
  %641 = vmatpush1.msra.mxu0 %v166
  %642 = vmatprep.subr.mxu0 0.0
  %643 = vmatpush1.msra.mxu0 %v167
  %644 = vmatprep.subr.mxu0 0.0
  %645 = vmatpush1.msra.mxu0 %v168
  %646 = vmatprep.subr.mxu0 0.0
  %647 = vmatpush1.msra.mxu0 %v169
  %648 = vmatprep.subr.mxu0 0.0
  %649 = vmatpush1.msra.mxu0 %v170
  %650 = vmatprep.subr.mxu0 0.0
  %651 = vmatpush1.msra.mxu0 %v171
  %652 = vmatprep.subr.mxu0 0.0
  %653 = vmatpush1.msra.mxu0 %v172
  %654 = vmatprep.subr.mxu0 0.0
  %655 = vmatpush1.msra.mxu0 %v173
  %656 = vmatprep.subr.mxu0 0.0
  %657 = vmatpush1.msra.mxu0 %v174
  %658 = vmatprep.subr.mxu0 0.0
  %659 = vmatpush1.msra.mxu0 %v175
  %660 = vmatprep.subr.mxu0 0.0
  %661 = vmatpush1.msra.mxu0 %v176
  %662 = vmatprep.subr.mxu0 0.0
  %663 = vmatpush1.msra.mxu0 %v177
  %664 = vmatprep.mubr.f32.mxu0 %v294
  %665 = vmatmul.mubr.f32.gmra.mrb[0].mxu0 %v286
  %v666 = vpop.f32.mrb[0].mxu0
  %v667 = vadd.f32 %v597, %v666
  %v668 = vpop.f32.mrb[0].mxu0
  %669 = vdwg.mxu0
  %670 = vmatprep.subr.mxu0 0.0
  %671 = vmatpush1.msra.mxu0 %v178
  %672 = vmatprep.subr.mxu0 0.0
  %673 = vmatpush1.msra.mxu0 %v179
  %674 = vmatprep.subr.mxu0 0.0
  %675 = vmatpush1.msra.mxu0 %v180
  %676 = vmatprep.subr.mxu0 0.0
  %677 = vmatpush1.msra.mxu0 %v181
  %678 = vmatprep.subr.mxu0 0.0
  %679 = vmatpush1.msra.mxu0 %v182
  %680 = vmatprep.subr.mxu0 0.0
  %681 = vmatpush1.msra.mxu0 %v183
  %682 = vmatprep.subr.mxu0 0.0
  %683 = vmatpush1.msra.mxu0 %v184
  %684 = vmatprep.subr.mxu0 0.0
  %685 = vmatpush1.msra.mxu0 %v185
  %686 = vmatprep.subr.mxu0 0.0
  %687 = vmatpush1.msra.mxu0 %v186
  %688 = vmatprep.subr.mxu0 0.0
  %689 = vmatpush1.msra.mxu0 %v187
  %690 = vmatprep.subr.mxu0 0.0
  %691 = vmatpush1.msra.mxu0 %v188
  %692 = vmatprep.subr.mxu0 0.0
  %693 = vmatpush1.msra.mxu0 %v189
  %694 = vmatprep.subr.mxu0 0.0
  %695 = vmatpush1.msra.mxu0 %v190
  %696 = vmatprep.subr.mxu0 0.0
  %697 = vmatpush1.msra.mxu0 %v191
  %698 = vmatprep.subr.mxu0 0.0
  %699 = vmatpush1.msra.mxu0 %v192
  %700 = vmatprep.subr.mxu0 0.0
  %701 = vmatpush1.msra.mxu0 %v193
  %702 = vmatprep.subr.mxu0 0.0
  %703 = vmatpush1.msra.mxu0 %v194
  %704 = vmatprep.subr.mxu0 0.0
  %705 = vmatpush1.msra.mxu0 %v195
  %706 = vmatprep.subr.mxu0 0.0
  %707 = vmatpush1.msra.mxu0 %v196
  %708 = vmatprep.subr.mxu0 0.0
  %709 = vmatpush1.msra.mxu0 %v197
  %710 = vmatprep.subr.mxu0 0.0
  %711 = vmatpush1.msra.mxu0 %v198
  %712 = vmatprep.subr.mxu0 0.0
  %713 = vmatpush1.msra.mxu0 %v199
  %714 = vmatprep.subr.mxu0 0.0
  %715 = vmatpush1.msra.mxu0 %v200
  %716 = vmatprep.subr.mxu0 0.0
  %717 = vmatpush1.msra.mxu0 %v201
  %718 = vmatprep.subr.mxu0 0.0
  %719 = vmatpush1.msra.mxu0 %v202
  %720 = vmatprep.subr.mxu0 0.0
  %721 = vmatpush1.msra.mxu0 %v203
  %722 = vmatprep.subr.mxu0 0.0
  %723 = vmatpush1.msra.mxu0 %v204
  %724 = vmatprep.subr.mxu0 0.0
  %725 = vmatpush1.msra.mxu0 %v205
  %726 = vmatprep.subr.mxu0 0.0
  %727 = vmatpush1.msra.mxu0 %v206
  %728 = vmatprep.subr.mxu0 0.0
  %729 = vmatpush1.msra.mxu0 %v207
  %730 = vmatprep.subr.mxu0 0.0
  %731 = vmatpush1.msra.mxu0 %v208
  %732 = vmatprep.subr.mxu0 0.0
  %733 = vmatpush1.msra.mxu0 %v209
  %734 = vmatprep.mubr.f32.mxu0 %v295
  %735 = vmatmul.mubr.f32.gmra.mrb[0].mxu0 %v293
  %v736 = vpop.f32.mrb[0].mxu0
  %v737 = vadd.f32 %v667, %v736
  %v738 = vpop.f32.mrb[0].mxu0
  %739 = vdwg.mxu0
  %740 = vmatprep.subr.mxu0 0.0
  %741 = vmatpush1.msra.mxu0 %v210
  %742 = vmatprep.subr.mxu0 0.0
  %743 = vmatpush1.msra.mxu0 %v211
  %744 = vmatprep.subr.mxu0 0.0
  %745 = vmatpush1.msra.mxu0 %v212
  %746 = vmatprep.subr.mxu0 0.0
  %747 = vmatpush1.msra.mxu0 %v213
  %748 = vmatprep.subr.mxu0 0.0
  %749 = vmatpush1.msra.mxu0 %v214
  %750 = vmatprep.subr.mxu0 0.0
  %751 = vmatpush1.msra.mxu0 %v215
  %752 = vmatprep.subr.mxu0 0.0
  %753 = vmatpush1.msra.mxu0 %v216
  %754 = vmatprep.subr.mxu0 0.0
  %755 = vmatpush1.msra.mxu0 %v217
  %756 = vmatprep.subr.mxu0 0.0
  %757 = vmatpush1.msra.mxu0 %v218
  %758 = vmatprep.subr.mxu0 0.0
  %759 = vmatpush1.msra.mxu0 %v219
  %760 = vmatprep.subr.mxu0 0.0
  %761 = vmatpush1.msra.mxu0 %v220
  %762 = vmatprep.subr.mxu0 0.0
  %763 = vmatpush1.msra.mxu0 %v221
  %764 = vmatprep.subr.mxu0 0.0
  %765 = vmatpush1.msra.mxu0 %v222
  %766 = vmatprep.subr.mxu0 0.0
  %767 = vmatpush1.msra.mxu0 %v223
  %768 = vmatprep.subr.mxu0 0.0
  %769 = vmatpush1.msra.mxu0 %v224
  %770 = vmatprep.subr.mxu0 0.0
  %771 = vmatpush1.msra.mxu0 %v225
  %772 = vmatprep.subr.mxu0 0.0
  %773 = vmatpush1.msra.mxu0 %v226
  %774 = vmatprep.subr.mxu0 0.0
  %775 = vmatpush1.msra.mxu0 %v227
  %776 = vmatprep.subr.mxu0 0.0
  %777 = vmatpush1.msra.mxu0 %v228
  %778 = vmatprep.subr.mxu0 0.0
  %779 = vmatpush1.msra.mxu0 %v229
  %780 = vmatprep.subr.mxu0 0.0
  %781 = vmatpush1.msra.mxu0 %v230
  %782 = vmatprep.subr.mxu0 0.0
  %783 = vmatpush1.msra.mxu0 %v231
  %784 = vmatprep.subr.mxu0 0.0
  %785 = vmatpush1.msra.mxu0 %v232
  %786 = vmatprep.subr.mxu0 0.0
  %787 = vmatpush1.msra.mxu0 %v233
  %788 = vmatprep.subr.mxu0 0.0
  %789 = vmatpush1.msra.mxu0 0.0
  %790 = vmatprep.subr.mxu0 0.0
  %791 = vmatpush1.msra.mxu0 0.0
  %792 = vmatprep.subr.mxu0 0.0
  %793 = vmatpush1.msra.mxu0 0.0
  %794 = vmatprep.subr.mxu0 0.0
  %795 = vmatpush1.msra.mxu0 0.0
  %796 = vmatprep.subr.mxu0 0.0
  %797 = vmatpush1.msra.mxu0 0.0
  %798 = vmatprep.subr.mxu0 0.0
  %799 = vmatpush1.msra.mxu0 0.0
  %800 = vmatprep.subr.mxu0 0.0
  %801 = vmatpush1.msra.mxu0 0.0
  %802 = vmatprep.subr.mxu0 0.0
  %803 = vmatpush1.msra.mxu0 0.0
  %804 = vmatprep.mubr.f32.mxu0 %v318
  %805 = vmatmul.mubr.f32.gmra.mrb[0].mxu0 %v302
  %v806 = vpop.f32.mrb[0].mxu0
  %v807 = vadd.f32 %v737, %v806
  %v808 = vpop.f32.mrb[0].mxu0
  %809 = vdwg.mxu0
  %vm810 = vcmask 254976
  %811 = vst.msk [vmem:[%s3] sm:$0x3] %vm810, %v807
  // Predicated region
  $region14: #{autoencoder_forward.8} parent=0 // pred_check
    _
  $region15: #{autoencoder_forward.8} parent=0 // pred_check_branch
    %813 = sbr.rel (0) target = $region17
  $region16: #{autoencoder_forward.8} parent=0 // pred_region
    _
  $region17: #{autoencoder_forward.8} parent=0 // pred_fallthru
    _
  // Predicated region
  $region18: #{autoencoder_forward.8} parent=0 // pred_check
    _
  $region19: #{autoencoder_forward.8} parent=0 // pred_check_branch
    %815 = sbr.rel (0) target = $region21
  $region20: #{autoencoder_forward.8} parent=0 // pred_region
    _
  $region21: #{autoencoder_forward.8} parent=0 // pred_fallthru
    _

// kernel: autoencoder_forward.9
$region0: #{autoencoder_forward.9}
  #allocation0 [shape = 'u32[]', space=smem, size = 0x4, offset = 0x4, fixed_abs, tag = 'smem constant byte address 0x4 - core index']
  #allocation1 [shape = 'u32[144,128]{1,0:T(1,128)}', space=vmem, size = 0x12000, scoped, tag = 'internal scratch']
  %s0 = inlined_call_operand.vmem [shape: f32[2,32], index: 0, kind: input, shape index: {}]
  %s1 = inlined_call_operand.vmem [shape: f32[32,1728], index: 1, kind: input, shape index: {}]
  %s2 = inlined_call_operand.vmem [shape: f32[1,1728], index: 2, kind: input, shape index: {}]
  %s3 = inlined_call_operand.vmem [shape: f32[2,1728], index: 3, kind: output, shape index: {}]
  %s4 = sld [smem:[#allocation0]]
  $region22: #{autoencoder_forward.9} parent=0
    _
  %s6 = ssub.s32 1, %s4
  %s7 = scalar_select 0, %s6, %s4
  // Predicated region
  $region2: #{autoencoder_forward.9} parent=0 // pred_check
    _
  $region3: #{autoencoder_forward.9} parent=0 // pred_check_branch
    %9 = sbr.rel (0) target = $region5
  $region4: #{autoencoder_forward.9} parent=0 // pred_region
    _
  $region5: #{autoencoder_forward.9} parent=0 // pred_fallthru
    _
  // Predicated region
  $region6: #{autoencoder_forward.9} parent=0 // pred_check
    _
  $region7: #{autoencoder_forward.9} parent=0 // pred_check_branch
    %11 = sbr.rel (0) target = $region9
  $region8: #{autoencoder_forward.9} parent=0 // pred_region
    _
  $region9: #{autoencoder_forward.9} parent=0 // pred_fallthru
    _
  // Predicated region
  $region10: #{autoencoder_forward.9} parent=0 // pred_check
    _
  $region11: #{autoencoder_forward.9} parent=0 // pred_check_branch
    %13 = sbr.rel (0) target = $region13
  $region12: #{autoencoder_forward.9} parent=0 // pred_region
    _
  $region13: #{autoencoder_forward.9} parent=0 // pred_fallthru
    _
  %v14 = vld [vmem:[%s0] sm:$0x3]
  %v15 = vld [vmem:[%s1] sm:$0xff]
  %v16 = vld [vmem:[%s1 + $0x8] sm:$0xff]
  %v17 = vld [vmem:[%s1 + $0x10] sm:$0xff]
  %v18 = vld [vmem:[%s1 + $0x18] sm:$0xff]
  %v19 = vld [vmem:[%s1 + $0x20] sm:$0xff]
  %v20 = vld [vmem:[%s1 + $0x28] sm:$0xff]
  %v21 = vld [vmem:[%s1 + $0x30] sm:$0xff]
  %v22 = vld [vmem:[%s1 + $0x38] sm:$0xff]
  %v23 = vld [vmem:[%s1 + $0x40] sm:$0xff]
  %v24 = vld [vmem:[%s1 + $0x48] sm:$0xff]
  %v25 = vld [vmem:[%s1 + $0x50] sm:$0xff]
  %v26 = vld [vmem:[%s1 + $0x58] sm:$0xff]
  %v27 = vld [vmem:[%s1 + $0x60] sm:$0xff]
  %v28 = vld [vmem:[%s1 + $0x68] sm:$0xff]
  %v29 = vld [vmem:[%s1 + $0x70] sm:$0xff]
  %v30 = vld [vmem:[%s1 + $0x78] sm:$0xff]
  %v31 = vld [vmem:[%s1 + $0x80] sm:$0xff]
  %v32 = vld [vmem:[%s1 + $0x88] sm:$0xff]
  %v33 = vld [vmem:[%s1 + $0x90] sm:$0xff]
  %v34 = vld [vmem:[%s1 + $0x98] sm:$0xff]
  %v35 = vld [vmem:[%s1 + $0xa0] sm:$0xff]
  %v36 = vld [vmem:[%s1 + $0xa8] sm:$0xff]
  %v37 = vld [vmem:[%s1 + $0xb0] sm:$0xff]
  %v38 = vld [vmem:[%s1 + $0xb8] sm:$0xff]
  %v39 = vld [vmem:[%s1 + $0xc0] sm:$0xff]
  %v40 = vld [vmem:[%s1 + $0xc8] sm:$0xff]
  %v41 = vld [vmem:[%s1 + $0xd0] sm:$0xff]
  %v42 = vld [vmem:[%s1 + $0xd8] sm:$0xff]
  %v43 = vld [vmem:[%s1 + $0xe0] sm:$0xff]
  %v44 = vld [vmem:[%s1 + $0xe8] sm:$0xff]
  %v45 = vld [vmem:[%s1 + $0xf0] sm:$0xff]
  %v46 = vld [vmem:[%s1 + $0xf8] sm:$0xff]
  %v47 = vld [vmem:[%s1 + $0x100] sm:$0xff]
  %v48 = vld [vmem:[%s1 + $0x108] sm:$0xff]
  %v49 = vld [vmem:[%s1 + $0x110] sm:$0xff]
  %v50 = vld [vmem:[%s1 + $0x118] sm:$0xff]
  %v51 = vld [vmem:[%s1 + $0x120] sm:$0xff]
  %v52 = vld [vmem:[%s1 + $0x128] sm:$0xff]
  %v53 = vld [vmem:[%s1 + $0x130] sm:$0xff]
  %v54 = vld [vmem:[%s1 + $0x138] sm:$0xff]
  %v55 = vld [vmem:[%s1 + $0x140] sm:$0xff]
  %v56 = vld [vmem:[%s1 + $0x148] sm:$0xff]
  %v57 = vld [vmem:[%s1 + $0x150] sm:$0xff]
  %v58 = vld [vmem:[%s1 + $0x158] sm:$0xff]
  %v59 = vld [vmem:[%s1 + $0x160] sm:$0xff]
  %v60 = vld [vmem:[%s1 + $0x168] sm:$0xff]
  %v61 = vld [vmem:[%s1 + $0x170] sm:$0xff]
  %v62 = vld [vmem:[%s1 + $0x178] sm:$0xff]
  %v63 = vld [vmem:[%s1 + $0x180] sm:$0xff]
  %v64 = vld [vmem:[%s1 + $0x188] sm:$0xff]
  %v65 = vld [vmem:[%s1 + $0x190] sm:$0xff]
  %v66 = vld [vmem:[%s1 + $0x198] sm:$0xff]
  %v67 = vld [vmem:[%s1 + $0x1a0] sm:$0xff]
  %v68 = vld [vmem:[%s1 + $0x1a8] sm:$0xff]
  %v69 = vld [vmem:[%s1 + $0x1b0] sm:$0xff]
  %v70 = vld [vmem:[%s1 + $0x1b8] sm:$0xff]
  %v71 = vld [vmem:[%s2] sm:$0xff]
  %v72 = vld [vmem:[%s2 + $0x8] sm:$0x3f]
  %v75 = vlaneseq
  %v76 = vshrl.u32 %v75, 7
  %v77 = vsub.s32 0, %v76
  %v78 = vrot.slane %v71, %v77
  %v79 = vlaneseq
  %v80 = vshrl.u32 %v79, 7
  %v81 = vsub.s32 1, %v80
  %v82 = vrot.slane %v71, %v81
  %v83 = vlaneseq
  %v84 = vshrl.u32 %v83, 7
  %v85 = vsub.s32 2, %v84
  %v86 = vrot.slane %v71, %v85
  %v87 = vlaneseq
  %v88 = vshrl.u32 %v87, 7
  %v89 = vsub.s32 3, %v88
  %v90 = vrot.slane %v71, %v89
  %v91 = vlaneseq
  %v92 = vshrl.u32 %v91, 7
  %v93 = vsub.s32 4, %v92
  %v94 = vrot.slane %v71, %v93
  %v95 = vlaneseq
  %v96 = vshrl.u32 %v95, 7
  %v97 = vsub.s32 5, %v96
  %v98 = vrot.slane %v71, %v97
  %v99 = vlaneseq
  %v100 = vshrl.u32 %v99, 7
  %v101 = vsub.s32 6, %v100
  %v102 = vrot.slane %v71, %v101
  %v103 = vlaneseq
  %v104 = vshrl.u32 %v103, 7
  %v105 = vsub.s32 7, %v104
  %v106 = vrot.slane %v71, %v105
  %v107 = vlaneseq
  %v108 = vshrl.u32 %v107, 7
  %v109 = vsub.s32 0, %v108
  %v110 = vrot.slane %v72, %v109
  %v111 = vlaneseq
  %v112 = vshrl.u32 %v111, 7
  %v113 = vsub.s32 1, %v112
  %v114 = vrot.slane %v72, %v113
  %v115 = vlaneseq
  %v116 = vshrl.u32 %v115, 7
  %v117 = vsub.s32 2, %v116
  %v118 = vrot.slane %v72, %v117
  %v119 = vlaneseq
  %v120 = vshrl.u32 %v119, 7
  %v121 = vsub.s32 3, %v120
  %v122 = vrot.slane %v72, %v121
  %v123 = vlaneseq
  %v124 = vshrl.u32 %v123, 7
  %v125 = vsub.s32 4, %v124
  %v126 = vrot.slane %v72, %v125
  %v127 = vlaneseq
  %v128 = vshrl.u32 %v127, 7
  %v129 = vsub.s32 5, %v128
  %v130 = vrot.slane %v72, %v129
  %vm145 = vcmask 261120
  %v147 = vsel %vm145, %v14, 0
  %149 = vmatprep.subr.mxu0 %v16
  %150 = vmatpush1.msra.mxu0 %v15
  %151 = vmatprep.subr.mxu0 %v30
  %152 = vmatpush1.msra.mxu0 %v29
  %153 = vmatprep.subr.mxu0 %v44
  %154 = vmatpush1.msra.mxu0 %v43
  %155 = vmatprep.subr.mxu0 %v58
  %156 = vmatpush1.msra.mxu0 %v57
  %157 = vmatprep.subr.mxu0 0.0
  %158 = vmatpush1.msra.mxu0 0.0
  %159 = vmatprep.subr.mxu0 0.0
  %160 = vmatpush1.msra.mxu0 0.0
  %161 = vmatprep.subr.mxu0 0.0
  %162 = vmatpush1.msra.mxu0 0.0
  %163 = vmatprep.subr.mxu0 0.0
  %164 = vmatpush1.msra.mxu0 0.0
  %165 = vmatprep.subr.mxu0 0.0
  %166 = vmatpush1.msra.mxu0 0.0
  %167 = vmatprep.subr.mxu0 0.0
  %168 = vmatpush1.msra.mxu0 0.0
  %169 = vmatprep.subr.mxu0 0.0
  %170 = vmatpush1.msra.mxu0 0.0
  %171 = vmatprep.subr.mxu0 0.0
  %172 = vmatpush1.msra.mxu0 0.0
  %173 = vmatprep.subr.mxu0 0.0
  %174 = vmatpush1.msra.mxu0 0.0
  %175 = vmatprep.subr.mxu0 0.0
  %176 = vmatpush1.msra.mxu0 0.0
  %177 = vmatprep.subr.mxu0 0.0
  %178 = vmatpush1.msra.mxu0 0.0
  %179 = vmatprep.subr.mxu0 0.0
  %180 = vmatpush1.msra.mxu0 0.0
  %181 = vmatprep.subr.mxu0 0.0
  %182 = vmatpush1.msra.mxu0 0.0
  %183 = vmatprep.subr.mxu0 0.0
  %184 = vmatpush1.msra.mxu0 0.0
  %185 = vmatprep.subr.mxu0 0.0
  %186 = vmatpush1.msra.mxu0 0.0
  %187 = vmatprep.subr.mxu0 0.0
  %188 = vmatpush1.msra.mxu0 0.0
  %189 = vmatprep.subr.mxu0 0.0
  %190 = vmatpush1.msra.mxu0 0.0
  %191 = vmatprep.subr.mxu0 0.0
  %192 = vmatpush1.msra.mxu0 0.0
  %193 = vmatprep.subr.mxu0 0.0
  %194 = vmatpush1.msra.mxu0 0.0
  %195 = vmatprep.subr.mxu0 0.0
  %196 = vmatpush1.msra.mxu0 0.0
  %197 = vmatprep.subr.mxu0 0.0
  %198 = vmatpush1.msra.mxu0 0.0
  %199 = vmatprep.subr.mxu0 0.0
  %200 = vmatpush1.msra.mxu0 0.0
  %201 = vmatprep.subr.mxu0 0.0
  %202 = vmatpush1.msra.mxu0 0.0
  %203 = vmatprep.subr.mxu0 0.0
  %204 = vmatpush1.msra.mxu0 0.0
  %205 = vmatprep.subr.mxu0 0.0
  %206 = vmatpush1.msra.mxu0 0.0
  %207 = vmatprep.subr.mxu0 0.0
  %208 = vmatpush1.msra.mxu0 0.0
  %209 = vmatprep.subr.mxu0 0.0
  %210 = vmatpush1.msra.mxu0 0.0
  %211 = vmatprep.subr.mxu0 0.0
  %212 = vmatpush1.msra.mxu0 0.0
  %213 = vmatprep.mubr.f32.mxu0 0.0
  %214 = vmatmul.mubr.f32.gmra.mrb[0].mxu0 %v147
  %v215 = vpop.f32.mrb[0].mxu0
  %v216 = vadd.f32 %v78, %v215
  %v217 = vpop.f32.mrb[0].mxu0
  %v218 = vadd.f32 %v82, %v217
  %219 = vdwg.mxu0
  %220 = vmatprep.subr.mxu0 %v18
  %221 = vmatpush1.msra.mxu0 %v17
  %222 = vmatprep.subr.mxu0 %v32
  %223 = vmatpush1.msra.mxu0 %v31
  %224 = vmatprep.subr.mxu0 %v46
  %225 = vmatpush1.msra.mxu0 %v45
  %226 = vmatprep.subr.mxu0 %v60
  %227 = vmatpush1.msra.mxu0 %v59
  %228 = vmatprep.subr.mxu0 0.0
  %229 = vmatpush1.msra.mxu0 0.0
  %230 = vmatprep.subr.mxu0 0.0
  %231 = vmatpush1.msra.mxu0 0.0
  %232 = vmatprep.subr.mxu0 0.0
  %233 = vmatpush1.msra.mxu0 0.0
  %234 = vmatprep.subr.mxu0 0.0
  %235 = vmatpush1.msra.mxu0 0.0
  %236 = vmatprep.subr.mxu0 0.0
  %237 = vmatpush1.msra.mxu0 0.0
  %238 = vmatprep.subr.mxu0 0.0
  %239 = vmatpush1.msra.mxu0 0.0
  %240 = vmatprep.subr.mxu0 0.0
  %241 = vmatpush1.msra.mxu0 0.0
  %242 = vmatprep.subr.mxu0 0.0
  %243 = vmatpush1.msra.mxu0 0.0
  %244 = vmatprep.subr.mxu0 0.0
  %245 = vmatpush1.msra.mxu0 0.0
  %246 = vmatprep.subr.mxu0 0.0
  %247 = vmatpush1.msra.mxu0 0.0
  %248 = vmatprep.subr.mxu0 0.0
  %249 = vmatpush1.msra.mxu0 0.0
  %250 = vmatprep.subr.mxu0 0.0
  %251 = vmatpush1.msra.mxu0 0.0
  %252 = vmatprep.subr.mxu0 0.0
  %253 = vmatpush1.msra.mxu0 0.0
  %254 = vmatprep.subr.mxu0 0.0
  %255 = vmatpush1.msra.mxu0 0.0
  %256 = vmatprep.subr.mxu0 0.0
  %257 = vmatpush1.msra.mxu0 0.0
  %258 = vmatprep.subr.mxu0 0.0
  %259 = vmatpush1.msra.mxu0 0.0
  %260 = vmatprep.subr.mxu0 0.0
  %261 = vmatpush1.msra.mxu0 0.0
  %262 = vmatprep.subr.mxu0 0.0
  %263 = vmatpush1.msra.mxu0 0.0
  %264 = vmatprep.subr.mxu0 0.0
  %265 = vmatpush1.msra.mxu0 0.0
  %266 = vmatprep.subr.mxu0 0.0
  %267 = vmatpush1.msra.mxu0 0.0
  %268 = vmatprep.subr.mxu0 0.0
  %269 = vmatpush1.msra.mxu0 0.0
  %270 = vmatprep.subr.mxu0 0.0
  %271 = vmatpush1.msra.mxu0 0.0
  %272 = vmatprep.subr.mxu0 0.0
  %273 = vmatpush1.msra.mxu0 0.0
  %274 = vmatprep.subr.mxu0 0.0
  %275 = vmatpush1.msra.mxu0 0.0
  %276 = vmatprep.subr.mxu0 0.0
  %277 = vmatpush1.msra.mxu0 0.0
  %278 = vmatprep.subr.mxu0 0.0
  %279 = vmatpush1.msra.mxu0 0.0
  %280 = vmatprep.subr.mxu0 0.0
  %281 = vmatpush1.msra.mxu0 0.0
  %282 = vmatprep.subr.mxu0 0.0
  %283 = vmatpush1.msra.mxu0 0.0
  %284 = vmatprep.mubr.f32.mxu0 0.0
  %285 = vmatmul.mubr.f32.gmra.mrb[0].mxu0 %v147
  %v286 = vpop.f32.mrb[0].mxu0
  %v287 = vadd.f32 %v86, %v286
  %v288 = vpop.f32.mrb[0].mxu0
  %v289 = vadd.f32 %v90, %v288
  %290 = vdwg.mxu0
  %291 = vmatprep.subr.mxu0 %v20
  %292 = vmatpush1.msra.mxu0 %v19
  %293 = vmatprep.subr.mxu0 %v34
  %294 = vmatpush1.msra.mxu0 %v33
  %295 = vmatprep.subr.mxu0 %v48
  %296 = vmatpush1.msra.mxu0 %v47
  %297 = vmatprep.subr.mxu0 %v62
  %298 = vmatpush1.msra.mxu0 %v61
  %299 = vmatprep.subr.mxu0 0.0
  %300 = vmatpush1.msra.mxu0 0.0
  %301 = vmatprep.subr.mxu0 0.0
  %302 = vmatpush1.msra.mxu0 0.0
  %303 = vmatprep.subr.mxu0 0.0
  %304 = vmatpush1.msra.mxu0 0.0
  %305 = vmatprep.subr.mxu0 0.0
  %306 = vmatpush1.msra.mxu0 0.0
  %307 = vmatprep.subr.mxu0 0.0
  %308 = vmatpush1.msra.mxu0 0.0
  %309 = vmatprep.subr.mxu0 0.0
  %310 = vmatpush1.msra.mxu0 0.0
  %311 = vmatprep.subr.mxu0 0.0
  %312 = vmatpush1.msra.mxu0 0.0
  %313 = vmatprep.subr.mxu0 0.0
  %314 = vmatpush1.msra.mxu0 0.0
  %315 = vmatprep.subr.mxu0 0.0
  %316 = vmatpush1.msra.mxu0 0.0
  %317 = vmatprep.subr.mxu0 0.0
  %318 = vmatpush1.msra.mxu0 0.0
  %319 = vmatprep.subr.mxu0 0.0
  %320 = vmatpush1.msra.mxu0 0.0
  %321 = vmatprep.subr.mxu0 0.0
  %322 = vmatpush1.msra.mxu0 0.0
  %323 = vmatprep.subr.mxu0 0.0
  %324 = vmatpush1.msra.mxu0 0.0
  %325 = vmatprep.subr.mxu0 0.0
  %326 = vmatpush1.msra.mxu0 0.0
  %327 = vmatprep.subr.mxu0 0.0
  %328 = vmatpush1.msra.mxu0 0.0
  %329 = vmatprep.subr.mxu0 0.0
  %330 = vmatpush1.msra.mxu0 0.0
  %331 = vmatprep.subr.mxu0 0.0
  %332 = vmatpush1.msra.mxu0 0.0
  %333 = vmatprep.subr.mxu0 0.0
  %334 = vmatpush1.msra.mxu0 0.0
  %335 = vmatprep.subr.mxu0 0.0
  %336 = vmatpush1.msra.mxu0 0.0
  %337 = vmatprep.subr.mxu0 0.0
  %338 = vmatpush1.msra.mxu0 0.0
  %339 = vmatprep.subr.mxu0 0.0
  %340 = vmatpush1.msra.mxu0 0.0
  %341 = vmatprep.subr.mxu0 0.0
  %342 = vmatpush1.msra.mxu0 0.0
  %343 = vmatprep.subr.mxu0 0.0
  %344 = vmatpush1.msra.mxu0 0.0
  %345 = vmatprep.subr.mxu0 0.0
  %346 = vmatpush1.msra.mxu0 0.0
  %347 = vmatprep.subr.mxu0 0.0
  %348 = vmatpush1.msra.mxu0 0.0
  %349 = vmatprep.subr.mxu0 0.0
  %350 = vmatpush1.msra.mxu0 0.0
  %351 = vmatprep.subr.mxu0 0.0
  %352 = vmatpush1.msra.mxu0 0.0
  %353 = vmatprep.subr.mxu0 0.0
  %354 = vmatpush1.msra.mxu0 0.0
  %355 = vmatprep.mubr.f32.mxu0 0.0
  %356 = vmatmul.mubr.f32.gmra.mrb[0].mxu0 %v147
  %v357 = vpop.f32.mrb[0].mxu0
  %v358 = vadd.f32 %v94, %v357
  %v359 = vpop.f32.mrb[0].mxu0
  %v360 = vadd.f32 %v98, %v359
  %361 = vdwg.mxu0
  %362 = vmatprep.subr.mxu0 %v22
  %363 = vmatpush1.msra.mxu0 %v21
  %364 = vmatprep.subr.mxu0 %v36
  %365 = vmatpush1.msra.mxu0 %v35
  %366 = vmatprep.subr.mxu0 %v50
  %367 = vmatpush1.msra.mxu0 %v49
  %368 = vmatprep.subr.mxu0 %v64
  %369 = vmatpush1.msra.mxu0 %v63
  %370 = vmatprep.subr.mxu0 0.0
  %371 = vmatpush1.msra.mxu0 0.0
  %372 = vmatprep.subr.mxu0 0.0
  %373 = vmatpush1.msra.mxu0 0.0
  %374 = vmatprep.subr.mxu0 0.0
  %375 = vmatpush1.msra.mxu0 0.0
  %376 = vmatprep.subr.mxu0 0.0
  %377 = vmatpush1.msra.mxu0 0.0
  %378 = vmatprep.subr.mxu0 0.0
  %379 = vmatpush1.msra.mxu0 0.0
  %380 = vmatprep.subr.mxu0 0.0
  %381 = vmatpush1.msra.mxu0 0.0
  %382 = vmatprep.subr.mxu0 0.0
  %383 = vmatpush1.msra.mxu0 0.0
  %384 = vmatprep.subr.mxu0 0.0
  %385 = vmatpush1.msra.mxu0 0.0
  %386 = vmatprep.subr.mxu0 0.0
  %387 = vmatpush1.msra.mxu0 0.0
  %388 = vmatprep.subr.mxu0 0.0
  %389 = vmatpush1.msra.mxu0 0.0
  %390 = vmatprep.subr.mxu0 0.0
  %391 = vmatpush1.msra.mxu0 0.0
  %392 = vmatprep.subr.mxu0 0.0
  %393 = vmatpush1.msra.mxu0 0.0
  %394 = vmatprep.subr.mxu0 0.0
  %395 = vmatpush1.msra.mxu0 0.0
  %396 = vmatprep.subr.mxu0 0.0
  %397 = vmatpush1.msra.mxu0 0.0
  %398 = vmatprep.subr.mxu0 0.0
  %399 = vmatpush1.msra.mxu0 0.0
  %400 = vmatprep.subr.mxu0 0.0
  %401 = vmatpush1.msra.mxu0 0.0
  %402 = vmatprep.subr.mxu0 0.0
  %403 = vmatpush1.msra.mxu0 0.0
  %404 = vmatprep.subr.mxu0 0.0
  %405 = vmatpush1.msra.mxu0 0.0
  %406 = vmatprep.subr.mxu0 0.0
  %407 = vmatpush1.msra.mxu0 0.0
  %408 = vmatprep.subr.mxu0 0.0
  %409 = vmatpush1.msra.mxu0 0.0
  %410 = vmatprep.subr.mxu0 0.0
  %411 = vmatpush1.msra.mxu0 0.0
  %412 = vmatprep.subr.mxu0 0.0
  %413 = vmatpush1.msra.mxu0 0.0
  %414 = vmatprep.subr.mxu0 0.0
  %415 = vmatpush1.msra.mxu0 0.0
  %416 = vmatprep.subr.mxu0 0.0
  %417 = vmatpush1.msra.mxu0 0.0
  %418 = vmatprep.subr.mxu0 0.0
  %419 = vmatpush1.msra.mxu0 0.0
  %420 = vmatprep.subr.mxu0 0.0
  %421 = vmatpush1.msra.mxu0 0.0
  %422 = vmatprep.subr.mxu0 0.0
  %423 = vmatpush1.msra.mxu0 0.0
  %424 = vmatprep.subr.mxu0 0.0
  %425 = vmatpush1.msra.mxu0 0.0
  %426 = vmatprep.mubr.f32.mxu0 0.0
  %427 = vmatmul.mubr.f32.gmra.mrb[0].mxu0 %v147
  %v428 = vpop.f32.mrb[0].mxu0
  %v429 = vadd.f32 %v102, %v428
  %v430 = vpop.f32.mrb[0].mxu0
  %v431 = vadd.f32 %v106, %v430
  %432 = vdwg.mxu0
  %433 = vmatprep.subr.mxu0 %v24
  %434 = vmatpush1.msra.mxu0 %v23
  %435 = vmatprep.subr.mxu0 %v38
  %436 = vmatpush1.msra.mxu0 %v37
  %437 = vmatprep.subr.mxu0 %v52
  %438 = vmatpush1.msra.mxu0 %v51
  %439 = vmatprep.subr.mxu0 %v66
  %440 = vmatpush1.msra.mxu0 %v65
  %441 = vmatprep.subr.mxu0 0.0
  %442 = vmatpush1.msra.mxu0 0.0
  %443 = vmatprep.subr.mxu0 0.0
  %444 = vmatpush1.msra.mxu0 0.0
  %445 = vmatprep.subr.mxu0 0.0
  %446 = vmatpush1.msra.mxu0 0.0
  %447 = vmatprep.subr.mxu0 0.0
  %448 = vmatpush1.msra.mxu0 0.0
  %449 = vmatprep.subr.mxu0 0.0
  %450 = vmatpush1.msra.mxu0 0.0
  %451 = vmatprep.subr.mxu0 0.0
  %452 = vmatpush1.msra.mxu0 0.0
  %453 = vmatprep.subr.mxu0 0.0
  %454 = vmatpush1.msra.mxu0 0.0
  %455 = vmatprep.subr.mxu0 0.0
  %456 = vmatpush1.msra.mxu0 0.0
  %457 = vmatprep.subr.mxu0 0.0
  %458 = vmatpush1.msra.mxu0 0.0
  %459 = vmatprep.subr.mxu0 0.0
  %460 = vmatpush1.msra.mxu0 0.0
  %461 = vmatprep.subr.mxu0 0.0
  %462 = vmatpush1.msra.mxu0 0.0
  %463 = vmatprep.subr.mxu0 0.0
  %464 = vmatpush1.msra.mxu0 0.0
  %465 = vmatprep.subr.mxu0 0.0
  %466 = vmatpush1.msra.mxu0 0.0
  %467 = vmatprep.subr.mxu0 0.0
  %468 = vmatpush1.msra.mxu0 0.0
  %469 = vmatprep.subr.mxu0 0.0
  %470 = vmatpush1.msra.mxu0 0.0
  %471 = vmatprep.subr.mxu0 0.0
  %472 = vmatpush1.msra.mxu0 0.0
  %473 = vmatprep.subr.mxu0 0.0
  %474 = vmatpush1.msra.mxu0 0.0
  %475 = vmatprep.subr.mxu0 0.0
  %476 = vmatpush1.msra.mxu0 0.0
  %477 = vmatprep.subr.mxu0 0.0
  %478 = vmatpush1.msra.mxu0 0.0
  %479 = vmatprep.subr.mxu0 0.0
  %480 = vmatpush1.msra.mxu0 0.0
  %481 = vmatprep.subr.mxu0 0.0
  %482 = vmatpush1.msra.mxu0 0.0
  %483 = vmatprep.subr.mxu0 0.0
  %484 = vmatpush1.msra.mxu0 0.0
  %485 = vmatprep.subr.mxu0 0.0
  %486 = vmatpush1.msra.mxu0 0.0
  %487 = vmatprep.subr.mxu0 0.0
  %488 = vmatpush1.msra.mxu0 0.0
  %489 = vmatprep.subr.mxu0 0.0
  %490 = vmatpush1.msra.mxu0 0.0
  %491 = vmatprep.subr.mxu0 0.0
  %492 = vmatpush1.msra.mxu0 0.0
  %493 = vmatprep.subr.mxu0 0.0
  %494 = vmatpush1.msra.mxu0 0.0
  %495 = vmatprep.subr.mxu0 0.0
  %496 = vmatpush1.msra.mxu0 0.0
  %497 = vmatprep.mubr.f32.mxu0 0.0
  %498 = vmatmul.mubr.f32.gmra.mrb[0].mxu0 %v147
  %v499 = vpop.f32.mrb[0].mxu0
  %v500 = vadd.f32 %v110, %v499
  %v501 = vpop.f32.mrb[0].mxu0
  %v502 = vadd.f32 %v114, %v501
  %503 = vdwg.mxu0
  %504 = vmatprep.subr.mxu0 %v26
  %505 = vmatpush1.msra.mxu0 %v25
  %506 = vmatprep.subr.mxu0 %v40
  %507 = vmatpush1.msra.mxu0 %v39
  %508 = vmatprep.subr.mxu0 %v54
  %509 = vmatpush1.msra.mxu0 %v53
  %510 = vmatprep.subr.mxu0 %v68
  %511 = vmatpush1.msra.mxu0 %v67
  %512 = vmatprep.subr.mxu0 0.0
  %513 = vmatpush1.msra.mxu0 0.0
  %514 = vmatprep.subr.mxu0 0.0
  %515 = vmatpush1.msra.mxu0 0.0
  %516 = vmatprep.subr.mxu0 0.0
  %517 = vmatpush1.msra.mxu0 0.0
  %518 = vmatprep.subr.mxu0 0.0
  %519 = vmatpush1.msra.mxu0 0.0
  %520 = vmatprep.subr.mxu0 0.0
  %521 = vmatpush1.msra.mxu0 0.0
  %522 = vmatprep.subr.mxu0 0.0
  %523 = vmatpush1.msra.mxu0 0.0
  %524 = vmatprep.subr.mxu0 0.0
  %525 = vmatpush1.msra.mxu0 0.0
  %526 = vmatprep.subr.mxu0 0.0
  %527 = vmatpush1.msra.mxu0 0.0
  %528 = vmatprep.subr.mxu0 0.0
  %529 = vmatpush1.msra.mxu0 0.0
  %530 = vmatprep.subr.mxu0 0.0
  %531 = vmatpush1.msra.mxu0 0.0
  %532 = vmatprep.subr.mxu0 0.0
  %533 = vmatpush1.msra.mxu0 0.0
  %534 = vmatprep.subr.mxu0 0.0
  %535 = vmatpush1.msra.mxu0 0.0
  %536 = vmatprep.subr.mxu0 0.0
  %537 = vmatpush1.msra.mxu0 0.0
  %538 = vmatprep.subr.mxu0 0.0
  %539 = vmatpush1.msra.mxu0 0.0
  %540 = vmatprep.subr.mxu0 0.0
  %541 = vmatpush1.msra.mxu0 0.0
  %542 = vmatprep.subr.mxu0 0.0
  %543 = vmatpush1.msra.mxu0 0.0
  %544 = vmatprep.subr.mxu0 0.0
  %545 = vmatpush1.msra.mxu0 0.0
  %546 = vmatprep.subr.mxu0 0.0
  %547 = vmatpush1.msra.mxu0 0.0
  %548 = vmatprep.subr.mxu0 0.0
  %549 = vmatpush1.msra.mxu0 0.0
  %550 = vmatprep.subr.mxu0 0.0
  %551 = vmatpush1.msra.mxu0 0.0
  %552 = vmatprep.subr.mxu0 0.0
  %553 = vmatpush1.msra.mxu0 0.0
  %554 = vmatprep.subr.mxu0 0.0
  %555 = vmatpush1.msra.mxu0 0.0
  %556 = vmatprep.subr.mxu0 0.0
  %557 = vmatpush1.msra.mxu0 0.0
  %558 = vmatprep.subr.mxu0 0.0
  %559 = vmatpush1.msra.mxu0 0.0
  %560 = vmatprep.subr.mxu0 0.0
  %561 = vmatpush1.msra.mxu0 0.0
  %562 = vmatprep.subr.mxu0 0.0
  %563 = vmatpush1.msra.mxu0 0.0
  %564 = vmatprep.subr.mxu0 0.0
  %565 = vmatpush1.msra.mxu0 0.0
  %566 = vmatprep.subr.mxu0 0.0
  %567 = vmatpush1.msra.mxu0 0.0
  %568 = vmatprep.mubr.f32.mxu0 0.0
  %569 = vmatmul.mubr.f32.gmra.mrb[0].mxu0 %v147
  %v570 = vpop.f32.mrb[0].mxu0
  %v571 = vadd.f32 %v118, %v570
  %v572 = vpop.f32.mrb[0].mxu0
  %v573 = vadd.f32 %v122, %v572
  %574 = vdwg.mxu0
  %575 = vmatprep.subr.mxu0 %v28
  %576 = vmatpush1.msra.mxu0 %v27
  %577 = vmatprep.subr.mxu0 %v42
  %578 = vmatpush1.msra.mxu0 %v41
  %579 = vmatprep.subr.mxu0 %v56
  %580 = vmatpush1.msra.mxu0 %v55
  %581 = vmatprep.subr.mxu0 %v70
  %582 = vmatpush1.msra.mxu0 %v69
  %583 = vmatprep.subr.mxu0 0.0
  %584 = vmatpush1.msra.mxu0 0.0
  %585 = vmatprep.subr.mxu0 0.0
  %586 = vmatpush1.msra.mxu0 0.0
  %587 = vmatprep.subr.mxu0 0.0
  %588 = vmatpush1.msra.mxu0 0.0
  %589 = vmatprep.subr.mxu0 0.0
  %590 = vmatpush1.msra.mxu0 0.0
  %591 = vmatprep.subr.mxu0 0.0
  %592 = vmatpush1.msra.mxu0 0.0
  %593 = vmatprep.subr.mxu0 0.0
  %594 = vmatpush1.msra.mxu0 0.0
  %595 = vmatprep.subr.mxu0 0.0
  %596 = vmatpush1.msra.mxu0 0.0
  %597 = vmatprep.subr.mxu0 0.0
  %598 = vmatpush1.msra.mxu0 0.0
  %599 = vmatprep.subr.mxu0 0.0
  %600 = vmatpush1.msra.mxu0 0.0
  %601 = vmatprep.subr.mxu0 0.0
  %602 = vmatpush1.msra.mxu0 0.0
  %603 = vmatprep.subr.mxu0 0.0
  %604 = vmatpush1.msra.mxu0 0.0
  %605 = vmatprep.subr.mxu0 0.0
  %606 = vmatpush1.msra.mxu0 0.0
  %607 = vmatprep.subr.mxu0 0.0
  %608 = vmatpush1.msra.mxu0 0.0
  %609 = vmatprep.subr.mxu0 0.0
  %610 = vmatpush1.msra.mxu0 0.0
  %611 = vmatprep.subr.mxu0 0.0
  %612 = vmatpush1.msra.mxu0 0.0
  %613 = vmatprep.subr.mxu0 0.0
  %614 = vmatpush1.msra.mxu0 0.0
  %615 = vmatprep.subr.mxu0 0.0
  %616 = vmatpush1.msra.mxu0 0.0
  %617 = vmatprep.subr.mxu0 0.0
  %618 = vmatpush1.msra.mxu0 0.0
  %619 = vmatprep.subr.mxu0 0.0
  %620 = vmatpush1.msra.mxu0 0.0
  %621 = vmatprep.subr.mxu0 0.0
  %622 = vmatpush1.msra.mxu0 0.0
  %623 = vmatprep.subr.mxu0 0.0
  %624 = vmatpush1.msra.mxu0 0.0
  %625 = vmatprep.subr.mxu0 0.0
  %626 = vmatpush1.msra.mxu0 0.0
  %627 = vmatprep.subr.mxu0 0.0
  %628 = vmatpush1.msra.mxu0 0.0
  %629 = vmatprep.subr.mxu0 0.0
  %630 = vmatpush1.msra.mxu0 0.0
  %631 = vmatprep.subr.mxu0 0.0
  %632 = vmatpush1.msra.mxu0 0.0
  %633 = vmatprep.subr.mxu0 0.0
  %634 = vmatpush1.msra.mxu0 0.0
  %635 = vmatprep.subr.mxu0 0.0
  %636 = vmatpush1.msra.mxu0 0.0
  %637 = vmatprep.subr.mxu0 0.0
  %638 = vmatpush1.msra.mxu0 0.0
  %639 = vmatprep.mubr.f32.mxu0 0.0
  %640 = vmatmul.mubr.f32.gmra.mrb[0].mxu0 %v147
  %v641 = vpop.f32.mrb[0].mxu0
  %v642 = vadd.f32 %v126, %v641
  %v643 = vpop.f32.mrb[0].mxu0
  %v644 = vadd.f32 %v130, %v643
  %645 = vdwg.mxu0
  %v660 = vcombine.low %v216, %v218
  %v661 = vcombine.low %v287, %v289
  %v663 = vunpack.c.l.s4 1983009808
  %v664 = vunpack.c.0.s8 %v663
  %v665 = vlaneseq
  %v666 = vshrl.u32 %v665, 7
  %v667 = vsub.s32 %v664, %v666
  %v668 = vrot.slane %v660, %v667
  %v670 = vunpack.c.l.s4 1983009808
  %v671 = vunpack.c.0.s8 %v670
  %v672 = vlaneseq
  %v673 = vshrl.u32 %v672, 7
  %v674 = vsub.s32 %v671, %v673
  %v675 = vrot.slane %v661, %v674
  %v676 = vcombine.low %v668, %v675
  %v677 = vcombine.low %v358, %v360
  %v678 = vcombine.low %v429, %v431
  %v680 = vunpack.c.l.s4 1983009808
  %v681 = vunpack.c.0.s8 %v680
  %v682 = vlaneseq
  %v683 = vshrl.u32 %v682, 7
  %v684 = vsub.s32 %v681, %v683
  %v685 = vrot.slane %v677, %v684
  %v687 = vunpack.c.l.s4 1983009808
  %v688 = vunpack.c.0.s8 %v687
  %v689 = vlaneseq
  %v690 = vshrl.u32 %v689, 7
  %v691 = vsub.s32 %v688, %v690
  %v692 = vrot.slane %v678, %v691
  %v693 = vcombine.low %v685, %v692
  %v694 = vcombine.low %v500, %v502
  %v695 = vcombine.low %v571, %v573
  %v697 = vunpack.c.l.s4 1983009808
  %v698 = vunpack.c.0.s8 %v697
  %v699 = vlaneseq
  %v700 = vshrl.u32 %v699, 7
  %v701 = vsub.s32 %v698, %v700
  %v702 = vrot.slane %v694, %v701
  %v704 = vunpack.c.l.s4 1983009808
  %v705 = vunpack.c.0.s8 %v704
  %v706 = vlaneseq
  %v707 = vshrl.u32 %v706, 7
  %v708 = vsub.s32 %v705, %v707
  %v709 = vrot.slane %v695, %v708
  %v710 = vcombine.low %v702, %v709
  %v711 = vcombine.low %v642, %v644
  %v713 = vunpack.c.l.s4 1983009808
  %v714 = vunpack.c.0.s8 %v713
  %v715 = vlaneseq
  %v716 = vshrl.u32 %v715, 7
  %v717 = vsub.s32 %v714, %v716
  %v718 = vrot.slane %v711, %v717
  %723 = vst [vmem:[%s3] sm:$0xff] %v676
  %724 = vst [vmem:[%s3 + $0x8] sm:$0xff] %v693
  %725 = vst [vmem:[%s3 + $0x10] sm:$0xff] %v710
  %vm726 = vcmask 1041408
  %vm727 = vcmask 519170
  %vm728 = vmor %vm727, %vm726
  %729 = vst.msk [vmem:[%s3 + $0x18] sm:$0xf] %vm728, %v718
  // Predicated region
  $region14: #{autoencoder_forward.9} parent=0 // pred_check
    _
  $region15: #{autoencoder_forward.9} parent=0 // pred_check_branch
    %731 = sbr.rel (0) target = $region17
  $region16: #{autoencoder_forward.9} parent=0 // pred_region
    _
  $region17: #{autoencoder_forward.9} parent=0 // pred_fallthru
    _
  // Predicated region
  $region18: #{autoencoder_forward.9} parent=0 // pred_check
    _
  $region19: #{autoencoder_forward.9} parent=0 // pred_check_branch
    %733 = sbr.rel (0) target = $region21
  $region20: #{autoencoder_forward.9} parent=0 // pred_region
    _
  $region21: #{autoencoder_forward.9} parent=0 // pred_fallthru
    _

// kernel: autoencoder_forward.10
$region0: #{autoencoder_forward.10}
  #allocation0 [shape = 'u32[]', space=smem, size = 0x4, offset = 0x4, fixed_abs, tag = 'smem constant byte address 0x4 - core index']
  #allocation1 [shape = 'u32[144,128]{1,0:T(1,128)}', space=vmem, size = 0x12000, scoped, tag = 'internal scratch']
  %s0 = inlined_call_operand.vmem [shape: f32[432,512], index: 0, kind: input, shape index: {}]
  %s1 = inlined_call_operand.vmem [shape: f32[512,32], index: 1, kind: input, shape index: {}]
  %s2 = inlined_call_operand.vmem [shape: f32[1,32], index: 2, kind: input, shape index: {}]
  %s3 = inlined_call_operand.vmem [shape: f32[1,32], index: 3, kind: input, shape index: {}]
  %s4 = inlined_call_operand.vmem [shape: f32[1,32], index: 4, kind: input, shape index: {}]
  %s5 = inlined_call_operand.vmem [shape: f32[432,32], index: 5, kind: output, shape index: {}]
  %s6 = sld [smem:[#allocation0]]
  $region30: #{autoencoder_forward.10} parent=0
    _
  %s8 = ssub.s32 1, %s6
  %s9 = scalar_select 0, %s8, %s6
  // Predicated region
  $region2: #{autoencoder_forward.10} parent=0 // pred_check
    _
  $region3: #{autoencoder_forward.10} parent=0 // pred_check_branch
    %11 = sbr.rel (0) target = $region5
  $region4: #{autoencoder_forward.10} parent=0 // pred_region
    _
  $region5: #{autoencoder_forward.10} parent=0 // pred_fallthru
    _
  // Predicated region
  $region6: #{autoencoder_forward.10} parent=0 // pred_check
    _
  $region7: #{autoencoder_forward.10} parent=0 // pred_check_branch
    %13 = sbr.rel (0) target = $region9
  $region8: #{autoencoder_forward.10} parent=0 // pred_region
    _
  $region9: #{autoencoder_forward.10} parent=0 // pred_fallthru
    _
  // Predicated region
  $region10: #{autoencoder_forward.10} parent=0 // pred_check
    _
  $region11: #{autoencoder_forward.10} parent=0 // pred_check_branch
    %15 = sbr.rel (0) target = $region13
  $region12: #{autoencoder_forward.10} parent=0 // pred_region
    _
  $region13: #{autoencoder_forward.10} parent=0 // pred_fallthru
    _
  // Predicated region
  $region14: #{autoencoder_forward.10} parent=0 // pred_check
    _
  $region15: #{autoencoder_forward.10} parent=0 // pred_check_branch
    %17 = sbr.rel (0) target = $region17
  $region16: #{autoencoder_forward.10} parent=0 // pred_region
    _
  $region17: #{autoencoder_forward.10} parent=0 // pred_fallthru
    _
  // Predicated region
  $region18: #{autoencoder_forward.10} parent=0 // pred_check
    _
  $region19: #{autoencoder_forward.10} parent=0 // pred_check_branch
    %19 = sbr.rel (0) target = $region21
  $region20: #{autoencoder_forward.10} parent=0 // pred_region
    _
  $region21: #{autoencoder_forward.10} parent=0 // pred_fallthru
    _
  %v20 = vld [vmem:[%s0] sm:$0xff]
  %v21 = vld [vmem:[%s0 + $0x8] sm:$0xff]
  %v22 = vld [vmem:[%s0 + $0x10] sm:$0xff]
  %v23 = vld [vmem:[%s0 + $0x18] sm:$0xff]
  %v24 = vld [vmem:[%s0 + $0x20] sm:$0xff]
  %v25 = vld [vmem:[%s0 + $0x28] sm:$0xff]
  %v26 = vld [vmem:[%s0 + $0x30] sm:$0xff]
  %v27 = vld [vmem:[%s0 + $0x38] sm:$0xff]
  %v28 = vld [vmem:[%s0 + $0x40] sm:$0xff]
  %v29 = vld [vmem:[%s0 + $0x48] sm:$0xff]
  %v30 = vld [vmem:[%s0 + $0x50] sm:$0xff]
  %v31 = vld [vmem:[%s0 + $0x58] sm:$0xff]
  %v32 = vld [vmem:[%s0 + $0x60] sm:$0xff]
  %v33 = vld [vmem:[%s0 + $0x68] sm:$0xff]
  %v34 = vld [vmem:[%s0 + $0x70] sm:$0xff]
  %v35 = vld [vmem:[%s0 + $0x78] sm:$0xff]
  %v36 = vld [vmem:[%s0 + $0x80] sm:$0xff]
  %v37 = vld [vmem:[%s0 + $0x88] sm:$0xff]
  %v38 = vld [vmem:[%s0 + $0x90] sm:$0xff]
  %v39 = vld [vmem:[%s0 + $0x98] sm:$0xff]
  %v40 = vld [vmem:[%s0 + $0xa0] sm:$0xff]
  %v41 = vld [vmem:[%s0 + $0xa8] sm:$0xff]
  %v42 = vld [vmem:[%s0 + $0xb0] sm:$0xff]
  %v43 = vld [vmem:[%s0 + $0xb8] sm:$0xff]
  %v44 = vld [vmem:[%s0 + $0xc0] sm:$0xff]
  %v45 = vld [vmem:[%s0 + $0xc8] sm:$0xff]
  %v46 = vld [vmem:[%s0 + $0xd0] sm:$0xff]
  %v47 = vld [vmem:[%s0 + $0xd8] sm:$0xff]
  %v48 = vld [vmem:[%s0 + $0xe0] sm:$0xff]
  %v49 = vld [vmem:[%s0 + $0xe8] sm:$0xff]
  %v50 = vld [vmem:[%s0 + $0xf0] sm:$0xff]
  %v51 = vld [vmem:[%s0 + $0xf8] sm:$0xff]
  %v52 = vld [vmem:[%s0 + $0x100] sm:$0xff]
  %v53 = vld [vmem:[%s0 + $0x108] sm:$0xff]
  %v54 = vld [vmem:[%s0 + $0x110] sm:$0xff]
  %v55 = vld [vmem:[%s0 + $0x118] sm:$0xff]
  %v56 = vld [vmem:[%s0 + $0x120] sm:$0xff]
  %v57 = vld [vmem:[%s0 + $0x128] sm:$0xff]
  %v58 = vld [vmem:[%s0 + $0x130] sm:$0xff]
  %v59 = vld [vmem:[%s0 + $0x138] sm:$0xff]
  %v60 = vld [vmem:[%s0 + $0x140] sm:$0xff]
  %v61 = vld [vmem:[%s0 + $0x148] sm:$0xff]
  %v62 = vld [vmem:[%s0 + $0x150] sm:$0xff]
  %v63 = vld [vmem:[%s0 + $0x158] sm:$0xff]
  %v64 = vld [vmem:[%s0 + $0x160] sm:$0xff]
  %v65 = vld [vmem:[%s0 + $0x168] sm:$0xff]
  %v66 = vld [vmem:[%s0 + $0x170] sm:$0xff]
  %v67 = vld [vmem:[%s0 + $0x178] sm:$0xff]
  %v68 = vld [vmem:[%s0 + $0x180] sm:$0xff]
  %v69 = vld [vmem:[%s0 + $0x188] sm:$0xff]
  %v70 = vld [vmem:[%s0 + $0x190] sm:$0xff]
  %v71 = vld [vmem:[%s0 + $0x198] sm:$0xff]
  %v72 = vld [vmem:[%s0 + $0x1a0] sm:$0xff]
  %v73 = vld [vmem:[%s0 + $0x1a8] sm:$0xff]
  %v74 = vld [vmem:[%s0 + $0x1b0] sm:$0xff]
  %v75 = vld [vmem:[%s0 + $0x1b8] sm:$0xff]
  %v76 = vld [vmem:[%s0 + $0x1c0] sm:$0xff]
  %v77 = vld [vmem:[%s0 + $0x1c8] sm:$0xff]
  %v78 = vld [vmem:[%s0 + $0x1d0] sm:$0xff]
  %v79 = vld [vmem:[%s0 + $0x1d8] sm:$0xff]
  %v80 = vld [vmem:[%s0 + $0x1e0] sm:$0xff]
  %v81 = vld [vmem:[%s0 + $0x1e8] sm:$0xff]
  %v82 = vld [vmem:[%s0 + $0x1f0] sm:$0xff]
  %v83 = vld [vmem:[%s0 + $0x1f8] sm:$0xff]
  %v84 = vld [vmem:[%s0 + $0x200] sm:$0xff]
  %v85 = vld [vmem:[%s0 + $0x208] sm:$0xff]
  %v86 = vld [vmem:[%s0 + $0x210] sm:$0xff]
  %v87 = vld [vmem:[%s0 + $0x218] sm:$0xff]
  %v88 = vld [vmem:[%s0 + $0x220] sm:$0xff]
  %v89 = vld [vmem:[%s0 + $0x228] sm:$0xff]
  %v90 = vld [vmem:[%s0 + $0x230] sm:$0xff]
  %v91 = vld [vmem:[%s0 + $0x238] sm:$0xff]
  %v92 = vld [vmem:[%s0 + $0x240] sm:$0xff]
  %v93 = vld [vmem:[%s0 + $0x248] sm:$0xff]
  %v94 = vld [vmem:[%s0 + $0x250] sm:$0xff]
  %v95 = vld [vmem:[%s0 + $0x258] sm:$0xff]
  %v96 = vld [vmem:[%s0 + $0x260] sm:$0xff]
  %v97 = vld [vmem:[%s0 + $0x268] sm:$0xff]
  %v98 = vld [vmem:[%s0 + $0x270] sm:$0xff]
  %v99 = vld [vmem:[%s0 + $0x278] sm:$0xff]
  %v100 = vld [vmem:[%s0 + $0x280] sm:$0xff]
  %v101 = vld [vmem:[%s0 + $0x288] sm:$0xff]
  %v102 = vld [vmem:[%s0 + $0x290] sm:$0xff]
  %v103 = vld [vmem:[%s0 + $0x298] sm:$0xff]
  %v104 = vld [vmem:[%s0 + $0x2a0] sm:$0xff]
  %v105 = vld [vmem:[%s0 + $0x2a8] sm:$0xff]
  %v106 = vld [vmem:[%s0 + $0x2b0] sm:$0xff]
  %v107 = vld [vmem:[%s0 + $0x2b8] sm:$0xff]
  %v108 = vld [vmem:[%s0 + $0x2c0] sm:$0xff]
  %v109 = vld [vmem:[%s0 + $0x2c8] sm:$0xff]
  %v110 = vld [vmem:[%s0 + $0x2d0] sm:$0xff]
  %v111 = vld [vmem:[%s0 + $0x2d8] sm:$0xff]
  %v112 = vld [vmem:[%s0 + $0x2e0] sm:$0xff]
  %v113 = vld [vmem:[%s0 + $0x2e8] sm:$0xff]
  %v114 = vld [vmem:[%s0 + $0x2f0] sm:$0xff]
  %v115 = vld [vmem:[%s0 + $0x2f8] sm:$0xff]
  %v116 = vld [vmem:[%s0 + $0x300] sm:$0xff]
  %v117 = vld [vmem:[%s0 + $0x308] sm:$0xff]
  %v118 = vld [vmem:[%s0 + $0x310] sm:$0xff]
  %v119 = vld [vmem:[%s0 + $0x318] sm:$0xff]
  %v120 = vld [vmem:[%s0 + $0x320] sm:$0xff]
  %v121 = vld [vmem:[%s0 + $0x328] sm:$0xff]
  %v122 = vld [vmem:[%s0 + $0x330] sm:$0xff]
  %v123 = vld [vmem:[%s0 + $0x338] sm:$0xff]
  %v124 = vld [vmem:[%s0 + $0x340] sm:$0xff]
  %v125 = vld [vmem:[%s0 + $0x348] sm:$0xff]
  %v126 = vld [vmem:[%s0 + $0x350] sm:$0xff]
  %v127 = vld [vmem:[%s0 + $0x358] sm:$0xff]
  %v128 = vld [vmem:[%s0 + $0x360] sm:$0xff]
  %v129 = vld [vmem:[%s0 + $0x368] sm:$0xff]
  %v130 = vld [vmem:[%s0 + $0x370] sm:$0xff]
  %v131 = vld [vmem:[%s0 + $0x378] sm:$0xff]
  %v132 = vld [vmem:[%s0 + $0x380] sm:$0xff]
  %v133 = vld [vmem:[%s0 + $0x388] sm:$0xff]
  %v134 = vld [vmem:[%s0 + $0x390] sm:$0xff]
  %v135 = vld [vmem:[%s0 + $0x398] sm:$0xff]
  %v136 = vld [vmem:[%s0 + $0x3a0] sm:$0xff]
  %v137 = vld [vmem:[%s0 + $0x3a8] sm:$0xff]
  %v138 = vld [vmem:[%s0 + $0x3b0] sm:$0xff]
  %v139 = vld [vmem:[%s0 + $0x3b8] sm:$0xff]
  %v140 = vld [vmem:[%s0 + $0x3c0] sm:$0xff]
  %v141 = vld [vmem:[%s0 + $0x3c8] sm:$0xff]
  %v142 = vld [vmem:[%s0 + $0x3d0] sm:$0xff]
  %v143 = vld [vmem:[%s0 + $0x3d8] sm:$0xff]
  %v144 = vld [vmem:[%s0 + $0x3e0] sm:$0xff]
  %v145 = vld [vmem:[%s0 + $0x3e8] sm:$0xff]
  %v146 = vld [vmem:[%s0 + $0x3f0] sm:$0xff]
  %v147 = vld [vmem:[%s0 + $0x3f8] sm:$0xff]
  %v148 = vld [vmem:[%s0 + $0x400] sm:$0xff]
  %v149 = vld [vmem:[%s0 + $0x408] sm:$0xff]
  %v150 = vld [vmem:[%s0 + $0x410] sm:$0xff]
  %v151 = vld [vmem:[%s0 + $0x418] sm:$0xff]
  %v152 = vld [vmem:[%s0 + $0x420] sm:$0xff]
  %v153 = vld [vmem:[%s0 + $0x428] sm:$0xff]
  %v154 = vld [vmem:[%s0 + $0x430] sm:$0xff]
  %v155 = vld [vmem:[%s0 + $0x438] sm:$0xff]
  %v156 = vld [vmem:[%s0 + $0x440] sm:$0xff]
  %v157 = vld [vmem:[%s0 + $0x448] sm:$0xff]
  %v158 = vld [vmem:[%s0 + $0x450] sm:$0xff]
  %v159 = vld [vmem:[%s0 + $0x458] sm:$0xff]
  %v160 = vld [vmem:[%s0 + $0x460] sm:$0xff]
  %v161 = vld [vmem:[%s0 + $0x468] sm:$0xff]
  %v162 = vld [vmem:[%s0 + $0x470] sm:$0xff]
  %v163 = vld [vmem:[%s0 + $0x478] sm:$0xff]
  %v164 = vld [vmem:[%s0 + $0x480] sm:$0xff]
  %v165 = vld [vmem:[%s0 + $0x488] sm:$0xff]
  %v166 = vld [vmem:[%s0 + $0x490] sm:$0xff]
  %v167 = vld [vmem:[%s0 + $0x498] sm:$0xff]
  %v168 = vld [vmem:[%s0 + $0x4a0] sm:$0xff]
  %v169 = vld [vmem:[%s0 + $0x4a8] sm:$0xff]
  %v170 = vld [vmem:[%s0 + $0x4b0] sm:$0xff]
  %v171 = vld [vmem:[%s0 + $0x4b8] sm:$0xff]
  %v172 = vld [vmem:[%s0 + $0x4c0] sm:$0xff]
  %v173 = vld [vmem:[%s0 + $0x4c8] sm:$0xff]
  %v174 = vld [vmem:[%s0 + $0x4d0] sm:$0xff]
  %v175 = vld [vmem:[%s0 + $0x4d8] sm:$0xff]
  %v176 = vld [vmem:[%s0 + $0x4e0] sm:$0xff]
  %v177 = vld [vmem:[%s0 + $0x4e8] sm:$0xff]
  %v178 = vld [vmem:[%s0 + $0x4f0] sm:$0xff]
  %v179 = vld [vmem:[%s0 + $0x4f8] sm:$0xff]
  %v180 = vld [vmem:[%s0 + $0x500] sm:$0xff]
  %v181 = vld [vmem:[%s0 + $0x508] sm:$0xff]
  %v182 = vld [vmem:[%s0 + $0x510] sm:$0xff]
  %v183 = vld [vmem:[%s0 + $0x518] sm:$0xff]
  %v184 = vld [vmem:[%s0 + $0x520] sm:$0xff]
  %v185 = vld [vmem:[%s0 + $0x528] sm:$0xff]
  %v186 = vld [vmem:[%s0 + $0x530] sm:$0xff]
  %v187 = vld [vmem:[%s0 + $0x538] sm:$0xff]
  %v188 = vld [vmem:[%s0 + $0x540] sm:$0xff]
  %v189 = vld [vmem:[%s0 + $0x548] sm:$0xff]
  %v190 = vld [vmem:[%s0 + $0x550] sm:$0xff]
  %v191 = vld [vmem:[%s0 + $0x558] sm:$0xff]
  %v192 = vld [vmem:[%s0 + $0x560] sm:$0xff]
  %v193 = vld [vmem:[%s0 + $0x568] sm:$0xff]
  %v194 = vld [vmem:[%s0 + $0x570] sm:$0xff]
  %v195 = vld [vmem:[%s0 + $0x578] sm:$0xff]
  %v196 = vld [vmem:[%s0 + $0x580] sm:$0xff]
  %v197 = vld [vmem:[%s0 + $0x588] sm:$0xff]
  %v198 = vld [vmem:[%s0 + $0x590] sm:$0xff]
  %v199 = vld [vmem:[%s0 + $0x598] sm:$0xff]
  %v200 = vld [vmem:[%s0 + $0x5a0] sm:$0xff]
  %v201 = vld [vmem:[%s0 + $0x5a8] sm:$0xff]
  %v202 = vld [vmem:[%s0 + $0x5b0] sm:$0xff]
  %v203 = vld [vmem:[%s0 + $0x5b8] sm:$0xff]
  %v204 = vld [vmem:[%s0 + $0x5c0] sm:$0xff]
  %v205 = vld [vmem:[%s0 + $0x5c8] sm:$0xff]
  %v206 = vld [vmem:[%s0 + $0x5d0] sm:$0xff]
  %v207 = vld [vmem:[%s0 + $0x5d8] sm:$0xff]
  %v208 = vld [vmem:[%s0 + $0x5e0] sm:$0xff]
  %v209 = vld [vmem:[%s0 + $0x5e8] sm:$0xff]
  %v210 = vld [vmem:[%s0 + $0x5f0] sm:$0xff]
  %v211 = vld [vmem:[%s0 + $0x5f8] sm:$0xff]
  %v212 = vld [vmem:[%s0 + $0x600] sm:$0xff]
  %v213 = vld [vmem:[%s0 + $0x608] sm:$0xff]
  %v214 = vld [vmem:[%s0 + $0x610] sm:$0xff]
  %v215 = vld [vmem:[%s0 + $0x618] sm:$0xff]
  %v216 = vld [vmem:[%s0 + $0x620] sm:$0xff]
  %v217 = vld [vmem:[%s0 + $0x628] sm:$0xff]
  %v218 = vld [vmem:[%s0 + $0x630] sm:$0xff]
  %v219 = vld [vmem:[%s0 + $0x638] sm:$0xff]
  %v220 = vld [vmem:[%s0 + $0x640] sm:$0xff]
  %v221 = vld [vmem:[%s0 + $0x648] sm:$0xff]
  %v222 = vld [vmem:[%s0 + $0x650] sm:$0xff]
  %v223 = vld [vmem:[%s0 + $0x658] sm:$0xff]
  %v224 = vld [vmem:[%s0 + $0x660] sm:$0xff]
  %v225 = vld [vmem:[%s0 + $0x668] sm:$0xff]
  %v226 = vld [vmem:[%s0 + $0x670] sm:$0xff]
  %v227 = vld [vmem:[%s0 + $0x678] sm:$0xff]
  %v228 = vld [vmem:[%s0 + $0x680] sm:$0xff]
  %v229 = vld [vmem:[%s0 + $0x688] sm:$0xff]
  %v230 = vld [vmem:[%s0 + $0x690] sm:$0xff]
  %v231 = vld [vmem:[%s0 + $0x698] sm:$0xff]
  %v232 = vld [vmem:[%s0 + $0x6a0] sm:$0xff]
  %v233 = vld [vmem:[%s0 + $0x6a8] sm:$0xff]
  %v234 = vld [vmem:[%s0 + $0x6b0] sm:$0xff]
  %v235 = vld [vmem:[%s0 + $0x6b8] sm:$0xff]
  %v236 = vld [vmem:[%s1] sm:$0xff]
  %v237 = vld [vmem:[%s1 + $0x8] sm:$0xff]
  %v238 = vld [vmem:[%s1 + $0x10] sm:$0xff]
  %v239 = vld [vmem:[%s1 + $0x18] sm:$0xff]
  %v240 = vld [vmem:[%s1 + $0x20] sm:$0xff]
  %v241 = vld [vmem:[%s1 + $0x28] sm:$0xff]
  %v242 = vld [vmem:[%s1 + $0x30] sm:$0xff]
  %v243 = vld [vmem:[%s1 + $0x38] sm:$0xff]
  %v244 = vld [vmem:[%s1 + $0x40] sm:$0xff]
  %v245 = vld [vmem:[%s1 + $0x48] sm:$0xff]
  %v246 = vld [vmem:[%s1 + $0x50] sm:$0xff]
  %v247 = vld [vmem:[%s1 + $0x58] sm:$0xff]
  %v248 = vld [vmem:[%s1 + $0x60] sm:$0xff]
  %v249 = vld [vmem:[%s1 + $0x68] sm:$0xff]
  %v250 = vld [vmem:[%s1 + $0x70] sm:$0xff]
  %v251 = vld [vmem:[%s1 + $0x78] sm:$0xff]
  %v252 = vld [vmem:[%s1 + $0x80] sm:$0xff]
  %v253 = vld [vmem:[%s1 + $0x88] sm:$0xff]
  %v254 = vld [vmem:[%s1 + $0x90] sm:$0xff]
  %v255 = vld [vmem:[%s1 + $0x98] sm:$0xff]
  %v256 = vld [vmem:[%s1 + $0xa0] sm:$0xff]
  %v257 = vld [vmem:[%s1 + $0xa8] sm:$0xff]
  %v258 = vld [vmem:[%s1 + $0xb0] sm:$0xff]
  %v259 = vld [vmem:[%s1 + $0xb8] sm:$0xff]
  %v260 = vld [vmem:[%s1 + $0xc0] sm:$0xff]
  %v261 = vld [vmem:[%s1 + $0xc8] sm:$0xff]
  %v262 = vld [vmem:[%s1 + $0xd0] sm:$0xff]
  %v263 = vld [vmem:[%s1 + $0xd8] sm:$0xff]
  %v264 = vld [vmem:[%s1 + $0xe0] sm:$0xff]
  %v265 = vld [vmem:[%s1 + $0xe8] sm:$0xff]
  %v266 = vld [vmem:[%s1 + $0xf0] sm:$0xff]
  %v267 = vld [vmem:[%s1 + $0xf8] sm:$0xff]
  %v268 = vld [vmem:[%s1 + $0x100] sm:$0xff]
  %v269 = vld [vmem:[%s1 + $0x108] sm:$0xff]
  %v270 = vld [vmem:[%s1 + $0x110] sm:$0xff]
  %v271 = vld [vmem:[%s1 + $0x118] sm:$0xff]
  %v272 = vld [vmem:[%s1 + $0x120] sm:$0xff]
  %v273 = vld [vmem:[%s1 + $0x128] sm:$0xff]
  %v274 = vld [vmem:[%s1 + $0x130] sm:$0xff]
  %v275 = vld [vmem:[%s1 + $0x138] sm:$0xff]
  %v276 = vld [vmem:[%s1 + $0x140] sm:$0xff]
  %v277 = vld [vmem:[%s1 + $0x148] sm:$0xff]
  %v278 = vld [vmem:[%s1 + $0x150] sm:$0xff]
  %v279 = vld [vmem:[%s1 + $0x158] sm:$0xff]
  %v280 = vld [vmem:[%s1 + $0x160] sm:$0xff]
  %v281 = vld [vmem:[%s1 + $0x168] sm:$0xff]
  %v282 = vld [vmem:[%s1 + $0x170] sm:$0xff]
  %v283 = vld [vmem:[%s1 + $0x178] sm:$0xff]
  %v284 = vld [vmem:[%s1 + $0x180] sm:$0xff]
  %v285 = vld [vmem:[%s1 + $0x188] sm:$0xff]
  %v286 = vld [vmem:[%s1 + $0x190] sm:$0xff]
  %v287 = vld [vmem:[%s1 + $0x198] sm:$0xff]
  %v288 = vld [vmem:[%s1 + $0x1a0] sm:$0xff]
  %v289 = vld [vmem:[%s1 + $0x1a8] sm:$0xff]
  %v290 = vld [vmem:[%s1 + $0x1b0] sm:$0xff]
  %v291 = vld [vmem:[%s1 + $0x1b8] sm:$0xff]
  %v292 = vld [vmem:[%s1 + $0x1c0] sm:$0xff]
  %v293 = vld [vmem:[%s1 + $0x1c8] sm:$0xff]
  %v294 = vld [vmem:[%s1 + $0x1d0] sm:$0xff]
  %v295 = vld [vmem:[%s1 + $0x1d8] sm:$0xff]
  %v296 = vld [vmem:[%s1 + $0x1e0] sm:$0xff]
  %v297 = vld [vmem:[%s1 + $0x1e8] sm:$0xff]
  %v298 = vld [vmem:[%s1 + $0x1f0] sm:$0xff]
  %v299 = vld [vmem:[%s1 + $0x1f8] sm:$0xff]
  %v300 = vld [vmem:[%s2] sm:$0x1]
  %v302 = vlaneseq
  %v303 = vshrl.u32 %v302, 7
  %v304 = vsub.s32 0, %v303
  %v305 = vrot.slane %v300, %v304
  %307 = vmatprep.subr.mxu0 0.0
  %308 = vmatpush1.msra.mxu0 %v236
  %309 = vmatprep.subr.mxu0 0.0
  %310 = vmatpush1.msra.mxu0 %v237
  %311 = vmatprep.subr.mxu0 0.0
  %312 = vmatpush1.msra.mxu0 %v238
  %313 = vmatprep.subr.mxu0 0.0
  %314 = vmatpush1.msra.mxu0 %v239
  %315 = vmatprep.subr.mxu0 0.0
  %316 = vmatpush1.msra.mxu0 %v240
  %317 = vmatprep.subr.mxu0 0.0
  %318 = vmatpush1.msra.mxu0 %v241
  %319 = vmatprep.subr.mxu0 0.0
  %320 = vmatpush1.msra.mxu0 %v242
  %321 = vmatprep.subr.mxu0 0.0
  %322 = vmatpush1.msra.mxu0 %v243
  %323 = vmatprep.subr.mxu0 0.0
  %324 = vmatpush1.msra.mxu0 %v244
  %325 = vmatprep.subr.mxu0 0.0
  %326 = vmatpush1.msra.mxu0 %v245
  %327 = vmatprep.subr.mxu0 0.0
  %328 = vmatpush1.msra.mxu0 %v246
  %329 = vmatprep.subr.mxu0 0.0
  %330 = vmatpush1.msra.mxu0 %v247
  %331 = vmatprep.subr.mxu0 0.0
  %332 = vmatpush1.msra.mxu0 %v248
  %333 = vmatprep.subr.mxu0 0.0
  %334 = vmatpush1.msra.mxu0 %v249
  %335 = vmatprep.subr.mxu0 0.0
  %336 = vmatpush1.msra.mxu0 %v250
  %337 = vmatprep.subr.mxu0 0.0
  %338 = vmatpush1.msra.mxu0 %v251
  %339 = vmatprep.subr.mxu0 0.0
  %340 = vmatpush1.msra.mxu0 %v252
  %341 = vmatprep.subr.mxu0 0.0
  %342 = vmatpush1.msra.mxu0 %v253
  %343 = vmatprep.subr.mxu0 0.0
  %344 = vmatpush1.msra.mxu0 %v254
  %345 = vmatprep.subr.mxu0 0.0
  %346 = vmatpush1.msra.mxu0 %v255
  %347 = vmatprep.subr.mxu0 0.0
  %348 = vmatpush1.msra.mxu0 %v256
  %349 = vmatprep.subr.mxu0 0.0
  %350 = vmatpush1.msra.mxu0 %v257
  %351 = vmatprep.subr.mxu0 0.0
  %352 = vmatpush1.msra.mxu0 %v258
  %353 = vmatprep.subr.mxu0 0.0
  %354 = vmatpush1.msra.mxu0 %v259
  %355 = vmatprep.subr.mxu0 0.0
  %356 = vmatpush1.msra.mxu0 %v260
  %357 = vmatprep.subr.mxu0 0.0
  %358 = vmatpush1.msra.mxu0 %v261
  %359 = vmatprep.subr.mxu0 0.0
  %360 = vmatpush1.msra.mxu0 %v262
  %361 = vmatprep.subr.mxu0 0.0
  %362 = vmatpush1.msra.mxu0 %v263
  %363 = vmatprep.subr.mxu0 0.0
  %364 = vmatpush1.msra.mxu0 %v264
  %365 = vmatprep.subr.mxu0 0.0
  %366 = vmatpush1.msra.mxu0 %v265
  %367 = vmatprep.subr.mxu0 0.0
  %368 = vmatpush1.msra.mxu0 %v266
  %369 = vmatprep.subr.mxu0 0.0
  %370 = vmatpush1.msra.mxu0 %v267
  %371 = vmatprep.mubr.f32.mxu0 %v21
  %372 = vmatmul.mubr.f32.gmra.mrb[0].mxu0 %v20
  %v373 = vpop.f32.mrb[0].mxu0
  %v374 = vadd.f32 %v305, %v373
  %v375 = vpop.f32.mrb[0].mxu0
  %376 = vmatprep.mubr.f32.mxu0 %v25
  %377 = vmatmul.mubr.f32.gmra.mrb[0].mxu0 %v24
  %v378 = vpop.f32.mrb[0].mxu0
  %v379 = vadd.f32 %v305, %v378
  %v380 = vpop.f32.mrb[0].mxu0
  %381 = vmatprep.mubr.f32.mxu0 %v29
  %382 = vmatmul.mubr.f32.gmra.mrb[0].mxu0 %v28
  %v383 = vpop.f32.mrb[0].mxu0
  %v384 = vadd.f32 %v305, %v383
  %v385 = vpop.f32.mrb[0].mxu0
  %386 = vmatprep.mubr.f32.mxu0 %v33
  %387 = vmatmul.mubr.f32.gmra.mrb[0].mxu0 %v32
  %v388 = vpop.f32.mrb[0].mxu0
  %v389 = vadd.f32 %v305, %v388
  %v390 = vpop.f32.mrb[0].mxu0
  %391 = vmatprep.mubr.f32.mxu0 %v37
  %392 = vmatmul.mubr.f32.gmra.mrb[0].mxu0 %v36
  %v393 = vpop.f32.mrb[0].mxu0
  %v394 = vadd.f32 %v305, %v393
  %v395 = vpop.f32.mrb[0].mxu0
  %396 = vmatprep.mubr.f32.mxu0 %v41
  %397 = vmatmul.mubr.f32.gmra.mrb[0].mxu0 %v40
  %v398 = vpop.f32.mrb[0].mxu0
  %v399 = vadd.f32 %v305, %v398
  %v400 = vpop.f32.mrb[0].mxu0
  %401 = vmatprep.mubr.f32.mxu0 %v45
  %402 = vmatmul.mubr.f32.gmra.mrb[0].mxu0 %v44
  %v403 = vpop.f32.mrb[0].mxu0
  %v404 = vadd.f32 %v305, %v403
  %v405 = vpop.f32.mrb[0].mxu0
  %406 = vmatprep.mubr.f32.mxu0 %v49
  %407 = vmatmul.mubr.f32.gmra.mrb[0].mxu0 %v48
  %v408 = vpop.f32.mrb[0].mxu0
  %v409 = vadd.f32 %v305, %v408
  %v410 = vpop.f32.mrb[0].mxu0
  %411 = vmatprep.mubr.f32.mxu0 %v53
  %412 = vmatmul.mubr.f32.gmra.mrb[0].mxu0 %v52
  %v413 = vpop.f32.mrb[0].mxu0
  %v414 = vadd.f32 %v305, %v413
  %v415 = vpop.f32.mrb[0].mxu0
  %416 = vmatprep.mubr.f32.mxu0 %v57
  %417 = vmatmul.mubr.f32.gmra.mrb[0].mxu0 %v56
  %v418 = vpop.f32.mrb[0].mxu0
  %v419 = vadd.f32 %v305, %v418
  %v420 = vpop.f32.mrb[0].mxu0
  %421 = vmatprep.mubr.f32.mxu0 %v61
  %422 = vmatmul.mubr.f32.gmra.mrb[0].mxu0 %v60
  %v423 = vpop.f32.mrb[0].mxu0
  %v424 = vadd.f32 %v305, %v423
  %v425 = vpop.f32.mrb[0].mxu0
  %426 = vmatprep.mubr.f32.mxu0 %v65
  %427 = vmatmul.mubr.f32.gmra.mrb[0].mxu0 %v64
  %v428 = vpop.f32.mrb[0].mxu0
  %v429 = vadd.f32 %v305, %v428
  %v430 = vpop.f32.mrb[0].mxu0
  %431 = vmatprep.mubr.f32.mxu0 %v69
  %432 = vmatmul.mubr.f32.gmra.mrb[0].mxu0 %v68
  %v433 = vpop.f32.mrb[0].mxu0
  %v434 = vadd.f32 %v305, %v433
  %v435 = vpop.f32.mrb[0].mxu0
  %436 = vmatprep.mubr.f32.mxu0 %v73
  %437 = vmatmul.mubr.f32.gmra.mrb[0].mxu0 %v72
  %v438 = vpop.f32.mrb[0].mxu0
  %v439 = vadd.f32 %v305, %v438
  %v440 = vpop.f32.mrb[0].mxu0
  %441 = vmatprep.mubr.f32.mxu0 %v77
  %442 = vmatmul.mubr.f32.gmra.mrb[0].mxu0 %v76
  %v443 = vpop.f32.mrb[0].mxu0
  %v444 = vadd.f32 %v305, %v443
  %v445 = vpop.f32.mrb[0].mxu0
  %446 = vmatprep.mubr.f32.mxu0 %v81
  %447 = vmatmul.mubr.f32.gmra.mrb[0].mxu0 %v80
  %v448 = vpop.f32.mrb[0].mxu0
  %v449 = vadd.f32 %v305, %v448
  %v450 = vpop.f32.mrb[0].mxu0
  %451 = vmatprep.mubr.f32.mxu0 %v85
  %452 = vmatmul.mubr.f32.gmra.mrb[0].mxu0 %v84
  %v453 = vpop.f32.mrb[0].mxu0
  %v454 = vadd.f32 %v305, %v453
  %v455 = vpop.f32.mrb[0].mxu0
  %456 = vmatprep.mubr.f32.mxu0 %v89
  %457 = vmatmul.mubr.f32.gmra.mrb[0].mxu0 %v88
  %v458 = vpop.f32.mrb[0].mxu0
  %v459 = vadd.f32 %v305, %v458
  %v460 = vpop.f32.mrb[0].mxu0
  %461 = vmatprep.mubr.f32.mxu0 %v93
  %462 = vmatmul.mubr.f32.gmra.mrb[0].mxu0 %v92
  %v463 = vpop.f32.mrb[0].mxu0
  %v464 = vadd.f32 %v305, %v463
  %v465 = vpop.f32.mrb[0].mxu0
  %466 = vmatprep.mubr.f32.mxu0 %v97
  %467 = vmatmul.mubr.f32.gmra.mrb[0].mxu0 %v96
  %v468 = vpop.f32.mrb[0].mxu0
  %v469 = vadd.f32 %v305, %v468
  %v470 = vpop.f32.mrb[0].mxu0
  %471 = vmatprep.mubr.f32.mxu0 %v101
  %472 = vmatmul.mubr.f32.gmra.mrb[0].mxu0 %v100
  %v473 = vpop.f32.mrb[0].mxu0
  %v474 = vadd.f32 %v305, %v473
  %v475 = vpop.f32.mrb[0].mxu0
  %476 = vmatprep.mubr.f32.mxu0 %v105
  %477 = vmatmul.mubr.f32.gmra.mrb[0].mxu0 %v104
  %v478 = vpop.f32.mrb[0].mxu0
  %v479 = vadd.f32 %v305, %v478
  %v480 = vpop.f32.mrb[0].mxu0
  %481 = vmatprep.mubr.f32.mxu0 %v109
  %482 = vmatmul.mubr.f32.gmra.mrb[0].mxu0 %v108
  %v483 = vpop.f32.mrb[0].mxu0
  %v484 = vadd.f32 %v305, %v483
  %v485 = vpop.f32.mrb[0].mxu0
  %486 = vmatprep.mubr.f32.mxu0 %v113
  %487 = vmatmul.mubr.f32.gmra.mrb[0].mxu0 %v112
  %v488 = vpop.f32.mrb[0].mxu0
  %v489 = vadd.f32 %v305, %v488
  %v490 = vpop.f32.mrb[0].mxu0
  %491 = vmatprep.mubr.f32.mxu0 %v117
  %492 = vmatmul.mubr.f32.gmra.mrb[0].mxu0 %v116
  %v493 = vpop.f32.mrb[0].mxu0
  %v494 = vadd.f32 %v305, %v493
  %v495 = vpop.f32.mrb[0].mxu0
  %496 = vmatprep.mubr.f32.mxu0 %v121
  %497 = vmatmul.mubr.f32.gmra.mrb[0].mxu0 %v120
  %v498 = vpop.f32.mrb[0].mxu0
  %v499 = vadd.f32 %v305, %v498
  %v500 = vpop.f32.mrb[0].mxu0
  %501 = vmatprep.mubr.f32.mxu0 %v125
  %502 = vmatmul.mubr.f32.gmra.mrb[0].mxu0 %v124
  %v503 = vpop.f32.mrb[0].mxu0
  %v504 = vadd.f32 %v305, %v503
  %v505 = vpop.f32.mrb[0].mxu0
  %506 = vmatprep.mubr.f32.mxu0 %v129
  %507 = vmatmul.mubr.f32.gmra.mrb[0].mxu0 %v128
  %v508 = vpop.f32.mrb[0].mxu0
  %v509 = vadd.f32 %v305, %v508
  %v510 = vpop.f32.mrb[0].mxu0
  %511 = vmatprep.mubr.f32.mxu0 %v133
  %512 = vmatmul.mubr.f32.gmra.mrb[0].mxu0 %v132
  %v513 = vpop.f32.mrb[0].mxu0
  %v514 = vadd.f32 %v305, %v513
  %v515 = vpop.f32.mrb[0].mxu0
  %516 = vmatprep.mubr.f32.mxu0 %v137
  %517 = vmatmul.mubr.f32.gmra.mrb[0].mxu0 %v136
  %v518 = vpop.f32.mrb[0].mxu0
  %v519 = vadd.f32 %v305, %v518
  %v520 = vpop.f32.mrb[0].mxu0
  %521 = vmatprep.mubr.f32.mxu0 %v141
  %522 = vmatmul.mubr.f32.gmra.mrb[0].mxu0 %v140
  %v523 = vpop.f32.mrb[0].mxu0
  %v524 = vadd.f32 %v305, %v523
  %v525 = vpop.f32.mrb[0].mxu0
  %526 = vmatprep.mubr.f32.mxu0 %v145
  %527 = vmatmul.mubr.f32.gmra.mrb[0].mxu0 %v144
  %v528 = vpop.f32.mrb[0].mxu0
  %v529 = vadd.f32 %v305, %v528
  %v530 = vpop.f32.mrb[0].mxu0
  %531 = vmatprep.mubr.f32.mxu0 %v149
  %532 = vmatmul.mubr.f32.gmra.mrb[0].mxu0 %v148
  %v533 = vpop.f32.mrb[0].mxu0
  %v534 = vadd.f32 %v305, %v533
  %v535 = vpop.f32.mrb[0].mxu0
  %536 = vmatprep.mubr.f32.mxu0 %v153
  %537 = vmatmul.mubr.f32.gmra.mrb[0].mxu0 %v152
  %v538 = vpop.f32.mrb[0].mxu0
  %v539 = vadd.f32 %v305, %v538
  %v540 = vpop.f32.mrb[0].mxu0
  %541 = vmatprep.mubr.f32.mxu0 %v157
  %542 = vmatmul.mubr.f32.gmra.mrb[0].mxu0 %v156
  %v543 = vpop.f32.mrb[0].mxu0
  %v544 = vadd.f32 %v305, %v543
  %v545 = vpop.f32.mrb[0].mxu0
  %546 = vmatprep.mubr.f32.mxu0 %v161
  %547 = vmatmul.mubr.f32.gmra.mrb[0].mxu0 %v160
  %v548 = vpop.f32.mrb[0].mxu0
  %v549 = vadd.f32 %v305, %v548
  %v550 = vpop.f32.mrb[0].mxu0
  %551 = vmatprep.mubr.f32.mxu0 %v165
  %552 = vmatmul.mubr.f32.gmra.mrb[0].mxu0 %v164
  %v553 = vpop.f32.mrb[0].mxu0
  %v554 = vadd.f32 %v305, %v553
  %v555 = vpop.f32.mrb[0].mxu0
  %556 = vmatprep.mubr.f32.mxu0 %v169
  %557 = vmatmul.mubr.f32.gmra.mrb[0].mxu0 %v168
  %v558 = vpop.f32.mrb[0].mxu0
  %v559 = vadd.f32 %v305, %v558
  %v560 = vpop.f32.mrb[0].mxu0
  %561 = vmatprep.mubr.f32.mxu0 %v173
  %562 = vmatmul.mubr.f32.gmra.mrb[0].mxu0 %v172
  %v563 = vpop.f32.mrb[0].mxu0
  %v564 = vadd.f32 %v305, %v563
  %v565 = vpop.f32.mrb[0].mxu0
  %566 = vmatprep.mubr.f32.mxu0 %v177
  %567 = vmatmul.mubr.f32.gmra.mrb[0].mxu0 %v176
  %v568 = vpop.f32.mrb[0].mxu0
  %v569 = vadd.f32 %v305, %v568
  %v570 = vpop.f32.mrb[0].mxu0
  %571 = vmatprep.mubr.f32.mxu0 %v181
  %572 = vmatmul.mubr.f32.gmra.mrb[0].mxu0 %v180
  %v573 = vpop.f32.mrb[0].mxu0
  %v574 = vadd.f32 %v305, %v573
  %v575 = vpop.f32.mrb[0].mxu0
  %576 = vmatprep.mubr.f32.mxu0 %v185
  %577 = vmatmul.mubr.f32.gmra.mrb[0].mxu0 %v184
  %v578 = vpop.f32.mrb[0].mxu0
  %v579 = vadd.f32 %v305, %v578
  %v580 = vpop.f32.mrb[0].mxu0
  %581 = vmatprep.mubr.f32.mxu0 %v189
  %582 = vmatmul.mubr.f32.gmra.mrb[0].mxu0 %v188
  %v583 = vpop.f32.mrb[0].mxu0
  %v584 = vadd.f32 %v305, %v583
  %v585 = vpop.f32.mrb[0].mxu0
  %586 = vmatprep.mubr.f32.mxu0 %v193
  %587 = vmatmul.mubr.f32.gmra.mrb[0].mxu0 %v192
  %v588 = vpop.f32.mrb[0].mxu0
  %v589 = vadd.f32 %v305, %v588
  %v590 = vpop.f32.mrb[0].mxu0
  %591 = vmatprep.mubr.f32.mxu0 %v197
  %592 = vmatmul.mubr.f32.gmra.mrb[0].mxu0 %v196
  %v593 = vpop.f32.mrb[0].mxu0
  %v594 = vadd.f32 %v305, %v593
  %v595 = vpop.f32.mrb[0].mxu0
  %596 = vmatprep.mubr.f32.mxu0 %v201
  %597 = vmatmul.mubr.f32.gmra.mrb[0].mxu0 %v200
  %v598 = vpop.f32.mrb[0].mxu0
  %v599 = vadd.f32 %v305, %v598
  %v600 = vpop.f32.mrb[0].mxu0
  %601 = vmatprep.mubr.f32.mxu0 %v205
  %602 = vmatmul.mubr.f32.gmra.mrb[0].mxu0 %v204
  %v603 = vpop.f32.mrb[0].mxu0
  %v604 = vadd.f32 %v305, %v603
  %v605 = vpop.f32.mrb[0].mxu0
  %606 = vmatprep.mubr.f32.mxu0 %v209
  %607 = vmatmul.mubr.f32.gmra.mrb[0].mxu0 %v208
  %v608 = vpop.f32.mrb[0].mxu0
  %v609 = vadd.f32 %v305, %v608
  %v610 = vpop.f32.mrb[0].mxu0
  %611 = vmatprep.mubr.f32.mxu0 %v213
  %612 = vmatmul.mubr.f32.gmra.mrb[0].mxu0 %v212
  %v613 = vpop.f32.mrb[0].mxu0
  %v614 = vadd.f32 %v305, %v613
  %v615 = vpop.f32.mrb[0].mxu0
  %616 = vmatprep.mubr.f32.mxu0 %v217
  %617 = vmatmul.mubr.f32.gmra.mrb[0].mxu0 %v216
  %v618 = vpop.f32.mrb[0].mxu0
  %v619 = vadd.f32 %v305, %v618
  %v620 = vpop.f32.mrb[0].mxu0
  %621 = vmatprep.mubr.f32.mxu0 %v221
  %622 = vmatmul.mubr.f32.gmra.mrb[0].mxu0 %v220
  %v623 = vpop.f32.mrb[0].mxu0
  %v624 = vadd.f32 %v305, %v623
  %v625 = vpop.f32.mrb[0].mxu0
  %626 = vmatprep.mubr.f32.mxu0 %v225
  %627 = vmatmul.mubr.f32.gmra.mrb[0].mxu0 %v224
  %v628 = vpop.f32.mrb[0].mxu0
  %v629 = vadd.f32 %v305, %v628
  %v630 = vpop.f32.mrb[0].mxu0
  %631 = vmatprep.mubr.f32.mxu0 %v229
  %632 = vmatmul.mubr.f32.gmra.mrb[0].mxu0 %v228
  %v633 = vpop.f32.mrb[0].mxu0
  %v634 = vadd.f32 %v305, %v633
  %v635 = vpop.f32.mrb[0].mxu0
  %636 = vmatprep.mubr.f32.mxu0 %v233
  %637 = vmatmul.mubr.f32.gmra.mrb[0].mxu0 %v232
  %v638 = vpop.f32.mrb[0].mxu0
  %v639 = vadd.f32 %v305, %v638
  %v640 = vpop.f32.mrb[0].mxu0
  %641 = vdwg.mxu0
  %642 = vmatprep.subr.mxu0 0.0
  %643 = vmatpush1.msra.mxu0 %v268
  %644 = vmatprep.subr.mxu0 0.0
  %645 = vmatpush1.msra.mxu0 %v269
  %646 = vmatprep.subr.mxu0 0.0
  %647 = vmatpush1.msra.mxu0 %v270
  %648 = vmatprep.subr.mxu0 0.0
  %649 = vmatpush1.msra.mxu0 %v271
  %650 = vmatprep.subr.mxu0 0.0
  %651 = vmatpush1.msra.mxu0 %v272
  %652 = vmatprep.subr.mxu0 0.0
  %653 = vmatpush1.msra.mxu0 %v273
  %654 = vmatprep.subr.mxu0 0.0
  %655 = vmatpush1.msra.mxu0 %v274
  %656 = vmatprep.subr.mxu0 0.0
  %657 = vmatpush1.msra.mxu0 %v275
  %658 = vmatprep.subr.mxu0 0.0
  %659 = vmatpush1.msra.mxu0 %v276
  %660 = vmatprep.subr.mxu0 0.0
  %661 = vmatpush1.msra.mxu0 %v277
  %662 = vmatprep.subr.mxu0 0.0
  %663 = vmatpush1.msra.mxu0 %v278
  %664 = vmatprep.subr.mxu0 0.0
  %665 = vmatpush1.msra.mxu0 %v279
  %666 = vmatprep.subr.mxu0 0.0
  %667 = vmatpush1.msra.mxu0 %v280
  %668 = vmatprep.subr.mxu0 0.0
  %669 = vmatpush1.msra.mxu0 %v281
  %670 = vmatprep.subr.mxu0 0.0
  %671 = vmatpush1.msra.mxu0 %v282
  %672 = vmatprep.subr.mxu0 0.0
  %673 = vmatpush1.msra.mxu0 %v283
  %674 = vmatprep.subr.mxu0 0.0
  %675 = vmatpush1.msra.mxu0 %v284
  %676 = vmatprep.subr.mxu0 0.0
  %677 = vmatpush1.msra.mxu0 %v285
  %678 = vmatprep.subr.mxu0 0.0
  %679 = vmatpush1.msra.mxu0 %v286
  %680 = vmatprep.subr.mxu0 0.0
  %681 = vmatpush1.msra.mxu0 %v287
  %682 = vmatprep.subr.mxu0 0.0
  %683 = vmatpush1.msra.mxu0 %v288
  %684 = vmatprep.subr.mxu0 0.0
  %685 = vmatpush1.msra.mxu0 %v289
  %686 = vmatprep.subr.mxu0 0.0
  %687 = vmatpush1.msra.mxu0 %v290
  %688 = vmatprep.subr.mxu0 0.0
  %689 = vmatpush1.msra.mxu0 %v291
  %690 = vmatprep.subr.mxu0 0.0
  %691 = vmatpush1.msra.mxu0 %v292
  %692 = vmatprep.subr.mxu0 0.0
  %693 = vmatpush1.msra.mxu0 %v293
  %694 = vmatprep.subr.mxu0 0.0
  %695 = vmatpush1.msra.mxu0 %v294
  %696 = vmatprep.subr.mxu0 0.0
  %697 = vmatpush1.msra.mxu0 %v295
  %698 = vmatprep.subr.mxu0 0.0
  %699 = vmatpush1.msra.mxu0 %v296
  %700 = vmatprep.subr.mxu0 0.0
  %701 = vmatpush1.msra.mxu0 %v297
  %702 = vmatprep.subr.mxu0 0.0
  %703 = vmatpush1.msra.mxu0 %v298
  %704 = vmatprep.subr.mxu0 0.0
  %705 = vmatpush1.msra.mxu0 %v299
  %706 = vmatprep.mubr.f32.mxu0 %v23
  %707 = vmatmul.mubr.f32.gmra.mrb[0].mxu0 %v22
  %v708 = vpop.f32.mrb[0].mxu0
  %v709 = vadd.f32 %v374, %v708
  %v710 = vpop.f32.mrb[0].mxu0
  %711 = vmatprep.mubr.f32.mxu0 %v27
  %712 = vmatmul.mubr.f32.gmra.mrb[0].mxu0 %v26
  %v713 = vpop.f32.mrb[0].mxu0
  %v714 = vadd.f32 %v379, %v713
  %v715 = vpop.f32.mrb[0].mxu0
  %716 = vmatprep.mubr.f32.mxu0 %v31
  %717 = vmatmul.mubr.f32.gmra.mrb[0].mxu0 %v30
  %v718 = vpop.f32.mrb[0].mxu0
  %v719 = vadd.f32 %v384, %v718
  %v720 = vpop.f32.mrb[0].mxu0
  %721 = vmatprep.mubr.f32.mxu0 %v35
  %722 = vmatmul.mubr.f32.gmra.mrb[0].mxu0 %v34
  %v723 = vpop.f32.mrb[0].mxu0
  %v724 = vadd.f32 %v389, %v723
  %v725 = vpop.f32.mrb[0].mxu0
  %726 = vmatprep.mubr.f32.mxu0 %v39
  %727 = vmatmul.mubr.f32.gmra.mrb[0].mxu0 %v38
  %v728 = vpop.f32.mrb[0].mxu0
  %v729 = vadd.f32 %v394, %v728
  %v730 = vpop.f32.mrb[0].mxu0
  %731 = vmatprep.mubr.f32.mxu0 %v43
  %732 = vmatmul.mubr.f32.gmra.mrb[0].mxu0 %v42
  %v733 = vpop.f32.mrb[0].mxu0
  %v734 = vadd.f32 %v399, %v733
  %v735 = vpop.f32.mrb[0].mxu0
  %736 = vmatprep.mubr.f32.mxu0 %v47
  %737 = vmatmul.mubr.f32.gmra.mrb[0].mxu0 %v46
  %v738 = vpop.f32.mrb[0].mxu0
  %v739 = vadd.f32 %v404, %v738
  %v740 = vpop.f32.mrb[0].mxu0
  %741 = vmatprep.mubr.f32.mxu0 %v51
  %742 = vmatmul.mubr.f32.gmra.mrb[0].mxu0 %v50
  %v743 = vpop.f32.mrb[0].mxu0
  %v744 = vadd.f32 %v409, %v743
  %v745 = vpop.f32.mrb[0].mxu0
  %746 = vmatprep.mubr.f32.mxu0 %v55
  %747 = vmatmul.mubr.f32.gmra.mrb[0].mxu0 %v54
  %v748 = vpop.f32.mrb[0].mxu0
  %v749 = vadd.f32 %v414, %v748
  %v750 = vpop.f32.mrb[0].mxu0
  %751 = vmatprep.mubr.f32.mxu0 %v59
  %752 = vmatmul.mubr.f32.gmra.mrb[0].mxu0 %v58
  %v753 = vpop.f32.mrb[0].mxu0
  %v754 = vadd.f32 %v419, %v753
  %v755 = vpop.f32.mrb[0].mxu0
  %756 = vmatprep.mubr.f32.mxu0 %v63
  %757 = vmatmul.mubr.f32.gmra.mrb[0].mxu0 %v62
  %v758 = vpop.f32.mrb[0].mxu0
  %v759 = vadd.f32 %v424, %v758
  %v760 = vpop.f32.mrb[0].mxu0
  %761 = vmatprep.mubr.f32.mxu0 %v67
  %762 = vmatmul.mubr.f32.gmra.mrb[0].mxu0 %v66
  %v763 = vpop.f32.mrb[0].mxu0
  %v764 = vadd.f32 %v429, %v763
  %v765 = vpop.f32.mrb[0].mxu0
  %766 = vmatprep.mubr.f32.mxu0 %v71
  %767 = vmatmul.mubr.f32.gmra.mrb[0].mxu0 %v70
  %v768 = vpop.f32.mrb[0].mxu0
  %v769 = vadd.f32 %v434, %v768
  %v770 = vpop.f32.mrb[0].mxu0
  %771 = vmatprep.mubr.f32.mxu0 %v75
  %772 = vmatmul.mubr.f32.gmra.mrb[0].mxu0 %v74
  %v773 = vpop.f32.mrb[0].mxu0
  %v774 = vadd.f32 %v439, %v773
  %v775 = vpop.f32.mrb[0].mxu0
  %776 = vmatprep.mubr.f32.mxu0 %v79
  %777 = vmatmul.mubr.f32.gmra.mrb[0].mxu0 %v78
  %v778 = vpop.f32.mrb[0].mxu0
  %v779 = vadd.f32 %v444, %v778
  %v780 = vpop.f32.mrb[0].mxu0
  %781 = vmatprep.mubr.f32.mxu0 %v83
  %782 = vmatmul.mubr.f32.gmra.mrb[0].mxu0 %v82
  %v783 = vpop.f32.mrb[0].mxu0
  %v784 = vadd.f32 %v449, %v783
  %v785 = vpop.f32.mrb[0].mxu0
  %786 = vmatprep.mubr.f32.mxu0 %v87
  %787 = vmatmul.mubr.f32.gmra.mrb[0].mxu0 %v86
  %v788 = vpop.f32.mrb[0].mxu0
  %v789 = vadd.f32 %v454, %v788
  %v790 = vpop.f32.mrb[0].mxu0
  %791 = vmatprep.mubr.f32.mxu0 %v91
  %792 = vmatmul.mubr.f32.gmra.mrb[0].mxu0 %v90
  %v793 = vpop.f32.mrb[0].mxu0
  %v794 = vadd.f32 %v459, %v793
  %v795 = vpop.f32.mrb[0].mxu0
  %796 = vmatprep.mubr.f32.mxu0 %v95
  %797 = vmatmul.mubr.f32.gmra.mrb[0].mxu0 %v94
  %v798 = vpop.f32.mrb[0].mxu0
  %v799 = vadd.f32 %v464, %v798
  %v800 = vpop.f32.mrb[0].mxu0
  %801 = vmatprep.mubr.f32.mxu0 %v99
  %802 = vmatmul.mubr.f32.gmra.mrb[0].mxu0 %v98
  %v803 = vpop.f32.mrb[0].mxu0
  %v804 = vadd.f32 %v469, %v803
  %v805 = vpop.f32.mrb[0].mxu0
  %806 = vmatprep.mubr.f32.mxu0 %v103
  %807 = vmatmul.mubr.f32.gmra.mrb[0].mxu0 %v102
  %v808 = vpop.f32.mrb[0].mxu0
  %v809 = vadd.f32 %v474, %v808
  %v810 = vpop.f32.mrb[0].mxu0
  %811 = vmatprep.mubr.f32.mxu0 %v107
  %812 = vmatmul.mubr.f32.gmra.mrb[0].mxu0 %v106
  %v813 = vpop.f32.mrb[0].mxu0
  %v814 = vadd.f32 %v479, %v813
  %v815 = vpop.f32.mrb[0].mxu0
  %816 = vmatprep.mubr.f32.mxu0 %v111
  %817 = vmatmul.mubr.f32.gmra.mrb[0].mxu0 %v110
  %v818 = vpop.f32.mrb[0].mxu0
  %v819 = vadd.f32 %v484, %v818
  %v820 = vpop.f32.mrb[0].mxu0
  %821 = vmatprep.mubr.f32.mxu0 %v115
  %822 = vmatmul.mubr.f32.gmra.mrb[0].mxu0 %v114
  %v823 = vpop.f32.mrb[0].mxu0
  %v824 = vadd.f32 %v489, %v823
  %v825 = vpop.f32.mrb[0].mxu0
  %826 = vmatprep.mubr.f32.mxu0 %v119
  %827 = vmatmul.mubr.f32.gmra.mrb[0].mxu0 %v118
  %v828 = vpop.f32.mrb[0].mxu0
  %v829 = vadd.f32 %v494, %v828
  %v830 = vpop.f32.mrb[0].mxu0
  %831 = vmatprep.mubr.f32.mxu0 %v123
  %832 = vmatmul.mubr.f32.gmra.mrb[0].mxu0 %v122
  %v833 = vpop.f32.mrb[0].mxu0
  %v834 = vadd.f32 %v499, %v833
  %v835 = vpop.f32.mrb[0].mxu0
  %836 = vmatprep.mubr.f32.mxu0 %v127
  %837 = vmatmul.mubr.f32.gmra.mrb[0].mxu0 %v126
  %v838 = vpop.f32.mrb[0].mxu0
  %v839 = vadd.f32 %v504, %v838
  %v840 = vpop.f32.mrb[0].mxu0
  %841 = vmatprep.mubr.f32.mxu0 %v131
  %842 = vmatmul.mubr.f32.gmra.mrb[0].mxu0 %v130
  %v843 = vpop.f32.mrb[0].mxu0
  %v844 = vadd.f32 %v509, %v843
  %v845 = vpop.f32.mrb[0].mxu0
  %846 = vmatprep.mubr.f32.mxu0 %v135
  %847 = vmatmul.mubr.f32.gmra.mrb[0].mxu0 %v134
  %v848 = vpop.f32.mrb[0].mxu0
  %v849 = vadd.f32 %v514, %v848
  %v850 = vpop.f32.mrb[0].mxu0
  %851 = vmatprep.mubr.f32.mxu0 %v139
  %852 = vmatmul.mubr.f32.gmra.mrb[0].mxu0 %v138
  %v853 = vpop.f32.mrb[0].mxu0
  %v854 = vadd.f32 %v519, %v853
  %v855 = vpop.f32.mrb[0].mxu0
  %856 = vmatprep.mubr.f32.mxu0 %v143
  %857 = vmatmul.mubr.f32.gmra.mrb[0].mxu0 %v142
  %v858 = vpop.f32.mrb[0].mxu0
  %v859 = vadd.f32 %v524, %v858
  %v860 = vpop.f32.mrb[0].mxu0
  %861 = vmatprep.mubr.f32.mxu0 %v147
  %862 = vmatmul.mubr.f32.gmra.mrb[0].mxu0 %v146
  %v863 = vpop.f32.mrb[0].mxu0
  %v864 = vadd.f32 %v529, %v863
  %v865 = vpop.f32.mrb[0].mxu0
  %866 = vmatprep.mubr.f32.mxu0 %v151
  %867 = vmatmul.mubr.f32.gmra.mrb[0].mxu0 %v150
  %v868 = vpop.f32.mrb[0].mxu0
  %v869 = vadd.f32 %v534, %v868
  %v870 = vpop.f32.mrb[0].mxu0
  %871 = vmatprep.mubr.f32.mxu0 %v155
  %872 = vmatmul.mubr.f32.gmra.mrb[0].mxu0 %v154
  %v873 = vpop.f32.mrb[0].mxu0
  %v874 = vadd.f32 %v539, %v873
  %v875 = vpop.f32.mrb[0].mxu0
  %876 = vmatprep.mubr.f32.mxu0 %v159
  %877 = vmatmul.mubr.f32.gmra.mrb[0].mxu0 %v158
  %v878 = vpop.f32.mrb[0].mxu0
  %v879 = vadd.f32 %v544, %v878
  %v880 = vpop.f32.mrb[0].mxu0
  %881 = vmatprep.mubr.f32.mxu0 %v163
  %882 = vmatmul.mubr.f32.gmra.mrb[0].mxu0 %v162
  %v883 = vpop.f32.mrb[0].mxu0
  %v884 = vadd.f32 %v549, %v883
  %v885 = vpop.f32.mrb[0].mxu0
  %886 = vmatprep.mubr.f32.mxu0 %v167
  %887 = vmatmul.mubr.f32.gmra.mrb[0].mxu0 %v166
  %v888 = vpop.f32.mrb[0].mxu0
  %v889 = vadd.f32 %v554, %v888
  %v890 = vpop.f32.mrb[0].mxu0
  %891 = vmatprep.mubr.f32.mxu0 %v171
  %892 = vmatmul.mubr.f32.gmra.mrb[0].mxu0 %v170
  %v893 = vpop.f32.mrb[0].mxu0
  %v894 = vadd.f32 %v559, %v893
  %v895 = vpop.f32.mrb[0].mxu0
  %896 = vmatprep.mubr.f32.mxu0 %v175
  %897 = vmatmul.mubr.f32.gmra.mrb[0].mxu0 %v174
  %v898 = vpop.f32.mrb[0].mxu0
  %v899 = vadd.f32 %v564, %v898
  %v900 = vpop.f32.mrb[0].mxu0
  %901 = vmatprep.mubr.f32.mxu0 %v179
  %902 = vmatmul.mubr.f32.gmra.mrb[0].mxu0 %v178
  %v903 = vpop.f32.mrb[0].mxu0
  %v904 = vadd.f32 %v569, %v903
  %v905 = vpop.f32.mrb[0].mxu0
  %906 = vmatprep.mubr.f32.mxu0 %v183
  %907 = vmatmul.mubr.f32.gmra.mrb[0].mxu0 %v182
  %v908 = vpop.f32.mrb[0].mxu0
  %v909 = vadd.f32 %v574, %v908
  %v910 = vpop.f32.mrb[0].mxu0
  %911 = vmatprep.mubr.f32.mxu0 %v187
  %912 = vmatmul.mubr.f32.gmra.mrb[0].mxu0 %v186
  %v913 = vpop.f32.mrb[0].mxu0
  %v914 = vadd.f32 %v579, %v913
  %v915 = vpop.f32.mrb[0].mxu0
  %916 = vmatprep.mubr.f32.mxu0 %v191
  %917 = vmatmul.mubr.f32.gmra.mrb[0].mxu0 %v190
  %v918 = vpop.f32.mrb[0].mxu0
  %v919 = vadd.f32 %v584, %v918
  %v920 = vpop.f32.mrb[0].mxu0
  %921 = vmatprep.mubr.f32.mxu0 %v195
  %922 = vmatmul.mubr.f32.gmra.mrb[0].mxu0 %v194
  %v923 = vpop.f32.mrb[0].mxu0
  %v924 = vadd.f32 %v589, %v923
  %v925 = vpop.f32.mrb[0].mxu0
  %926 = vmatprep.mubr.f32.mxu0 %v199
  %927 = vmatmul.mubr.f32.gmra.mrb[0].mxu0 %v198
  %v928 = vpop.f32.mrb[0].mxu0
  %v929 = vadd.f32 %v594, %v928
  %v930 = vpop.f32.mrb[0].mxu0
  %931 = vmatprep.mubr.f32.mxu0 %v203
  %932 = vmatmul.mubr.f32.gmra.mrb[0].mxu0 %v202
  %v933 = vpop.f32.mrb[0].mxu0
  %v934 = vadd.f32 %v599, %v933
  %v935 = vpop.f32.mrb[0].mxu0
  %936 = vmatprep.mubr.f32.mxu0 %v207
  %937 = vmatmul.mubr.f32.gmra.mrb[0].mxu0 %v206
  %v938 = vpop.f32.mrb[0].mxu0
  %v939 = vadd.f32 %v604, %v938
  %v940 = vpop.f32.mrb[0].mxu0
  %941 = vmatprep.mubr.f32.mxu0 %v211
  %942 = vmatmul.mubr.f32.gmra.mrb[0].mxu0 %v210
  %v943 = vpop.f32.mrb[0].mxu0
  %v944 = vadd.f32 %v609, %v943
  %v945 = vpop.f32.mrb[0].mxu0
  %946 = vmatprep.mubr.f32.mxu0 %v215
  %947 = vmatmul.mubr.f32.gmra.mrb[0].mxu0 %v214
  %v948 = vpop.f32.mrb[0].mxu0
  %v949 = vadd.f32 %v614, %v948
  %v950 = vpop.f32.mrb[0].mxu0
  %951 = vmatprep.mubr.f32.mxu0 %v219
  %952 = vmatmul.mubr.f32.gmra.mrb[0].mxu0 %v218
  %v953 = vpop.f32.mrb[0].mxu0
  %v954 = vadd.f32 %v619, %v953
  %v955 = vpop.f32.mrb[0].mxu0
  %956 = vmatprep.mubr.f32.mxu0 %v223
  %957 = vmatmul.mubr.f32.gmra.mrb[0].mxu0 %v222
  %v958 = vpop.f32.mrb[0].mxu0
  %v959 = vadd.f32 %v624, %v958
  %v960 = vpop.f32.mrb[0].mxu0
  %961 = vmatprep.mubr.f32.mxu0 %v227
  %962 = vmatmul.mubr.f32.gmra.mrb[0].mxu0 %v226
  %v963 = vpop.f32.mrb[0].mxu0
  %v964 = vadd.f32 %v629, %v963
  %v965 = vpop.f32.mrb[0].mxu0
  %966 = vmatprep.mubr.f32.mxu0 %v231
  %967 = vmatmul.mubr.f32.gmra.mrb[0].mxu0 %v230
  %v968 = vpop.f32.mrb[0].mxu0
  %v969 = vadd.f32 %v634, %v968
  %v970 = vpop.f32.mrb[0].mxu0
  %971 = vmatprep.mubr.f32.mxu0 %v235
  %972 = vmatmul.mubr.f32.gmra.mrb[0].mxu0 %v234
  %v973 = vpop.f32.mrb[0].mxu0
  %v974 = vadd.f32 %v639, %v973
  %v975 = vpop.f32.mrb[0].mxu0
  %976 = vdwg.mxu0
  %vm977 = vcmask 261120
  %v978 = vsel %vm977, %v709, 0.0
  %v979 = vsel %vm977, %v714, 0.0
  %v980 = vadd.f32 %v978, %v979
  %v981 = vsel %vm977, %v719, 0.0
  %v982 = vadd.f32 %v980, %v981
  %v983 = vsel %vm977, %v724, 0.0
  %v984 = vadd.f32 %v982, %v983
  %v985 = vsel %vm977, %v729, 0.0
  %v986 = vadd.f32 %v984, %v985
  %v987 = vsel %vm977, %v734, 0.0
  %v988 = vadd.f32 %v986, %v987
  %v989 = vsel %vm977, %v739, 0.0
  %v990 = vadd.f32 %v988, %v989
  %v991 = vsel %vm977, %v744, 0.0
  %v992 = vadd.f32 %v990, %v991
  %v993 = vsel %vm977, %v749, 0.0
  %v994 = vadd.f32 %v992, %v993
  %v995 = vsel %vm977, %v754, 0.0
  %v996 = vadd.f32 %v994, %v995
  %v997 = vsel %vm977, %v759, 0.0
  %v998 = vadd.f32 %v996, %v997
  %v999 = vsel %vm977, %v764, 0.0
  %v1000 = vadd.f32 %v998, %v999
  %v1001 = vsel %vm977, %v769, 0.0
  %v1002 = vadd.f32 %v1000, %v1001
  %v1003 = vsel %vm977, %v774, 0.0
  %v1004 = vadd.f32 %v1002, %v1003
  %v1005 = vsel %vm977, %v779, 0.0
  %v1006 = vadd.f32 %v1004, %v1005
  %v1007 = vsel %vm977, %v784, 0.0
  %v1008 = vadd.f32 %v1006, %v1007
  %v1009 = vsel %vm977, %v789, 0.0
  %v1010 = vadd.f32 %v1008, %v1009
  %v1011 = vsel %vm977, %v794, 0.0
  %v1012 = vadd.f32 %v1010, %v1011
  %v1013 = vsel %vm977, %v799, 0.0
  %v1014 = vadd.f32 %v1012, %v1013
  %v1015 = vsel %vm977, %v804, 0.0
  %v1016 = vadd.f32 %v1014, %v1015
  %v1017 = vsel %vm977, %v809, 0.0
  %v1018 = vadd.f32 %v1016, %v1017
  %v1019 = vsel %vm977, %v814, 0.0
  %v1020 = vadd.f32 %v1018, %v1019
  %v1021 = vsel %vm977, %v819, 0.0
  %v1022 = vadd.f32 %v1020, %v1021
  %v1023 = vsel %vm977, %v824, 0.0
  %v1024 = vadd.f32 %v1022, %v1023
  %v1025 = vsel %vm977, %v829, 0.0
  %v1026 = vadd.f32 %v1024, %v1025
  %v1027 = vsel %vm977, %v834, 0.0
  %v1028 = vadd.f32 %v1026, %v1027
  %v1029 = vsel %vm977, %v839, 0.0
  %v1030 = vadd.f32 %v1028, %v1029
  %v1031 = vsel %vm977, %v844, 0.0
  %v1032 = vadd.f32 %v1030, %v1031
  %v1033 = vsel %vm977, %v849, 0.0
  %v1034 = vadd.f32 %v1032, %v1033
  %v1035 = vsel %vm977, %v854, 0.0
  %v1036 = vadd.f32 %v1034, %v1035
  %v1037 = vsel %vm977, %v859, 0.0
  %v1038 = vadd.f32 %v1036, %v1037
  %v1039 = vsel %vm977, %v864, 0.0
  %v1040 = vadd.f32 %v1038, %v1039
  %v1041 = vsel %vm977, %v869, 0.0
  %v1042 = vadd.f32 %v1040, %v1041
  %v1043 = vsel %vm977, %v874, 0.0
  %v1044 = vadd.f32 %v1042, %v1043
  %v1045 = vsel %vm977, %v879, 0.0
  %v1046 = vadd.f32 %v1044, %v1045
  %v1047 = vsel %vm977, %v884, 0.0
  %v1048 = vadd.f32 %v1046, %v1047
  %v1049 = vsel %vm977, %v889, 0.0
  %v1050 = vadd.f32 %v1048, %v1049
  %v1051 = vsel %vm977, %v894, 0.0
  %v1052 = vadd.f32 %v1050, %v1051
  %v1053 = vsel %vm977, %v899, 0.0
  %v1054 = vadd.f32 %v1052, %v1053
  %v1055 = vsel %vm977, %v904, 0.0
  %v1056 = vadd.f32 %v1054, %v1055
  %v1057 = vsel %vm977, %v909, 0.0
  %v1058 = vadd.f32 %v1056, %v1057
  %v1059 = vsel %vm977, %v914, 0.0
  %v1060 = vadd.f32 %v1058, %v1059
  %v1061 = vsel %vm977, %v919, 0.0
  %v1062 = vadd.f32 %v1060, %v1061
  %v1063 = vsel %vm977, %v924, 0.0
  %v1064 = vadd.f32 %v1062, %v1063
  %v1065 = vsel %vm977, %v929, 0.0
  %v1066 = vadd.f32 %v1064, %v1065
  %v1067 = vsel %vm977, %v934, 0.0
  %v1068 = vadd.f32 %v1066, %v1067
  %v1069 = vsel %vm977, %v939, 0.0
  %v1070 = vadd.f32 %v1068, %v1069
  %v1071 = vsel %vm977, %v944, 0.0
  %v1072 = vadd.f32 %v1070, %v1071
  %v1073 = vsel %vm977, %v949, 0.0
  %v1074 = vadd.f32 %v1072, %v1073
  %v1075 = vsel %vm977, %v954, 0.0
  %v1076 = vadd.f32 %v1074, %v1075
  %v1077 = vsel %vm977, %v959, 0.0
  %v1078 = vadd.f32 %v1076, %v1077
  %v1079 = vsel %vm977, %v964, 0.0
  %v1080 = vadd.f32 %v1078, %v1079
  %v1081 = vsel %vm977, %v969, 0.0
  %v1082 = vadd.f32 %v1080, %v1081
  %v1083 = vsel %vm977, %v974, 0.0
  %v1084 = vadd.f32 %v1082, %v1083
  %v1085 = vrot.slane %v1084, 4
  %v1086 = vadd.f32 %v1084, %v1085
  %v1087 = vrot.slane %v1086, 2
  %v1088 = vadd.f32 %v1086, %v1087
  %v1089 = vrot.slane %v1088, 1
  %v1090 = vadd.f32 %v1088, %v1089
  %v1091 = vrcp.pop 432.0
  %v1092 = vmul.f32 %v1090, %v1091
  %v1093 = vsub.f32 %v709, %v1092
  %v1094 = vsub.f32 %v714, %v1092
  %v1095 = vsub.f32 %v719, %v1092
  %v1096 = vsub.f32 %v724, %v1092
  %v1097 = vsub.f32 %v729, %v1092
  %v1098 = vsub.f32 %v734, %v1092
  %v1099 = vsub.f32 %v739, %v1092
  %v1100 = vsub.f32 %v744, %v1092
  %v1101 = vsub.f32 %v749, %v1092
  %v1102 = vsub.f32 %v754, %v1092
  %v1103 = vsub.f32 %v759, %v1092
  %v1104 = vsub.f32 %v764, %v1092
  %v1105 = vsub.f32 %v769, %v1092
  %v1106 = vsub.f32 %v774, %v1092
  %v1107 = vsub.f32 %v779, %v1092
  %v1108 = vsub.f32 %v784, %v1092
  %v1109 = vsub.f32 %v789, %v1092
  %v1110 = vsub.f32 %v794, %v1092
  %v1111 = vsub.f32 %v799, %v1092
  %v1112 = vsub.f32 %v804, %v1092
  %v1113 = vsub.f32 %v809, %v1092
  %v1114 = vsub.f32 %v814, %v1092
  %v1115 = vsub.f32 %v819, %v1092
  %v1116 = vsub.f32 %v824, %v1092
  %v1117 = vsub.f32 %v829, %v1092
  %v1118 = vsub.f32 %v834, %v1092
  %v1119 = vsub.f32 %v839, %v1092
  %v1120 = vsub.f32 %v844, %v1092
  %v1121 = vsub.f32 %v849, %v1092
  %v1122 = vsub.f32 %v854, %v1092
  %v1123 = vsub.f32 %v859, %v1092
  %v1124 = vsub.f32 %v864, %v1092
  %v1125 = vsub.f32 %v869, %v1092
  %v1126 = vsub.f32 %v874, %v1092
  %v1127 = vsub.f32 %v879, %v1092
  %v1128 = vsub.f32 %v884, %v1092
  %v1129 = vsub.f32 %v889, %v1092
  %v1130 = vsub.f32 %v894, %v1092
  %v1131 = vsub.f32 %v899, %v1092
  %v1132 = vsub.f32 %v904, %v1092
  %v1133 = vsub.f32 %v909, %v1092
  %v1134 = vsub.f32 %v914, %v1092
  %v1135 = vsub.f32 %v919, %v1092
  %v1136 = vsub.f32 %v924, %v1092
  %v1137 = vsub.f32 %v929, %v1092
  %v1138 = vsub.f32 %v934, %v1092
  %v1139 = vsub.f32 %v939, %v1092
  %v1140 = vsub.f32 %v944, %v1092
  %v1141 = vsub.f32 %v949, %v1092
  %v1142 = vsub.f32 %v954, %v1092
  %v1143 = vsub.f32 %v959, %v1092
  %v1144 = vsub.f32 %v964, %v1092
  %v1145 = vsub.f32 %v969, %v1092
  %v1146 = vsub.f32 %v974, %v1092
  %v1147 = vmul.f32 %v1093, %v1093
  %v1148 = vmul.f32 %v1094, %v1094
  %v1149 = vmul.f32 %v1095, %v1095
  %v1150 = vmul.f32 %v1096, %v1096
  %v1151 = vmul.f32 %v1097, %v1097
  %v1152 = vmul.f32 %v1098, %v1098
  %v1153 = vmul.f32 %v1099, %v1099
  %v1154 = vmul.f32 %v1100, %v1100
  %v1155 = vmul.f32 %v1101, %v1101
  %v1156 = vmul.f32 %v1102, %v1102
  %v1157 = vmul.f32 %v1103, %v1103
  %v1158 = vmul.f32 %v1104, %v1104
  %v1159 = vmul.f32 %v1105, %v1105
  %v1160 = vmul.f32 %v1106, %v1106
  %v1161 = vmul.f32 %v1107, %v1107
  %v1162 = vmul.f32 %v1108, %v1108
  %v1163 = vmul.f32 %v1109, %v1109
  %v1164 = vmul.f32 %v1110, %v1110
  %v1165 = vmul.f32 %v1111, %v1111
  %v1166 = vmul.f32 %v1112, %v1112
  %v1167 = vmul.f32 %v1113, %v1113
  %v1168 = vmul.f32 %v1114, %v1114
  %v1169 = vmul.f32 %v1115, %v1115
  %v1170 = vmul.f32 %v1116, %v1116
  %v1171 = vmul.f32 %v1117, %v1117
  %v1172 = vmul.f32 %v1118, %v1118
  %v1173 = vmul.f32 %v1119, %v1119
  %v1174 = vmul.f32 %v1120, %v1120
  %v1175 = vmul.f32 %v1121, %v1121
  %v1176 = vmul.f32 %v1122, %v1122
  %v1177 = vmul.f32 %v1123, %v1123
  %v1178 = vmul.f32 %v1124, %v1124
  %v1179 = vmul.f32 %v1125, %v1125
  %v1180 = vmul.f32 %v1126, %v1126
  %v1181 = vmul.f32 %v1127, %v1127
  %v1182 = vmul.f32 %v1128, %v1128
  %v1183 = vmul.f32 %v1129, %v1129
  %v1184 = vmul.f32 %v1130, %v1130
  %v1185 = vmul.f32 %v1131, %v1131
  %v1186 = vmul.f32 %v1132, %v1132
  %v1187 = vmul.f32 %v1133, %v1133
  %v1188 = vmul.f32 %v1134, %v1134
  %v1189 = vmul.f32 %v1135, %v1135
  %v1190 = vmul.f32 %v1136, %v1136
  %v1191 = vmul.f32 %v1137, %v1137
  %v1192 = vmul.f32 %v1138, %v1138
  %v1193 = vmul.f32 %v1139, %v1139
  %v1194 = vmul.f32 %v1140, %v1140
  %v1195 = vmul.f32 %v1141, %v1141
  %v1196 = vmul.f32 %v1142, %v1142
  %v1197 = vmul.f32 %v1143, %v1143
  %v1198 = vmul.f32 %v1144, %v1144
  %v1199 = vmul.f32 %v1145, %v1145
  %v1200 = vmul.f32 %v1146, %v1146
  %v1201 = vsel %vm977, %v1147, 0.0
  %v1202 = vsel %vm977, %v1148, 0.0
  %v1203 = vadd.f32 %v1201, %v1202
  %v1204 = vsel %vm977, %v1149, 0.0
  %v1205 = vadd.f32 %v1203, %v1204
  %v1206 = vsel %vm977, %v1150, 0.0
  %v1207 = vadd.f32 %v1205, %v1206
  %v1208 = vsel %vm977, %v1151, 0.0
  %v1209 = vadd.f32 %v1207, %v1208
  %v1210 = vsel %vm977, %v1152, 0.0
  %v1211 = vadd.f32 %v1209, %v1210
  %v1212 = vsel %vm977, %v1153, 0.0
  %v1213 = vadd.f32 %v1211, %v1212
  %v1214 = vsel %vm977, %v1154, 0.0
  %v1215 = vadd.f32 %v1213, %v1214
  %v1216 = vsel %vm977, %v1155, 0.0
  %v1217 = vadd.f32 %v1215, %v1216
  %v1218 = vsel %vm977, %v1156, 0.0
  %v1219 = vadd.f32 %v1217, %v1218
  %v1220 = vsel %vm977, %v1157, 0.0
  %v1221 = vadd.f32 %v1219, %v1220
  %v1222 = vsel %vm977, %v1158, 0.0
  %v1223 = vadd.f32 %v1221, %v1222
  %v1224 = vsel %vm977, %v1159, 0.0
  %v1225 = vadd.f32 %v1223, %v1224
  %v1226 = vsel %vm977, %v1160, 0.0
  %v1227 = vadd.f32 %v1225, %v1226
  %v1228 = vsel %vm977, %v1161, 0.0
  %v1229 = vadd.f32 %v1227, %v1228
  %v1230 = vsel %vm977, %v1162, 0.0
  %v1231 = vadd.f32 %v1229, %v1230
  %v1232 = vsel %vm977, %v1163, 0.0
  %v1233 = vadd.f32 %v1231, %v1232
  %v1234 = vsel %vm977, %v1164, 0.0
  %v1235 = vadd.f32 %v1233, %v1234
  %v1236 = vsel %vm977, %v1165, 0.0
  %v1237 = vadd.f32 %v1235, %v1236
  %v1238 = vsel %vm977, %v1166, 0.0
  %v1239 = vadd.f32 %v1237, %v1238
  %v1240 = vsel %vm977, %v1167, 0.0
  %v1241 = vadd.f32 %v1239, %v1240
  %v1242 = vsel %vm977, %v1168, 0.0
  %v1243 = vadd.f32 %v1241, %v1242
  %v1244 = vsel %vm977, %v1169, 0.0
  %v1245 = vadd.f32 %v1243, %v1244
  %v1246 = vsel %vm977, %v1170, 0.0
  %v1247 = vadd.f32 %v1245, %v1246
  %v1248 = vsel %vm977, %v1171, 0.0
  %v1249 = vadd.f32 %v1247, %v1248
  %v1250 = vsel %vm977, %v1172, 0.0
  %v1251 = vadd.f32 %v1249, %v1250
  %v1252 = vsel %vm977, %v1173, 0.0
  %v1253 = vadd.f32 %v1251, %v1252
  %v1254 = vsel %vm977, %v1174, 0.0
  %v1255 = vadd.f32 %v1253, %v1254
  %v1256 = vsel %vm977, %v1175, 0.0
  %v1257 = vadd.f32 %v1255, %v1256
  %v1258 = vsel %vm977, %v1176, 0.0
  %v1259 = vadd.f32 %v1257, %v1258
  %v1260 = vsel %vm977, %v1177, 0.0
  %v1261 = vadd.f32 %v1259, %v1260
  %v1262 = vsel %vm977, %v1178, 0.0
  %v1263 = vadd.f32 %v1261, %v1262
  %v1264 = vsel %vm977, %v1179, 0.0
  %v1265 = vadd.f32 %v1263, %v1264
  %v1266 = vsel %vm977, %v1180, 0.0
  %v1267 = vadd.f32 %v1265, %v1266
  %v1268 = vsel %vm977, %v1181, 0.0
  %v1269 = vadd.f32 %v1267, %v1268
  %v1270 = vsel %vm977, %v1182, 0.0
  %v1271 = vadd.f32 %v1269, %v1270
  %v1272 = vsel %vm977, %v1183, 0.0
  %v1273 = vadd.f32 %v1271, %v1272
  %v1274 = vsel %vm977, %v1184, 0.0
  %v1275 = vadd.f32 %v1273, %v1274
  %v1276 = vsel %vm977, %v1185, 0.0
  %v1277 = vadd.f32 %v1275, %v1276
  %v1278 = vsel %vm977, %v1186, 0.0
  %v1279 = vadd.f32 %v1277, %v1278
  %v1280 = vsel %vm977, %v1187, 0.0
  %v1281 = vadd.f32 %v1279, %v1280
  %v1282 = vsel %vm977, %v1188, 0.0
  %v1283 = vadd.f32 %v1281, %v1282
  %v1284 = vsel %vm977, %v1189, 0.0
  %v1285 = vadd.f32 %v1283, %v1284
  %v1286 = vsel %vm977, %v1190, 0.0
  %v1287 = vadd.f32 %v1285, %v1286
  %v1288 = vsel %vm977, %v1191, 0.0
  %v1289 = vadd.f32 %v1287, %v1288
  %v1290 = vsel %vm977, %v1192, 0.0
  %v1291 = vadd.f32 %v1289, %v1290
  %v1292 = vsel %vm977, %v1193, 0.0
  %v1293 = vadd.f32 %v1291, %v1292
  %v1294 = vsel %vm977, %v1194, 0.0
  %v1295 = vadd.f32 %v1293, %v1294
  %v1296 = vsel %vm977, %v1195, 0.0
  %v1297 = vadd.f32 %v1295, %v1296
  %v1298 = vsel %vm977, %v1196, 0.0
  %v1299 = vadd.f32 %v1297, %v1298
  %v1300 = vsel %vm977, %v1197, 0.0
  %v1301 = vadd.f32 %v1299, %v1300
  %v1302 = vsel %vm977, %v1198, 0.0
  %v1303 = vadd.f32 %v1301, %v1302
  %v1304 = vsel %vm977, %v1199, 0.0
  %v1305 = vadd.f32 %v1303, %v1304
  %v1306 = vsel %vm977, %v1200, 0.0
  %v1307 = vadd.f32 %v1305, %v1306
  %v1308 = vrot.slane %v1307, 4
  %v1309 = vadd.f32 %v1307, %v1308
  %v1310 = vrot.slane %v1309, 2
  %v1311 = vadd.f32 %v1309, %v1310
  %v1312 = vrot.slane %v1311, 1
  %v1313 = vadd.f32 %v1311, %v1312
  %v1314 = vmul.f32 %v1313, %v1091
  %v1315 = vadd.f32 %v1314, 1e-05
  %v1316 = vrsqrt.pop %v1315
  %v1317 = vmul.f32 %v1093, %v1316
  %v1318 = vmul.f32 %v1094, %v1316
  %v1319 = vmul.f32 %v1095, %v1316
  %v1320 = vmul.f32 %v1096, %v1316
  %v1321 = vmul.f32 %v1097, %v1316
  %v1322 = vmul.f32 %v1098, %v1316
  %v1323 = vmul.f32 %v1099, %v1316
  %v1324 = vmul.f32 %v1100, %v1316
  %v1325 = vmul.f32 %v1101, %v1316
  %v1326 = vmul.f32 %v1102, %v1316
  %v1327 = vmul.f32 %v1103, %v1316
  %v1328 = vmul.f32 %v1104, %v1316
  %v1329 = vmul.f32 %v1105, %v1316
  %v1330 = vmul.f32 %v1106, %v1316
  %v1331 = vmul.f32 %v1107, %v1316
  %v1332 = vmul.f32 %v1108, %v1316
  %v1333 = vmul.f32 %v1109, %v1316
  %v1334 = vmul.f32 %v1110, %v1316
  %v1335 = vmul.f32 %v1111, %v1316
  %v1336 = vmul.f32 %v1112, %v1316
  %v1337 = vmul.f32 %v1113, %v1316
  %v1338 = vmul.f32 %v1114, %v1316
  %v1339 = vmul.f32 %v1115, %v1316
  %v1340 = vmul.f32 %v1116, %v1316
  %v1341 = vmul.f32 %v1117, %v1316
  %v1342 = vmul.f32 %v1118, %v1316
  %v1343 = vmul.f32 %v1119, %v1316
  %v1344 = vmul.f32 %v1120, %v1316
  %v1345 = vmul.f32 %v1121, %v1316
  %v1346 = vmul.f32 %v1122, %v1316
  %v1347 = vmul.f32 %v1123, %v1316
  %v1348 = vmul.f32 %v1124, %v1316
  %v1349 = vmul.f32 %v1125, %v1316
  %v1350 = vmul.f32 %v1126, %v1316
  %v1351 = vmul.f32 %v1127, %v1316
  %v1352 = vmul.f32 %v1128, %v1316
  %v1353 = vmul.f32 %v1129, %v1316
  %v1354 = vmul.f32 %v1130, %v1316
  %v1355 = vmul.f32 %v1131, %v1316
  %v1356 = vmul.f32 %v1132, %v1316
  %v1357 = vmul.f32 %v1133, %v1316
  %v1358 = vmul.f32 %v1134, %v1316
  %v1359 = vmul.f32 %v1135, %v1316
  %v1360 = vmul.f32 %v1136, %v1316
  %v1361 = vmul.f32 %v1137, %v1316
  %v1362 = vmul.f32 %v1138, %v1316
  %v1363 = vmul.f32 %v1139, %v1316
  %v1364 = vmul.f32 %v1140, %v1316
  %v1365 = vmul.f32 %v1141, %v1316
  %v1366 = vmul.f32 %v1142, %v1316
  %v1367 = vmul.f32 %v1143, %v1316
  %v1368 = vmul.f32 %v1144, %v1316
  %v1369 = vmul.f32 %v1145, %v1316
  %v1370 = vmul.f32 %v1146, %v1316
  %v1371 = vld [vmem:[%s3] sm:$0x1]
  %v1373 = vlaneseq
  %v1374 = vshrl.u32 %v1373, 7
  %v1375 = vsub.s32 0, %v1374
  %v1376 = vrot.slane %v1371, %v1375
  %v1378 = vmul.f32 %v1317, %v1376
  %v1379 = vmul.f32 %v1318, %v1376
  %v1380 = vmul.f32 %v1319, %v1376
  %v1381 = vmul.f32 %v1320, %v1376
  %v1382 = vmul.f32 %v1321, %v1376
  %v1383 = vmul.f32 %v1322, %v1376
  %v1384 = vmul.f32 %v1323, %v1376
  %v1385 = vmul.f32 %v1324, %v1376
  %v1386 = vmul.f32 %v1325, %v1376
  %v1387 = vmul.f32 %v1326, %v1376
  %v1388 = vmul.f32 %v1327, %v1376
  %v1389 = vmul.f32 %v1328, %v1376
  %v1390 = vmul.f32 %v1329, %v1376
  %v1391 = vmul.f32 %v1330, %v1376
  %v1392 = vmul.f32 %v1331, %v1376
  %v1393 = vmul.f32 %v1332, %v1376
  %v1394 = vmul.f32 %v1333, %v1376
  %v1395 = vmul.f32 %v1334, %v1376
  %v1396 = vmul.f32 %v1335, %v1376
  %v1397 = vmul.f32 %v1336, %v1376
  %v1398 = vmul.f32 %v1337, %v1376
  %v1399 = vmul.f32 %v1338, %v1376
  %v1400 = vmul.f32 %v1339, %v1376
  %v1401 = vmul.f32 %v1340, %v1376
  %v1402 = vmul.f32 %v1341, %v1376
  %v1403 = vmul.f32 %v1342, %v1376
  %v1404 = vmul.f32 %v1343, %v1376
  %v1405 = vmul.f32 %v1344, %v1376
  %v1406 = vmul.f32 %v1345, %v1376
  %v1407 = vmul.f32 %v1346, %v1376
  %v1408 = vmul.f32 %v1347, %v1376
  %v1409 = vmul.f32 %v1348, %v1376
  %v1410 = vmul.f32 %v1349, %v1376
  %v1411 = vmul.f32 %v1350, %v1376
  %v1412 = vmul.f32 %v1351, %v1376
  %v1413 = vmul.f32 %v1352, %v1376
  %v1414 = vmul.f32 %v1353, %v1376
  %v1415 = vmul.f32 %v1354, %v1376
  %v1416 = vmul.f32 %v1355, %v1376
  %v1417 = vmul.f32 %v1356, %v1376
  %v1418 = vmul.f32 %v1357, %v1376
  %v1419 = vmul.f32 %v1358, %v1376
  %v1420 = vmul.f32 %v1359, %v1376
  %v1421 = vmul.f32 %v1360, %v1376
  %v1422 = vmul.f32 %v1361, %v1376
  %v1423 = vmul.f32 %v1362, %v1376
  %v1424 = vmul.f32 %v1363, %v1376
  %v1425 = vmul.f32 %v1364, %v1376
  %v1426 = vmul.f32 %v1365, %v1376
  %v1427 = vmul.f32 %v1366, %v1376
  %v1428 = vmul.f32 %v1367, %v1376
  %v1429 = vmul.f32 %v1368, %v1376
  %v1430 = vmul.f32 %v1369, %v1376
  %v1431 = vmul.f32 %v1370, %v1376
  %v1432 = vld [vmem:[%s4] sm:$0x1]
  %v1434 = vlaneseq
  %v1435 = vshrl.u32 %v1434, 7
  %v1436 = vsub.s32 0, %v1435
  %v1437 = vrot.slane %v1432, %v1436
  %v1439 = vadd.f32 %v1378, %v1437
  %v1440 = vadd.f32 %v1379, %v1437
  %v1441 = vadd.f32 %v1380, %v1437
  %v1442 = vadd.f32 %v1381, %v1437
  %v1443 = vadd.f32 %v1382, %v1437
  %v1444 = vadd.f32 %v1383, %v1437
  %v1445 = vadd.f32 %v1384, %v1437
  %v1446 = vadd.f32 %v1385, %v1437
  %v1447 = vadd.f32 %v1386, %v1437
  %v1448 = vadd.f32 %v1387, %v1437
  %v1449 = vadd.f32 %v1388, %v1437
  %v1450 = vadd.f32 %v1389, %v1437
  %v1451 = vadd.f32 %v1390, %v1437
  %v1452 = vadd.f32 %v1391, %v1437
  %v1453 = vadd.f32 %v1392, %v1437
  %v1454 = vadd.f32 %v1393, %v1437
  %v1455 = vadd.f32 %v1394, %v1437
  %v1456 = vadd.f32 %v1395, %v1437
  %v1457 = vadd.f32 %v1396, %v1437
  %v1458 = vadd.f32 %v1397, %v1437
  %v1459 = vadd.f32 %v1398, %v1437
  %v1460 = vadd.f32 %v1399, %v1437
  %v1461 = vadd.f32 %v1400, %v1437
  %v1462 = vadd.f32 %v1401, %v1437
  %v1463 = vadd.f32 %v1402, %v1437
  %v1464 = vadd.f32 %v1403, %v1437
  %v1465 = vadd.f32 %v1404, %v1437
  %v1466 = vadd.f32 %v1405, %v1437
  %v1467 = vadd.f32 %v1406, %v1437
  %v1468 = vadd.f32 %v1407, %v1437
  %v1469 = vadd.f32 %v1408, %v1437
  %v1470 = vadd.f32 %v1409, %v1437
  %v1471 = vadd.f32 %v1410, %v1437
  %v1472 = vadd.f32 %v1411, %v1437
  %v1473 = vadd.f32 %v1412, %v1437
  %v1474 = vadd.f32 %v1413, %v1437
  %v1475 = vadd.f32 %v1414, %v1437
  %v1476 = vadd.f32 %v1415, %v1437
  %v1477 = vadd.f32 %v1416, %v1437
  %v1478 = vadd.f32 %v1417, %v1437
  %v1479 = vadd.f32 %v1418, %v1437
  %v1480 = vadd.f32 %v1419, %v1437
  %v1481 = vadd.f32 %v1420, %v1437
  %v1482 = vadd.f32 %v1421, %v1437
  %v1483 = vadd.f32 %v1422, %v1437
  %v1484 = vadd.f32 %v1423, %v1437
  %v1485 = vadd.f32 %v1424, %v1437
  %v1486 = vadd.f32 %v1425, %v1437
  %v1487 = vadd.f32 %v1426, %v1437
  %v1488 = vadd.f32 %v1427, %v1437
  %v1489 = vadd.f32 %v1428, %v1437
  %v1490 = vadd.f32 %v1429, %v1437
  %v1491 = vadd.f32 %v1430, %v1437
  %v1492 = vadd.f32 %v1431, %v1437
  %vm1493 = vcmp.gt.f32.partialorder %v1439, 0.0
  %vm1494 = vcmp.gt.f32.partialorder %v1440, 0.0
  %vm1495 = vcmp.gt.f32.partialorder %v1441, 0.0
  %vm1496 = vcmp.gt.f32.partialorder %v1442, 0.0
  %vm1497 = vcmp.gt.f32.partialorder %v1443, 0.0
  %vm1498 = vcmp.gt.f32.partialorder %v1444, 0.0
  %vm1499 = vcmp.gt.f32.partialorder %v1445, 0.0
  %vm1500 = vcmp.gt.f32.partialorder %v1446, 0.0
  %vm1501 = vcmp.gt.f32.partialorder %v1447, 0.0
  %vm1502 = vcmp.gt.f32.partialorder %v1448, 0.0
  %vm1503 = vcmp.gt.f32.partialorder %v1449, 0.0
  %vm1504 = vcmp.gt.f32.partialorder %v1450, 0.0
  %vm1505 = vcmp.gt.f32.partialorder %v1451, 0.0
  %vm1506 = vcmp.gt.f32.partialorder %v1452, 0.0
  %vm1507 = vcmp.gt.f32.partialorder %v1453, 0.0
  %vm1508 = vcmp.gt.f32.partialorder %v1454, 0.0
  %vm1509 = vcmp.gt.f32.partialorder %v1455, 0.0
  %vm1510 = vcmp.gt.f32.partialorder %v1456, 0.0
  %vm1511 = vcmp.gt.f32.partialorder %v1457, 0.0
  %vm1512 = vcmp.gt.f32.partialorder %v1458, 0.0
  %vm1513 = vcmp.gt.f32.partialorder %v1459, 0.0
  %vm1514 = vcmp.gt.f32.partialorder %v1460, 0.0
  %vm1515 = vcmp.gt.f32.partialorder %v1461, 0.0
  %vm1516 = vcmp.gt.f32.partialorder %v1462, 0.0
  %vm1517 = vcmp.gt.f32.partialorder %v1463, 0.0
  %vm1518 = vcmp.gt.f32.partialorder %v1464, 0.0
  %vm1519 = vcmp.gt.f32.partialorder %v1465, 0.0
  %vm1520 = vcmp.gt.f32.partialorder %v1466, 0.0
  %vm1521 = vcmp.gt.f32.partialorder %v1467, 0.0
  %vm1522 = vcmp.gt.f32.partialorder %v1468, 0.0
  %vm1523 = vcmp.gt.f32.partialorder %v1469, 0.0
  %vm1524 = vcmp.gt.f32.partialorder %v1470, 0.0
  %vm1525 = vcmp.gt.f32.partialorder %v1471, 0.0
  %vm1526 = vcmp.gt.f32.partialorder %v1472, 0.0
  %vm1527 = vcmp.gt.f32.partialorder %v1473, 0.0
  %vm1528 = vcmp.gt.f32.partialorder %v1474, 0.0
  %vm1529 = vcmp.gt.f32.partialorder %v1475, 0.0
  %vm1530 = vcmp.gt.f32.partialorder %v1476, 0.0
  %vm1531 = vcmp.gt.f32.partialorder %v1477, 0.0
  %vm1532 = vcmp.gt.f32.partialorder %v1478, 0.0
  %vm1533 = vcmp.gt.f32.partialorder %v1479, 0.0
  %vm1534 = vcmp.gt.f32.partialorder %v1480, 0.0
  %vm1535 = vcmp.gt.f32.partialorder %v1481, 0.0
  %vm1536 = vcmp.gt.f32.partialorder %v1482, 0.0
  %vm1537 = vcmp.gt.f32.partialorder %v1483, 0.0
  %vm1538 = vcmp.gt.f32.partialorder %v1484, 0.0
  %vm1539 = vcmp.gt.f32.partialorder %v1485, 0.0
  %vm1540 = vcmp.gt.f32.partialorder %v1486, 0.0
  %vm1541 = vcmp.gt.f32.partialorder %v1487, 0.0
  %vm1542 = vcmp.gt.f32.partialorder %v1488, 0.0
  %vm1543 = vcmp.gt.f32.partialorder %v1489, 0.0
  %vm1544 = vcmp.gt.f32.partialorder %v1490, 0.0
  %vm1545 = vcmp.gt.f32.partialorder %v1491, 0.0
  %vm1546 = vcmp.gt.f32.partialorder %v1492, 0.0
  %v1547 = vmul.f32 %v1439, 0.01
  %v1548 = vmul.f32 %v1440, 0.01
  %v1549 = vmul.f32 %v1441, 0.01
  %v1550 = vmul.f32 %v1442, 0.01
  %v1551 = vmul.f32 %v1443, 0.01
  %v1552 = vmul.f32 %v1444, 0.01
  %v1553 = vmul.f32 %v1445, 0.01
  %v1554 = vmul.f32 %v1446, 0.01
  %v1555 = vmul.f32 %v1447, 0.01
  %v1556 = vmul.f32 %v1448, 0.01
  %v1557 = vmul.f32 %v1449, 0.01
  %v1558 = vmul.f32 %v1450, 0.01
  %v1559 = vmul.f32 %v1451, 0.01
  %v1560 = vmul.f32 %v1452, 0.01
  %v1561 = vmul.f32 %v1453, 0.01
  %v1562 = vmul.f32 %v1454, 0.01
  %v1563 = vmul.f32 %v1455, 0.01
  %v1564 = vmul.f32 %v1456, 0.01
  %v1565 = vmul.f32 %v1457, 0.01
  %v1566 = vmul.f32 %v1458, 0.01
  %v1567 = vmul.f32 %v1459, 0.01
  %v1568 = vmul.f32 %v1460, 0.01
  %v1569 = vmul.f32 %v1461, 0.01
  %v1570 = vmul.f32 %v1462, 0.01
  %v1571 = vmul.f32 %v1463, 0.01
  %v1572 = vmul.f32 %v1464, 0.01
  %v1573 = vmul.f32 %v1465, 0.01
  %v1574 = vmul.f32 %v1466, 0.01
  %v1575 = vmul.f32 %v1467, 0.01
  %v1576 = vmul.f32 %v1468, 0.01
  %v1577 = vmul.f32 %v1469, 0.01
  %v1578 = vmul.f32 %v1470, 0.01
  %v1579 = vmul.f32 %v1471, 0.01
  %v1580 = vmul.f32 %v1472, 0.01
  %v1581 = vmul.f32 %v1473, 0.01
  %v1582 = vmul.f32 %v1474, 0.01
  %v1583 = vmul.f32 %v1475, 0.01
  %v1584 = vmul.f32 %v1476, 0.01
  %v1585 = vmul.f32 %v1477, 0.01
  %v1586 = vmul.f32 %v1478, 0.01
  %v1587 = vmul.f32 %v1479, 0.01
  %v1588 = vmul.f32 %v1480, 0.01
  %v1589 = vmul.f32 %v1481, 0.01
  %v1590 = vmul.f32 %v1482, 0.01
  %v1591 = vmul.f32 %v1483, 0.01
  %v1592 = vmul.f32 %v1484, 0.01
  %v1593 = vmul.f32 %v1485, 0.01
  %v1594 = vmul.f32 %v1486, 0.01
  %v1595 = vmul.f32 %v1487, 0.01
  %v1596 = vmul.f32 %v1488, 0.01
  %v1597 = vmul.f32 %v1489, 0.01
  %v1598 = vmul.f32 %v1490, 0.01
  %v1599 = vmul.f32 %v1491, 0.01
  %v1600 = vmul.f32 %v1492, 0.01
  %v1601 = vsel %vm1493, %v1439, %v1547
  %v1602 = vsel %vm1494, %v1440, %v1548
  %v1603 = vsel %vm1495, %v1441, %v1549
  %v1604 = vsel %vm1496, %v1442, %v1550
  %v1605 = vsel %vm1497, %v1443, %v1551
  %v1606 = vsel %vm1498, %v1444, %v1552
  %v1607 = vsel %vm1499, %v1445, %v1553
  %v1608 = vsel %vm1500, %v1446, %v1554
  %v1609 = vsel %vm1501, %v1447, %v1555
  %v1610 = vsel %vm1502, %v1448, %v1556
  %v1611 = vsel %vm1503, %v1449, %v1557
  %v1612 = vsel %vm1504, %v1450, %v1558
  %v1613 = vsel %vm1505, %v1451, %v1559
  %v1614 = vsel %vm1506, %v1452, %v1560
  %v1615 = vsel %vm1507, %v1453, %v1561
  %v1616 = vsel %vm1508, %v1454, %v1562
  %v1617 = vsel %vm1509, %v1455, %v1563
  %v1618 = vsel %vm1510, %v1456, %v1564
  %v1619 = vsel %vm1511, %v1457, %v1565
  %v1620 = vsel %vm1512, %v1458, %v1566
  %v1621 = vsel %vm1513, %v1459, %v1567
  %v1622 = vsel %vm1514, %v1460, %v1568
  %v1623 = vsel %vm1515, %v1461, %v1569
  %v1624 = vsel %vm1516, %v1462, %v1570
  %v1625 = vsel %vm1517, %v1463, %v1571
  %v1626 = vsel %vm1518, %v1464, %v1572
  %v1627 = vsel %vm1519, %v1465, %v1573
  %v1628 = vsel %vm1520, %v1466, %v1574
  %v1629 = vsel %vm1521, %v1467, %v1575
  %v1630 = vsel %vm1522, %v1468, %v1576
  %v1631 = vsel %vm1523, %v1469, %v1577
  %v1632 = vsel %vm1524, %v1470, %v1578
  %v1633 = vsel %vm1525, %v1471, %v1579
  %v1634 = vsel %vm1526, %v1472, %v1580
  %v1635 = vsel %vm1527, %v1473, %v1581
  %v1636 = vsel %vm1528, %v1474, %v1582
  %v1637 = vsel %vm1529, %v1475, %v1583
  %v1638 = vsel %vm1530, %v1476, %v1584
  %v1639 = vsel %vm1531, %v1477, %v1585
  %v1640 = vsel %vm1532, %v1478, %v1586
  %v1641 = vsel %vm1533, %v1479, %v1587
  %v1642 = vsel %vm1534, %v1480, %v1588
  %v1643 = vsel %vm1535, %v1481, %v1589
  %v1644 = vsel %vm1536, %v1482, %v1590
  %v1645 = vsel %vm1537, %v1483, %v1591
  %v1646 = vsel %vm1538, %v1484, %v1592
  %v1647 = vsel %vm1539, %v1485, %v1593
  %v1648 = vsel %vm1540, %v1486, %v1594
  %v1649 = vsel %vm1541, %v1487, %v1595
  %v1650 = vsel %vm1542, %v1488, %v1596
  %v1651 = vsel %vm1543, %v1489, %v1597
  %v1652 = vsel %vm1544, %v1490, %v1598
  %v1653 = vsel %vm1545, %v1491, %v1599
  %v1654 = vsel %vm1546, %v1492, %v1600
  %1655 = vst.msk [vmem:[%s5] sm:$0xff] %vm977, %v1601
  %1656 = vst.msk [vmem:[%s5 + $0x8] sm:$0xff] %vm977, %v1602
  %1657 = vst.msk [vmem:[%s5 + $0x10] sm:$0xff] %vm977, %v1603
  %1658 = vst.msk [vmem:[%s5 + $0x18] sm:$0xff] %vm977, %v1604
  %1659 = vst.msk [vmem:[%s5 + $0x20] sm:$0xff] %vm977, %v1605
  %1660 = vst.msk [vmem:[%s5 + $0x28] sm:$0xff] %vm977, %v1606
  %1661 = vst.msk [vmem:[%s5 + $0x30] sm:$0xff] %vm977, %v1607
  %1662 = vst.msk [vmem:[%s5 + $0x38] sm:$0xff] %vm977, %v1608
  %1663 = vst.msk [vmem:[%s5 + $0x40] sm:$0xff] %vm977, %v1609
  %1664 = vst.msk [vmem:[%s5 + $0x48] sm:$0xff] %vm977, %v1610
  %1665 = vst.msk [vmem:[%s5 + $0x50] sm:$0xff] %vm977, %v1611
  %1666 = vst.msk [vmem:[%s5 + $0x58] sm:$0xff] %vm977, %v1612
  %1667 = vst.msk [vmem:[%s5 + $0x60] sm:$0xff] %vm977, %v1613
  %1668 = vst.msk [vmem:[%s5 + $0x68] sm:$0xff] %vm977, %v1614
  %1669 = vst.msk [vmem:[%s5 + $0x70] sm:$0xff] %vm977, %v1615
  %1670 = vst.msk [vmem:[%s5 + $0x78] sm:$0xff] %vm977, %v1616
  %1671 = vst.msk [vmem:[%s5 + $0x80] sm:$0xff] %vm977, %v1617
  %1672 = vst.msk [vmem:[%s5 + $0x88] sm:$0xff] %vm977, %v1618
  %1673 = vst.msk [vmem:[%s5 + $0x90] sm:$0xff] %vm977, %v1619
  %1674 = vst.msk [vmem:[%s5 + $0x98] sm:$0xff] %vm977, %v1620
  %1675 = vst.msk [vmem:[%s5 + $0xa0] sm:$0xff] %vm977, %v1621
  %1676 = vst.msk [vmem:[%s5 + $0xa8] sm:$0xff] %vm977, %v1622
  %1677 = vst.msk [vmem:[%s5 + $0xb0] sm:$0xff] %vm977, %v1623
  %1678 = vst.msk [vmem:[%s5 + $0xb8] sm:$0xff] %vm977, %v1624
  %1679 = vst.msk [vmem:[%s5 + $0xc0] sm:$0xff] %vm977, %v1625
  %1680 = vst.msk [vmem:[%s5 + $0xc8] sm:$0xff] %vm977, %v1626
  %1681 = vst.msk [vmem:[%s5 + $0xd0] sm:$0xff] %vm977, %v1627
  %1682 = vst.msk [vmem:[%s5 + $0xd8] sm:$0xff] %vm977, %v1628
  %1683 = vst.msk [vmem:[%s5 + $0xe0] sm:$0xff] %vm977, %v1629
  %1684 = vst.msk [vmem:[%s5 + $0xe8] sm:$0xff] %vm977, %v1630
  %1685 = vst.msk [vmem:[%s5 + $0xf0] sm:$0xff] %vm977, %v1631
  %1686 = vst.msk [vmem:[%s5 + $0xf8] sm:$0xff] %vm977, %v1632
  %1687 = vst.msk [vmem:[%s5 + $0x100] sm:$0xff] %vm977, %v1633
  %1688 = vst.msk [vmem:[%s5 + $0x108] sm:$0xff] %vm977, %v1634
  %1689 = vst.msk [vmem:[%s5 + $0x110] sm:$0xff] %vm977, %v1635
  %1690 = vst.msk [vmem:[%s5 + $0x118] sm:$0xff] %vm977, %v1636
  %1691 = vst.msk [vmem:[%s5 + $0x120] sm:$0xff] %vm977, %v1637
  %1692 = vst.msk [vmem:[%s5 + $0x128] sm:$0xff] %vm977, %v1638
  %1693 = vst.msk [vmem:[%s5 + $0x130] sm:$0xff] %vm977, %v1639
  %1694 = vst.msk [vmem:[%s5 + $0x138] sm:$0xff] %vm977, %v1640
  %1695 = vst.msk [vmem:[%s5 + $0x140] sm:$0xff] %vm977, %v1641
  %1696 = vst.msk [vmem:[%s5 + $0x148] sm:$0xff] %vm977, %v1642
  %1697 = vst.msk [vmem:[%s5 + $0x150] sm:$0xff] %vm977, %v1643
  %1698 = vst.msk [vmem:[%s5 + $0x158] sm:$0xff] %vm977, %v1644
  %1699 = vst.msk [vmem:[%s5 + $0x160] sm:$0xff] %vm977, %v1645
  %1700 = vst.msk [vmem:[%s5 + $0x168] sm:$0xff] %vm977, %v1646
  %1701 = vst.msk [vmem:[%s5 + $0x170] sm:$0xff] %vm977, %v1647
  %1702 = vst.msk [vmem:[%s5 + $0x178] sm:$0xff] %vm977, %v1648
  %1703 = vst.msk [vmem:[%s5 + $0x180] sm:$0xff] %vm977, %v1649
  %1704 = vst.msk [vmem:[%s5 + $0x188] sm:$0xff] %vm977, %v1650
  %1705 = vst.msk [vmem:[%s5 + $0x190] sm:$0xff] %vm977, %v1651
  %1706 = vst.msk [vmem:[%s5 + $0x198] sm:$0xff] %vm977, %v1652
  %1707 = vst.msk [vmem:[%s5 + $0x1a0] sm:$0xff] %vm977, %v1653
  %1708 = vst.msk [vmem:[%s5 + $0x1a8] sm:$0xff] %vm977, %v1654
  // Predicated region
  $region22: #{autoencoder_forward.10} parent=0 // pred_check
    _
  $region23: #{autoencoder_forward.10} parent=0 // pred_check_branch
    %1710 = sbr.rel (0) target = $region25
  $region24: #{autoencoder_forward.10} parent=0 // pred_region
    _
  $region25: #{autoencoder_forward.10} parent=0 // pred_fallthru
    _
  // Predicated region
  $region26: #{autoencoder_forward.10} parent=0 // pred_check
    _
  $region27: #{autoencoder_forward.10} parent=0 // pred_check_branch
    %1712 = sbr.rel (0) target = $region29
  $region28: #{autoencoder_forward.10} parent=0 // pred_region
    _
  $region29: #{autoencoder_forward.10} parent=0 // pred_fallthru
    _

// kernel: autoencoder_forward.11
$region0: #{autoencoder_forward.11}
  #allocation0 [shape = 'u32[]', space=smem, size = 0x4, offset = 0x4, fixed_abs, tag = 'smem constant byte address 0x4 - core index']
  #allocation1 [shape = 'u32[144,128]{1,0:T(1,128)}', space=vmem, size = 0x12000, scoped, tag = 'internal scratch']
  #allocation2 [shape = 'f32[1,1]{1,0:T(1,128)S(1)}', space=vmem, size = 0x200, scoped, tag = 'scoped memory for autoencoder_forward.11']
  %s0 = inlined_call_operand.vmem [shape: f32[432,288], index: 0, kind: input, shape index: {}]
  %s1 = inlined_call_operand.vmem [shape: f32[288,1], index: 1, kind: input, shape index: {}]
  %s2 = inlined_call_operand.<no memory space> [shape: f32[1,1], index: 2, kind: input, shape index: {}]
  %s3 = inlined_call_operand.vmem [shape: f32[432,1], index: 3, kind: output, shape index: {}]
  %s4 = sld [smem:[#allocation0]]
  $region22: #{autoencoder_forward.11} parent=0
    _
  %s6 = ssub.s32 1, %s4
  %s7 = scalar_select 0, %s6, %s4
  %v8 = vstv %s2
  %9 = vst [vmem:[#allocation2] sm:$0x1] %v8
  // Predicated region
  $region2: #{autoencoder_forward.11} parent=0 // pred_check
    _
  $region3: #{autoencoder_forward.11} parent=0 // pred_check_branch
    %11 = sbr.rel (0) target = $region5
  $region4: #{autoencoder_forward.11} parent=0 // pred_region
    _
  $region5: #{autoencoder_forward.11} parent=0 // pred_fallthru
    _
  // Predicated region
  $region6: #{autoencoder_forward.11} parent=0 // pred_check
    _
  $region7: #{autoencoder_forward.11} parent=0 // pred_check_branch
    %13 = sbr.rel (0) target = $region9
  $region8: #{autoencoder_forward.11} parent=0 // pred_region
    _
  $region9: #{autoencoder_forward.11} parent=0 // pred_fallthru
    _
  // Predicated region
  $region10: #{autoencoder_forward.11} parent=0 // pred_check
    _
  $region11: #{autoencoder_forward.11} parent=0 // pred_check_branch
    %15 = sbr.rel (0) target = $region13
  $region12: #{autoencoder_forward.11} parent=0 // pred_region
    _
  $region13: #{autoencoder_forward.11} parent=0 // pred_fallthru
    _
  %v16 = vld [vmem:[%s0] sm:$0xff]
  %v17 = vld [vmem:[%s0 + $0x8] sm:$0xff]
  %v18 = vld [vmem:[%s0 + $0x10] sm:$0xff]
  %v19 = vld [vmem:[%s0 + $0x18] sm:$0xff]
  %v20 = vld [vmem:[%s0 + $0x20] sm:$0xff]
  %v21 = vld [vmem:[%s0 + $0x28] sm:$0xff]
  %v22 = vld [vmem:[%s0 + $0x30] sm:$0xff]
  %v23 = vld [vmem:[%s0 + $0x38] sm:$0xff]
  %v24 = vld [vmem:[%s0 + $0x40] sm:$0xff]
  %v25 = vld [vmem:[%s0 + $0x48] sm:$0xff]
  %v26 = vld [vmem:[%s0 + $0x50] sm:$0xff]
  %v27 = vld [vmem:[%s0 + $0x58] sm:$0xff]
  %v28 = vld [vmem:[%s0 + $0x60] sm:$0xff]
  %v29 = vld [vmem:[%s0 + $0x68] sm:$0xff]
  %v30 = vld [vmem:[%s0 + $0x70] sm:$0xff]
  %v31 = vld [vmem:[%s0 + $0x78] sm:$0xff]
  %v32 = vld [vmem:[%s0 + $0x80] sm:$0xff]
  %v33 = vld [vmem:[%s0 + $0x88] sm:$0xff]
  %v34 = vld [vmem:[%s0 + $0x90] sm:$0xff]
  %v35 = vld [vmem:[%s0 + $0x98] sm:$0xff]
  %v36 = vld [vmem:[%s0 + $0xa0] sm:$0xff]
  %v37 = vld [vmem:[%s0 + $0xa8] sm:$0xff]
  %v38 = vld [vmem:[%s0 + $0xb0] sm:$0xff]
  %v39 = vld [vmem:[%s0 + $0xb8] sm:$0xff]
  %v40 = vld [vmem:[%s0 + $0xc0] sm:$0xff]
  %v41 = vld [vmem:[%s0 + $0xc8] sm:$0xff]
  %v42 = vld [vmem:[%s0 + $0xd0] sm:$0xff]
  %v43 = vld [vmem:[%s0 + $0xd8] sm:$0xff]
  %v44 = vld [vmem:[%s0 + $0xe0] sm:$0xff]
  %v45 = vld [vmem:[%s0 + $0xe8] sm:$0xff]
  %v46 = vld [vmem:[%s0 + $0xf0] sm:$0xff]
  %v47 = vld [vmem:[%s0 + $0xf8] sm:$0xff]
  %v48 = vld [vmem:[%s0 + $0x100] sm:$0xff]
  %v49 = vld [vmem:[%s0 + $0x108] sm:$0xff]
  %v50 = vld [vmem:[%s0 + $0x110] sm:$0xff]
  %v51 = vld [vmem:[%s0 + $0x118] sm:$0xff]
  %v52 = vld [vmem:[%s0 + $0x120] sm:$0xff]
  %v53 = vld [vmem:[%s0 + $0x128] sm:$0xff]
  %v54 = vld [vmem:[%s0 + $0x130] sm:$0xff]
  %v55 = vld [vmem:[%s0 + $0x138] sm:$0xff]
  %v56 = vld [vmem:[%s0 + $0x140] sm:$0xff]
  %v57 = vld [vmem:[%s0 + $0x148] sm:$0xff]
  %v58 = vld [vmem:[%s0 + $0x150] sm:$0xff]
  %v59 = vld [vmem:[%s0 + $0x158] sm:$0xff]
  %v60 = vld [vmem:[%s0 + $0x160] sm:$0xff]
  %v61 = vld [vmem:[%s0 + $0x168] sm:$0xff]
  %v62 = vld [vmem:[%s0 + $0x170] sm:$0xff]
  %v63 = vld [vmem:[%s0 + $0x178] sm:$0xff]
  %v64 = vld [vmem:[%s0 + $0x180] sm:$0xff]
  %v65 = vld [vmem:[%s0 + $0x188] sm:$0xff]
  %v66 = vld [vmem:[%s0 + $0x190] sm:$0xff]
  %v67 = vld [vmem:[%s0 + $0x198] sm:$0xff]
  %v68 = vld [vmem:[%s0 + $0x1a0] sm:$0xff]
  %v69 = vld [vmem:[%s0 + $0x1a8] sm:$0xff]
  %v70 = vld [vmem:[%s0 + $0x1b0] sm:$0xff]
  %v71 = vld [vmem:[%s0 + $0x1b8] sm:$0xff]
  %v72 = vld [vmem:[%s0 + $0x1c0] sm:$0xff]
  %v73 = vld [vmem:[%s0 + $0x1c8] sm:$0xff]
  %v74 = vld [vmem:[%s0 + $0x1d0] sm:$0xff]
  %v75 = vld [vmem:[%s0 + $0x1d8] sm:$0xff]
  %v76 = vld [vmem:[%s0 + $0x1e0] sm:$0xff]
  %v77 = vld [vmem:[%s0 + $0x1e8] sm:$0xff]
  %v78 = vld [vmem:[%s0 + $0x1f0] sm:$0xff]
  %v79 = vld [vmem:[%s0 + $0x1f8] sm:$0xff]
  %v80 = vld [vmem:[%s0 + $0x200] sm:$0xff]
  %v81 = vld [vmem:[%s0 + $0x208] sm:$0xff]
  %v82 = vld [vmem:[%s0 + $0x210] sm:$0xff]
  %v83 = vld [vmem:[%s0 + $0x218] sm:$0xff]
  %v84 = vld [vmem:[%s0 + $0x220] sm:$0xff]
  %v85 = vld [vmem:[%s0 + $0x228] sm:$0xff]
  %v86 = vld [vmem:[%s0 + $0x230] sm:$0xff]
  %v87 = vld [vmem:[%s0 + $0x238] sm:$0xff]
  %v88 = vld [vmem:[%s0 + $0x240] sm:$0xff]
  %v89 = vld [vmem:[%s0 + $0x248] sm:$0xff]
  %v90 = vld [vmem:[%s0 + $0x250] sm:$0xff]
  %v91 = vld [vmem:[%s0 + $0x258] sm:$0xff]
  %v92 = vld [vmem:[%s0 + $0x260] sm:$0xff]
  %v93 = vld [vmem:[%s0 + $0x268] sm:$0xff]
  %v94 = vld [vmem:[%s0 + $0x270] sm:$0xff]
  %v95 = vld [vmem:[%s0 + $0x278] sm:$0xff]
  %v96 = vld [vmem:[%s0 + $0x280] sm:$0xff]
  %v97 = vld [vmem:[%s0 + $0x288] sm:$0xff]
  %v98 = vld [vmem:[%s0 + $0x290] sm:$0xff]
  %v99 = vld [vmem:[%s0 + $0x298] sm:$0xff]
  %v100 = vld [vmem:[%s0 + $0x2a0] sm:$0xff]
  %v101 = vld [vmem:[%s0 + $0x2a8] sm:$0xff]
  %v102 = vld [vmem:[%s0 + $0x2b0] sm:$0xff]
  %v103 = vld [vmem:[%s0 + $0x2b8] sm:$0xff]
  %v104 = vld [vmem:[%s0 + $0x2c0] sm:$0xff]
  %v105 = vld [vmem:[%s0 + $0x2c8] sm:$0xff]
  %v106 = vld [vmem:[%s0 + $0x2d0] sm:$0xff]
  %v107 = vld [vmem:[%s0 + $0x2d8] sm:$0xff]
  %v108 = vld [vmem:[%s0 + $0x2e0] sm:$0xff]
  %v109 = vld [vmem:[%s0 + $0x2e8] sm:$0xff]
  %v110 = vld [vmem:[%s0 + $0x2f0] sm:$0xff]
  %v111 = vld [vmem:[%s0 + $0x2f8] sm:$0xff]
  %v112 = vld [vmem:[%s0 + $0x300] sm:$0xff]
  %v113 = vld [vmem:[%s0 + $0x308] sm:$0xff]
  %v114 = vld [vmem:[%s0 + $0x310] sm:$0xff]
  %v115 = vld [vmem:[%s0 + $0x318] sm:$0xff]
  %v116 = vld [vmem:[%s0 + $0x320] sm:$0xff]
  %v117 = vld [vmem:[%s0 + $0x328] sm:$0xff]
  %v118 = vld [vmem:[%s0 + $0x330] sm:$0xff]
  %v119 = vld [vmem:[%s0 + $0x338] sm:$0xff]
  %v120 = vld [vmem:[%s0 + $0x340] sm:$0xff]
  %v121 = vld [vmem:[%s0 + $0x348] sm:$0xff]
  %v122 = vld [vmem:[%s0 + $0x350] sm:$0xff]
  %v123 = vld [vmem:[%s0 + $0x358] sm:$0xff]
  %v124 = vld [vmem:[%s0 + $0x360] sm:$0xff]
  %v125 = vld [vmem:[%s0 + $0x368] sm:$0xff]
  %v126 = vld [vmem:[%s0 + $0x370] sm:$0xff]
  %v127 = vld [vmem:[%s0 + $0x378] sm:$0xff]
  %v128 = vld [vmem:[%s0 + $0x380] sm:$0xff]
  %v129 = vld [vmem:[%s0 + $0x388] sm:$0xff]
  %v130 = vld [vmem:[%s0 + $0x390] sm:$0xff]
  %v131 = vld [vmem:[%s0 + $0x398] sm:$0xff]
  %v132 = vld [vmem:[%s0 + $0x3a0] sm:$0xff]
  %v133 = vld [vmem:[%s0 + $0x3a8] sm:$0xff]
  %v134 = vld [vmem:[%s0 + $0x3b0] sm:$0xff]
  %v135 = vld [vmem:[%s0 + $0x3b8] sm:$0xff]
  %v136 = vld [vmem:[%s0 + $0x3c0] sm:$0xff]
  %v137 = vld [vmem:[%s0 + $0x3c8] sm:$0xff]
  %v138 = vld [vmem:[%s0 + $0x3d0] sm:$0xff]
  %v139 = vld [vmem:[%s0 + $0x3d8] sm:$0xff]
  %v140 = vld [vmem:[%s0 + $0x3e0] sm:$0xff]
  %v141 = vld [vmem:[%s0 + $0x3e8] sm:$0xff]
  %v142 = vld [vmem:[%s0 + $0x3f0] sm:$0xff]
  %v143 = vld [vmem:[%s0 + $0x3f8] sm:$0xff]
  %v144 = vld [vmem:[%s0 + $0x400] sm:$0xff]
  %v145 = vld [vmem:[%s0 + $0x408] sm:$0xff]
  %v146 = vld [vmem:[%s0 + $0x410] sm:$0xff]
  %v147 = vld [vmem:[%s0 + $0x418] sm:$0xff]
  %v148 = vld [vmem:[%s0 + $0x420] sm:$0xff]
  %v149 = vld [vmem:[%s0 + $0x428] sm:$0xff]
  %v150 = vld [vmem:[%s0 + $0x430] sm:$0xff]
  %v151 = vld [vmem:[%s0 + $0x438] sm:$0xff]
  %v152 = vld [vmem:[%s0 + $0x440] sm:$0xff]
  %v153 = vld [vmem:[%s0 + $0x448] sm:$0xff]
  %v154 = vld [vmem:[%s0 + $0x450] sm:$0xff]
  %v155 = vld [vmem:[%s0 + $0x458] sm:$0xff]
  %v156 = vld [vmem:[%s0 + $0x460] sm:$0xff]
  %v157 = vld [vmem:[%s0 + $0x468] sm:$0xff]
  %v158 = vld [vmem:[%s0 + $0x470] sm:$0xff]
  %v159 = vld [vmem:[%s0 + $0x478] sm:$0xff]
  %v160 = vld [vmem:[%s0 + $0x480] sm:$0xff]
  %v161 = vld [vmem:[%s0 + $0x488] sm:$0xff]
  %v162 = vld [vmem:[%s0 + $0x490] sm:$0xff]
  %v163 = vld [vmem:[%s0 + $0x498] sm:$0xff]
  %v164 = vld [vmem:[%s0 + $0x4a0] sm:$0xff]
  %v165 = vld [vmem:[%s0 + $0x4a8] sm:$0xff]
  %v166 = vld [vmem:[%s0 + $0x4b0] sm:$0xff]
  %v167 = vld [vmem:[%s0 + $0x4b8] sm:$0xff]
  %v168 = vld [vmem:[%s0 + $0x4c0] sm:$0xff]
  %v169 = vld [vmem:[%s0 + $0x4c8] sm:$0xff]
  %v170 = vld [vmem:[%s0 + $0x4d0] sm:$0xff]
  %v171 = vld [vmem:[%s0 + $0x4d8] sm:$0xff]
  %v172 = vld [vmem:[%s0 + $0x4e0] sm:$0xff]
  %v173 = vld [vmem:[%s0 + $0x4e8] sm:$0xff]
  %v174 = vld [vmem:[%s0 + $0x4f0] sm:$0xff]
  %v175 = vld [vmem:[%s0 + $0x4f8] sm:$0xff]
  %v176 = vld [vmem:[%s0 + $0x500] sm:$0xff]
  %v177 = vld [vmem:[%s0 + $0x508] sm:$0xff]
  %v178 = vld [vmem:[%s1] sm:$0xff]
  %v179 = vld [vmem:[%s1 + $0x8] sm:$0xff]
  %v180 = vld [vmem:[%s1 + $0x10] sm:$0xff]
  %v181 = vld [vmem:[%s1 + $0x18] sm:$0xff]
  %v182 = vld [vmem:[%s1 + $0x20] sm:$0xff]
  %v183 = vld [vmem:[%s1 + $0x28] sm:$0xff]
  %v184 = vld [vmem:[%s1 + $0x30] sm:$0xff]
  %v185 = vld [vmem:[%s1 + $0x38] sm:$0xff]
  %v186 = vld [vmem:[%s1 + $0x40] sm:$0xff]
  %v187 = vld [vmem:[%s1 + $0x48] sm:$0xff]
  %v188 = vld [vmem:[%s1 + $0x50] sm:$0xff]
  %v189 = vld [vmem:[%s1 + $0x58] sm:$0xff]
  %v190 = vld [vmem:[%s1 + $0x60] sm:$0xff]
  %v191 = vld [vmem:[%s1 + $0x68] sm:$0xff]
  %v192 = vld [vmem:[%s1 + $0x70] sm:$0xff]
  %v193 = vld [vmem:[%s1 + $0x78] sm:$0xff]
  %v194 = vld [vmem:[%s1 + $0x80] sm:$0xff]
  %v195 = vld [vmem:[%s1 + $0x88] sm:$0xff]
  %v196 = vld [vmem:[%s1 + $0x90] sm:$0xff]
  %v197 = vld [vmem:[%s1 + $0x98] sm:$0xff]
  %v198 = vld [vmem:[%s1 + $0xa0] sm:$0xff]
  %v199 = vld [vmem:[%s1 + $0xa8] sm:$0xff]
  %v200 = vld [vmem:[%s1 + $0xb0] sm:$0xff]
  %v201 = vld [vmem:[%s1 + $0xb8] sm:$0xff]
  %v202 = vld [vmem:[%s1 + $0xc0] sm:$0xff]
  %v203 = vld [vmem:[%s1 + $0xc8] sm:$0xff]
  %v204 = vld [vmem:[%s1 + $0xd0] sm:$0xff]
  %v205 = vld [vmem:[%s1 + $0xd8] sm:$0xff]
  %v206 = vld [vmem:[%s1 + $0xe0] sm:$0xff]
  %v207 = vld [vmem:[%s1 + $0xe8] sm:$0xff]
  %v208 = vld [vmem:[%s1 + $0xf0] sm:$0xff]
  %v209 = vld [vmem:[%s1 + $0xf8] sm:$0xff]
  %v210 = vld [vmem:[%s1 + $0x100] sm:$0xff]
  %v211 = vld [vmem:[%s1 + $0x108] sm:$0xff]
  %v212 = vld [vmem:[%s1 + $0x110] sm:$0xff]
  %v213 = vld [vmem:[%s1 + $0x118] sm:$0xff]
  %v214 = vld [vmem:[#allocation2] sm:$0x1]
  %v216 = vlaneseq
  %v217 = vshrl.u32 %v216, 7
  %v218 = vsub.s32 0, %v217
  %v219 = vrot.slane %v214, %v218
  %vm221 = vcmask 261120
  %v223 = vsel %vm221, %v18, 0
  %v226 = vsel %vm221, %v21, 0
  %v229 = vsel %vm221, %v24, 0
  %v232 = vsel %vm221, %v27, 0
  %v235 = vsel %vm221, %v30, 0
  %v238 = vsel %vm221, %v33, 0
  %v241 = vsel %vm221, %v36, 0
  %v244 = vsel %vm221, %v39, 0
  %v247 = vsel %vm221, %v42, 0
  %v250 = vsel %vm221, %v45, 0
  %v253 = vsel %vm221, %v48, 0
  %v256 = vsel %vm221, %v51, 0
  %v259 = vsel %vm221, %v54, 0
  %v262 = vsel %vm221, %v57, 0
  %v265 = vsel %vm221, %v60, 0
  %v268 = vsel %vm221, %v63, 0
  %v271 = vsel %vm221, %v66, 0
  %v274 = vsel %vm221, %v69, 0
  %v277 = vsel %vm221, %v72, 0
  %v280 = vsel %vm221, %v75, 0
  %v283 = vsel %vm221, %v78, 0
  %v286 = vsel %vm221, %v81, 0
  %v289 = vsel %vm221, %v84, 0
  %v292 = vsel %vm221, %v87, 0
  %v295 = vsel %vm221, %v90, 0
  %v298 = vsel %vm221, %v93, 0
  %v301 = vsel %vm221, %v96, 0
  %v304 = vsel %vm221, %v99, 0
  %v307 = vsel %vm221, %v102, 0
  %v310 = vsel %vm221, %v105, 0
  %v313 = vsel %vm221, %v108, 0
  %v316 = vsel %vm221, %v111, 0
  %v319 = vsel %vm221, %v114, 0
  %v322 = vsel %vm221, %v117, 0
  %v325 = vsel %vm221, %v120, 0
  %v328 = vsel %vm221, %v123, 0
  %v331 = vsel %vm221, %v126, 0
  %v334 = vsel %vm221, %v129, 0
  %v337 = vsel %vm221, %v132, 0
  %v340 = vsel %vm221, %v135, 0
  %v343 = vsel %vm221, %v138, 0
  %v346 = vsel %vm221, %v141, 0
  %v349 = vsel %vm221, %v144, 0
  %v352 = vsel %vm221, %v147, 0
  %v355 = vsel %vm221, %v150, 0
  %v358 = vsel %vm221, %v153, 0
  %v361 = vsel %vm221, %v156, 0
  %v364 = vsel %vm221, %v159, 0
  %v367 = vsel %vm221, %v162, 0
  %v370 = vsel %vm221, %v165, 0
  %v373 = vsel %vm221, %v168, 0
  %v376 = vsel %vm221, %v171, 0
  %v379 = vsel %vm221, %v174, 0
  %v382 = vsel %vm221, %v177, 0
  %384 = vmatprep.subr.mxu0 0.0
  %385 = vmatpush1.msra.mxu0 %v178
  %386 = vmatprep.subr.mxu0 0.0
  %387 = vmatpush1.msra.mxu0 %v179
  %388 = vmatprep.subr.mxu0 0.0
  %389 = vmatpush1.msra.mxu0 %v180
  %390 = vmatprep.subr.mxu0 0.0
  %391 = vmatpush1.msra.mxu0 %v181
  %392 = vmatprep.subr.mxu0 0.0
  %393 = vmatpush1.msra.mxu0 %v182
  %394 = vmatprep.subr.mxu0 0.0
  %395 = vmatpush1.msra.mxu0 %v183
  %396 = vmatprep.subr.mxu0 0.0
  %397 = vmatpush1.msra.mxu0 %v184
  %398 = vmatprep.subr.mxu0 0.0
  %399 = vmatpush1.msra.mxu0 %v185
  %400 = vmatprep.subr.mxu0 0.0
  %401 = vmatpush1.msra.mxu0 %v186
  %402 = vmatprep.subr.mxu0 0.0
  %403 = vmatpush1.msra.mxu0 %v187
  %404 = vmatprep.subr.mxu0 0.0
  %405 = vmatpush1.msra.mxu0 %v188
  %406 = vmatprep.subr.mxu0 0.0
  %407 = vmatpush1.msra.mxu0 %v189
  %408 = vmatprep.subr.mxu0 0.0
  %409 = vmatpush1.msra.mxu0 %v190
  %410 = vmatprep.subr.mxu0 0.0
  %411 = vmatpush1.msra.mxu0 %v191
  %412 = vmatprep.subr.mxu0 0.0
  %413 = vmatpush1.msra.mxu0 %v192
  %414 = vmatprep.subr.mxu0 0.0
  %415 = vmatpush1.msra.mxu0 %v193
  %416 = vmatprep.subr.mxu0 0.0
  %417 = vmatpush1.msra.mxu0 %v194
  %418 = vmatprep.subr.mxu0 0.0
  %419 = vmatpush1.msra.mxu0 %v195
  %420 = vmatprep.subr.mxu0 0.0
  %421 = vmatpush1.msra.mxu0 %v196
  %422 = vmatprep.subr.mxu0 0.0
  %423 = vmatpush1.msra.mxu0 %v197
  %424 = vmatprep.subr.mxu0 0.0
  %425 = vmatpush1.msra.mxu0 %v198
  %426 = vmatprep.subr.mxu0 0.0
  %427 = vmatpush1.msra.mxu0 %v199
  %428 = vmatprep.subr.mxu0 0.0
  %429 = vmatpush1.msra.mxu0 %v200
  %430 = vmatprep.subr.mxu0 0.0
  %431 = vmatpush1.msra.mxu0 %v201
  %432 = vmatprep.subr.mxu0 0.0
  %433 = vmatpush1.msra.mxu0 %v202
  %434 = vmatprep.subr.mxu0 0.0
  %435 = vmatpush1.msra.mxu0 %v203
  %436 = vmatprep.subr.mxu0 0.0
  %437 = vmatpush1.msra.mxu0 %v204
  %438 = vmatprep.subr.mxu0 0.0
  %439 = vmatpush1.msra.mxu0 %v205
  %440 = vmatprep.subr.mxu0 0.0
  %441 = vmatpush1.msra.mxu0 %v206
  %442 = vmatprep.subr.mxu0 0.0
  %443 = vmatpush1.msra.mxu0 %v207
  %444 = vmatprep.subr.mxu0 0.0
  %445 = vmatpush1.msra.mxu0 %v208
  %446 = vmatprep.subr.mxu0 0.0
  %447 = vmatpush1.msra.mxu0 %v209
  %448 = vmatprep.mubr.f32.mxu0 %v17
  %449 = vmatmul.mubr.f32.gmra.mrb[0].mxu0 %v16
  %v450 = vpop.f32.mrb[0].mxu0
  %v451 = vadd.f32 %v219, %v450
  %v452 = vpop.f32.mrb[0].mxu0
  %453 = vmatprep.mubr.f32.mxu0 %v20
  %454 = vmatmul.mubr.f32.gmra.mrb[0].mxu0 %v19
  %v455 = vpop.f32.mrb[0].mxu0
  %v456 = vadd.f32 %v219, %v455
  %v457 = vpop.f32.mrb[0].mxu0
  %458 = vmatprep.mubr.f32.mxu0 %v23
  %459 = vmatmul.mubr.f32.gmra.mrb[0].mxu0 %v22
  %v460 = vpop.f32.mrb[0].mxu0
  %v461 = vadd.f32 %v219, %v460
  %v462 = vpop.f32.mrb[0].mxu0
  %463 = vmatprep.mubr.f32.mxu0 %v26
  %464 = vmatmul.mubr.f32.gmra.mrb[0].mxu0 %v25
  %v465 = vpop.f32.mrb[0].mxu0
  %v466 = vadd.f32 %v219, %v465
  %v467 = vpop.f32.mrb[0].mxu0
  %468 = vmatprep.mubr.f32.mxu0 %v29
  %469 = vmatmul.mubr.f32.gmra.mrb[0].mxu0 %v28
  %v470 = vpop.f32.mrb[0].mxu0
  %v471 = vadd.f32 %v219, %v470
  %v472 = vpop.f32.mrb[0].mxu0
  %473 = vmatprep.mubr.f32.mxu0 %v32
  %474 = vmatmul.mubr.f32.gmra.mrb[0].mxu0 %v31
  %v475 = vpop.f32.mrb[0].mxu0
  %v476 = vadd.f32 %v219, %v475
  %v477 = vpop.f32.mrb[0].mxu0
  %478 = vmatprep.mubr.f32.mxu0 %v35
  %479 = vmatmul.mubr.f32.gmra.mrb[0].mxu0 %v34
  %v480 = vpop.f32.mrb[0].mxu0
  %v481 = vadd.f32 %v219, %v480
  %v482 = vpop.f32.mrb[0].mxu0
  %483 = vmatprep.mubr.f32.mxu0 %v38
  %484 = vmatmul.mubr.f32.gmra.mrb[0].mxu0 %v37
  %v485 = vpop.f32.mrb[0].mxu0
  %v486 = vadd.f32 %v219, %v485
  %v487 = vpop.f32.mrb[0].mxu0
  %488 = vmatprep.mubr.f32.mxu0 %v41
  %489 = vmatmul.mubr.f32.gmra.mrb[0].mxu0 %v40
  %v490 = vpop.f32.mrb[0].mxu0
  %v491 = vadd.f32 %v219, %v490
  %v492 = vpop.f32.mrb[0].mxu0
  %493 = vmatprep.mubr.f32.mxu0 %v44
  %494 = vmatmul.mubr.f32.gmra.mrb[0].mxu0 %v43
  %v495 = vpop.f32.mrb[0].mxu0
  %v496 = vadd.f32 %v219, %v495
  %v497 = vpop.f32.mrb[0].mxu0
  %498 = vmatprep.mubr.f32.mxu0 %v47
  %499 = vmatmul.mubr.f32.gmra.mrb[0].mxu0 %v46
  %v500 = vpop.f32.mrb[0].mxu0
  %v501 = vadd.f32 %v219, %v500
  %v502 = vpop.f32.mrb[0].mxu0
  %503 = vmatprep.mubr.f32.mxu0 %v50
  %504 = vmatmul.mubr.f32.gmra.mrb[0].mxu0 %v49
  %v505 = vpop.f32.mrb[0].mxu0
  %v506 = vadd.f32 %v219, %v505
  %v507 = vpop.f32.mrb[0].mxu0
  %508 = vmatprep.mubr.f32.mxu0 %v53
  %509 = vmatmul.mubr.f32.gmra.mrb[0].mxu0 %v52
  %v510 = vpop.f32.mrb[0].mxu0
  %v511 = vadd.f32 %v219, %v510
  %v512 = vpop.f32.mrb[0].mxu0
  %513 = vmatprep.mubr.f32.mxu0 %v56
  %514 = vmatmul.mubr.f32.gmra.mrb[0].mxu0 %v55
  %v515 = vpop.f32.mrb[0].mxu0
  %v516 = vadd.f32 %v219, %v515
  %v517 = vpop.f32.mrb[0].mxu0
  %518 = vmatprep.mubr.f32.mxu0 %v59
  %519 = vmatmul.mubr.f32.gmra.mrb[0].mxu0 %v58
  %v520 = vpop.f32.mrb[0].mxu0
  %v521 = vadd.f32 %v219, %v520
  %v522 = vpop.f32.mrb[0].mxu0
  %523 = vmatprep.mubr.f32.mxu0 %v62
  %524 = vmatmul.mubr.f32.gmra.mrb[0].mxu0 %v61
  %v525 = vpop.f32.mrb[0].mxu0
  %v526 = vadd.f32 %v219, %v525
  %v527 = vpop.f32.mrb[0].mxu0
  %528 = vmatprep.mubr.f32.mxu0 %v65
  %529 = vmatmul.mubr.f32.gmra.mrb[0].mxu0 %v64
  %v530 = vpop.f32.mrb[0].mxu0
  %v531 = vadd.f32 %v219, %v530
  %v532 = vpop.f32.mrb[0].mxu0
  %533 = vmatprep.mubr.f32.mxu0 %v68
  %534 = vmatmul.mubr.f32.gmra.mrb[0].mxu0 %v67
  %v535 = vpop.f32.mrb[0].mxu0
  %v536 = vadd.f32 %v219, %v535
  %v537 = vpop.f32.mrb[0].mxu0
  %538 = vmatprep.mubr.f32.mxu0 %v71
  %539 = vmatmul.mubr.f32.gmra.mrb[0].mxu0 %v70
  %v540 = vpop.f32.mrb[0].mxu0
  %v541 = vadd.f32 %v219, %v540
  %v542 = vpop.f32.mrb[0].mxu0
  %543 = vmatprep.mubr.f32.mxu0 %v74
  %544 = vmatmul.mubr.f32.gmra.mrb[0].mxu0 %v73
  %v545 = vpop.f32.mrb[0].mxu0
  %v546 = vadd.f32 %v219, %v545
  %v547 = vpop.f32.mrb[0].mxu0
  %548 = vmatprep.mubr.f32.mxu0 %v77
  %549 = vmatmul.mubr.f32.gmra.mrb[0].mxu0 %v76
  %v550 = vpop.f32.mrb[0].mxu0
  %v551 = vadd.f32 %v219, %v550
  %v552 = vpop.f32.mrb[0].mxu0
  %553 = vmatprep.mubr.f32.mxu0 %v80
  %554 = vmatmul.mubr.f32.gmra.mrb[0].mxu0 %v79
  %v555 = vpop.f32.mrb[0].mxu0
  %v556 = vadd.f32 %v219, %v555
  %v557 = vpop.f32.mrb[0].mxu0
  %558 = vmatprep.mubr.f32.mxu0 %v83
  %559 = vmatmul.mubr.f32.gmra.mrb[0].mxu0 %v82
  %v560 = vpop.f32.mrb[0].mxu0
  %v561 = vadd.f32 %v219, %v560
  %v562 = vpop.f32.mrb[0].mxu0
  %563 = vmatprep.mubr.f32.mxu0 %v86
  %564 = vmatmul.mubr.f32.gmra.mrb[0].mxu0 %v85
  %v565 = vpop.f32.mrb[0].mxu0
  %v566 = vadd.f32 %v219, %v565
  %v567 = vpop.f32.mrb[0].mxu0
  %568 = vmatprep.mubr.f32.mxu0 %v89
  %569 = vmatmul.mubr.f32.gmra.mrb[0].mxu0 %v88
  %v570 = vpop.f32.mrb[0].mxu0
  %v571 = vadd.f32 %v219, %v570
  %v572 = vpop.f32.mrb[0].mxu0
  %573 = vmatprep.mubr.f32.mxu0 %v92
  %574 = vmatmul.mubr.f32.gmra.mrb[0].mxu0 %v91
  %v575 = vpop.f32.mrb[0].mxu0
  %v576 = vadd.f32 %v219, %v575
  %v577 = vpop.f32.mrb[0].mxu0
  %578 = vmatprep.mubr.f32.mxu0 %v95
  %579 = vmatmul.mubr.f32.gmra.mrb[0].mxu0 %v94
  %v580 = vpop.f32.mrb[0].mxu0
  %v581 = vadd.f32 %v219, %v580
  %v582 = vpop.f32.mrb[0].mxu0
  %583 = vmatprep.mubr.f32.mxu0 %v98
  %584 = vmatmul.mubr.f32.gmra.mrb[0].mxu0 %v97
  %v585 = vpop.f32.mrb[0].mxu0
  %v586 = vadd.f32 %v219, %v585
  %v587 = vpop.f32.mrb[0].mxu0
  %588 = vmatprep.mubr.f32.mxu0 %v101
  %589 = vmatmul.mubr.f32.gmra.mrb[0].mxu0 %v100
  %v590 = vpop.f32.mrb[0].mxu0
  %v591 = vadd.f32 %v219, %v590
  %v592 = vpop.f32.mrb[0].mxu0
  %593 = vmatprep.mubr.f32.mxu0 %v104
  %594 = vmatmul.mubr.f32.gmra.mrb[0].mxu0 %v103
  %v595 = vpop.f32.mrb[0].mxu0
  %v596 = vadd.f32 %v219, %v595
  %v597 = vpop.f32.mrb[0].mxu0
  %598 = vmatprep.mubr.f32.mxu0 %v107
  %599 = vmatmul.mubr.f32.gmra.mrb[0].mxu0 %v106
  %v600 = vpop.f32.mrb[0].mxu0
  %v601 = vadd.f32 %v219, %v600
  %v602 = vpop.f32.mrb[0].mxu0
  %603 = vmatprep.mubr.f32.mxu0 %v110
  %604 = vmatmul.mubr.f32.gmra.mrb[0].mxu0 %v109
  %v605 = vpop.f32.mrb[0].mxu0
  %v606 = vadd.f32 %v219, %v605
  %v607 = vpop.f32.mrb[0].mxu0
  %608 = vmatprep.mubr.f32.mxu0 %v113
  %609 = vmatmul.mubr.f32.gmra.mrb[0].mxu0 %v112
  %v610 = vpop.f32.mrb[0].mxu0
  %v611 = vadd.f32 %v219, %v610
  %v612 = vpop.f32.mrb[0].mxu0
  %613 = vmatprep.mubr.f32.mxu0 %v116
  %614 = vmatmul.mubr.f32.gmra.mrb[0].mxu0 %v115
  %v615 = vpop.f32.mrb[0].mxu0
  %v616 = vadd.f32 %v219, %v615
  %v617 = vpop.f32.mrb[0].mxu0
  %618 = vmatprep.mubr.f32.mxu0 %v119
  %619 = vmatmul.mubr.f32.gmra.mrb[0].mxu0 %v118
  %v620 = vpop.f32.mrb[0].mxu0
  %v621 = vadd.f32 %v219, %v620
  %v622 = vpop.f32.mrb[0].mxu0
  %623 = vmatprep.mubr.f32.mxu0 %v122
  %624 = vmatmul.mubr.f32.gmra.mrb[0].mxu0 %v121
  %v625 = vpop.f32.mrb[0].mxu0
  %v626 = vadd.f32 %v219, %v625
  %v627 = vpop.f32.mrb[0].mxu0
  %628 = vmatprep.mubr.f32.mxu0 %v125
  %629 = vmatmul.mubr.f32.gmra.mrb[0].mxu0 %v124
  %v630 = vpop.f32.mrb[0].mxu0
  %v631 = vadd.f32 %v219, %v630
  %v632 = vpop.f32.mrb[0].mxu0
  %633 = vmatprep.mubr.f32.mxu0 %v128
  %634 = vmatmul.mubr.f32.gmra.mrb[0].mxu0 %v127
  %v635 = vpop.f32.mrb[0].mxu0
  %v636 = vadd.f32 %v219, %v635
  %v637 = vpop.f32.mrb[0].mxu0
  %638 = vmatprep.mubr.f32.mxu0 %v131
  %639 = vmatmul.mubr.f32.gmra.mrb[0].mxu0 %v130
  %v640 = vpop.f32.mrb[0].mxu0
  %v641 = vadd.f32 %v219, %v640
  %v642 = vpop.f32.mrb[0].mxu0
  %643 = vmatprep.mubr.f32.mxu0 %v134
  %644 = vmatmul.mubr.f32.gmra.mrb[0].mxu0 %v133
  %v645 = vpop.f32.mrb[0].mxu0
  %v646 = vadd.f32 %v219, %v645
  %v647 = vpop.f32.mrb[0].mxu0
  %648 = vmatprep.mubr.f32.mxu0 %v137
  %649 = vmatmul.mubr.f32.gmra.mrb[0].mxu0 %v136
  %v650 = vpop.f32.mrb[0].mxu0
  %v651 = vadd.f32 %v219, %v650
  %v652 = vpop.f32.mrb[0].mxu0
  %653 = vmatprep.mubr.f32.mxu0 %v140
  %654 = vmatmul.mubr.f32.gmra.mrb[0].mxu0 %v139
  %v655 = vpop.f32.mrb[0].mxu0
  %v656 = vadd.f32 %v219, %v655
  %v657 = vpop.f32.mrb[0].mxu0
  %658 = vmatprep.mubr.f32.mxu0 %v143
  %659 = vmatmul.mubr.f32.gmra.mrb[0].mxu0 %v142
  %v660 = vpop.f32.mrb[0].mxu0
  %v661 = vadd.f32 %v219, %v660
  %v662 = vpop.f32.mrb[0].mxu0
  %663 = vmatprep.mubr.f32.mxu0 %v146
  %664 = vmatmul.mubr.f32.gmra.mrb[0].mxu0 %v145
  %v665 = vpop.f32.mrb[0].mxu0
  %v666 = vadd.f32 %v219, %v665
  %v667 = vpop.f32.mrb[0].mxu0
  %668 = vmatprep.mubr.f32.mxu0 %v149
  %669 = vmatmul.mubr.f32.gmra.mrb[0].mxu0 %v148
  %v670 = vpop.f32.mrb[0].mxu0
  %v671 = vadd.f32 %v219, %v670
  %v672 = vpop.f32.mrb[0].mxu0
  %673 = vmatprep.mubr.f32.mxu0 %v152
  %674 = vmatmul.mubr.f32.gmra.mrb[0].mxu0 %v151
  %v675 = vpop.f32.mrb[0].mxu0
  %v676 = vadd.f32 %v219, %v675
  %v677 = vpop.f32.mrb[0].mxu0
  %678 = vmatprep.mubr.f32.mxu0 %v155
  %679 = vmatmul.mubr.f32.gmra.mrb[0].mxu0 %v154
  %v680 = vpop.f32.mrb[0].mxu0
  %v681 = vadd.f32 %v219, %v680
  %v682 = vpop.f32.mrb[0].mxu0
  %683 = vmatprep.mubr.f32.mxu0 %v158
  %684 = vmatmul.mubr.f32.gmra.mrb[0].mxu0 %v157
  %v685 = vpop.f32.mrb[0].mxu0
  %v686 = vadd.f32 %v219, %v685
  %v687 = vpop.f32.mrb[0].mxu0
  %688 = vmatprep.mubr.f32.mxu0 %v161
  %689 = vmatmul.mubr.f32.gmra.mrb[0].mxu0 %v160
  %v690 = vpop.f32.mrb[0].mxu0
  %v691 = vadd.f32 %v219, %v690
  %v692 = vpop.f32.mrb[0].mxu0
  %693 = vmatprep.mubr.f32.mxu0 %v164
  %694 = vmatmul.mubr.f32.gmra.mrb[0].mxu0 %v163
  %v695 = vpop.f32.mrb[0].mxu0
  %v696 = vadd.f32 %v219, %v695
  %v697 = vpop.f32.mrb[0].mxu0
  %698 = vmatprep.mubr.f32.mxu0 %v167
  %699 = vmatmul.mubr.f32.gmra.mrb[0].mxu0 %v166
  %v700 = vpop.f32.mrb[0].mxu0
  %v701 = vadd.f32 %v219, %v700
  %v702 = vpop.f32.mrb[0].mxu0
  %703 = vmatprep.mubr.f32.mxu0 %v170
  %704 = vmatmul.mubr.f32.gmra.mrb[0].mxu0 %v169
  %v705 = vpop.f32.mrb[0].mxu0
  %v706 = vadd.f32 %v219, %v705
  %v707 = vpop.f32.mrb[0].mxu0
  %708 = vmatprep.mubr.f32.mxu0 %v173
  %709 = vmatmul.mubr.f32.gmra.mrb[0].mxu0 %v172
  %v710 = vpop.f32.mrb[0].mxu0
  %v711 = vadd.f32 %v219, %v710
  %v712 = vpop.f32.mrb[0].mxu0
  %713 = vmatprep.mubr.f32.mxu0 %v176
  %714 = vmatmul.mubr.f32.gmra.mrb[0].mxu0 %v175
  %v715 = vpop.f32.mrb[0].mxu0
  %v716 = vadd.f32 %v219, %v715
  %v717 = vpop.f32.mrb[0].mxu0
  %718 = vdwg.mxu0
  %719 = vmatprep.subr.mxu0 0.0
  %720 = vmatpush1.msra.mxu0 %v210
  %721 = vmatprep.subr.mxu0 0.0
  %722 = vmatpush1.msra.mxu0 %v211
  %723 = vmatprep.subr.mxu0 0.0
  %724 = vmatpush1.msra.mxu0 %v212
  %725 = vmatprep.subr.mxu0 0.0
  %726 = vmatpush1.msra.mxu0 %v213
  %727 = vmatprep.subr.mxu0 0.0
  %728 = vmatpush1.msra.mxu0 0.0
  %729 = vmatprep.subr.mxu0 0.0
  %730 = vmatpush1.msra.mxu0 0.0
  %731 = vmatprep.subr.mxu0 0.0
  %732 = vmatpush1.msra.mxu0 0.0
  %733 = vmatprep.subr.mxu0 0.0
  %734 = vmatpush1.msra.mxu0 0.0
  %735 = vmatprep.subr.mxu0 0.0
  %736 = vmatpush1.msra.mxu0 0.0
  %737 = vmatprep.subr.mxu0 0.0
  %738 = vmatpush1.msra.mxu0 0.0
  %739 = vmatprep.subr.mxu0 0.0
  %740 = vmatpush1.msra.mxu0 0.0
  %741 = vmatprep.subr.mxu0 0.0
  %742 = vmatpush1.msra.mxu0 0.0
  %743 = vmatprep.subr.mxu0 0.0
  %744 = vmatpush1.msra.mxu0 0.0
  %745 = vmatprep.subr.mxu0 0.0
  %746 = vmatpush1.msra.mxu0 0.0
  %747 = vmatprep.subr.mxu0 0.0
  %748 = vmatpush1.msra.mxu0 0.0
  %749 = vmatprep.subr.mxu0 0.0
  %750 = vmatpush1.msra.mxu0 0.0
  %751 = vmatprep.subr.mxu0 0.0
  %752 = vmatpush1.msra.mxu0 0.0
  %753 = vmatprep.subr.mxu0 0.0
  %754 = vmatpush1.msra.mxu0 0.0
  %755 = vmatprep.subr.mxu0 0.0
  %756 = vmatpush1.msra.mxu0 0.0
  %757 = vmatprep.subr.mxu0 0.0
  %758 = vmatpush1.msra.mxu0 0.0
  %759 = vmatprep.subr.mxu0 0.0
  %760 = vmatpush1.msra.mxu0 0.0
  %761 = vmatprep.subr.mxu0 0.0
  %762 = vmatpush1.msra.mxu0 0.0
  %763 = vmatprep.subr.mxu0 0.0
  %764 = vmatpush1.msra.mxu0 0.0
  %765 = vmatprep.subr.mxu0 0.0
  %766 = vmatpush1.msra.mxu0 0.0
  %767 = vmatprep.subr.mxu0 0.0
  %768 = vmatpush1.msra.mxu0 0.0
  %769 = vmatprep.subr.mxu0 0.0
  %770 = vmatpush1.msra.mxu0 0.0
  %771 = vmatprep.subr.mxu0 0.0
  %772 = vmatpush1.msra.mxu0 0.0
  %773 = vmatprep.subr.mxu0 0.0
  %774 = vmatpush1.msra.mxu0 0.0
  %775 = vmatprep.subr.mxu0 0.0
  %776 = vmatpush1.msra.mxu0 0.0
  %777 = vmatprep.subr.mxu0 0.0
  %778 = vmatpush1.msra.mxu0 0.0
  %779 = vmatprep.subr.mxu0 0.0
  %780 = vmatpush1.msra.mxu0 0.0
  %781 = vmatprep.subr.mxu0 0.0
  %782 = vmatpush1.msra.mxu0 0.0
  %783 = vmatprep.mubr.f32.mxu0 0.0
  %784 = vmatmul.mubr.f32.gmra.mrb[0].mxu0 %v223
  %v785 = vpop.f32.mrb[0].mxu0
  %v786 = vadd.f32 %v451, %v785
  %v787 = vpop.f32.mrb[0].mxu0
  %788 = vmatprep.mubr.f32.mxu0 0.0
  %789 = vmatmul.mubr.f32.gmra.mrb[0].mxu0 %v226
  %v790 = vpop.f32.mrb[0].mxu0
  %v791 = vadd.f32 %v456, %v790
  %v792 = vpop.f32.mrb[0].mxu0
  %793 = vmatprep.mubr.f32.mxu0 0.0
  %794 = vmatmul.mubr.f32.gmra.mrb[0].mxu0 %v229
  %v795 = vpop.f32.mrb[0].mxu0
  %v796 = vadd.f32 %v461, %v795
  %v797 = vpop.f32.mrb[0].mxu0
  %798 = vmatprep.mubr.f32.mxu0 0.0
  %799 = vmatmul.mubr.f32.gmra.mrb[0].mxu0 %v232
  %v800 = vpop.f32.mrb[0].mxu0
  %v801 = vadd.f32 %v466, %v800
  %v802 = vpop.f32.mrb[0].mxu0
  %803 = vmatprep.mubr.f32.mxu0 0.0
  %804 = vmatmul.mubr.f32.gmra.mrb[0].mxu0 %v235
  %v805 = vpop.f32.mrb[0].mxu0
  %v806 = vadd.f32 %v471, %v805
  %v807 = vpop.f32.mrb[0].mxu0
  %808 = vmatprep.mubr.f32.mxu0 0.0
  %809 = vmatmul.mubr.f32.gmra.mrb[0].mxu0 %v238
  %v810 = vpop.f32.mrb[0].mxu0
  %v811 = vadd.f32 %v476, %v810
  %v812 = vpop.f32.mrb[0].mxu0
  %813 = vmatprep.mubr.f32.mxu0 0.0
  %814 = vmatmul.mubr.f32.gmra.mrb[0].mxu0 %v241
  %v815 = vpop.f32.mrb[0].mxu0
  %v816 = vadd.f32 %v481, %v815
  %v817 = vpop.f32.mrb[0].mxu0
  %818 = vmatprep.mubr.f32.mxu0 0.0
  %819 = vmatmul.mubr.f32.gmra.mrb[0].mxu0 %v244
  %v820 = vpop.f32.mrb[0].mxu0
  %v821 = vadd.f32 %v486, %v820
  %v822 = vpop.f32.mrb[0].mxu0
  %823 = vmatprep.mubr.f32.mxu0 0.0
  %824 = vmatmul.mubr.f32.gmra.mrb[0].mxu0 %v247
  %v825 = vpop.f32.mrb[0].mxu0
  %v826 = vadd.f32 %v491, %v825
  %v827 = vpop.f32.mrb[0].mxu0
  %828 = vmatprep.mubr.f32.mxu0 0.0
  %829 = vmatmul.mubr.f32.gmra.mrb[0].mxu0 %v250
  %v830 = vpop.f32.mrb[0].mxu0
  %v831 = vadd.f32 %v496, %v830
  %v832 = vpop.f32.mrb[0].mxu0
  %833 = vmatprep.mubr.f32.mxu0 0.0
  %834 = vmatmul.mubr.f32.gmra.mrb[0].mxu0 %v253
  %v835 = vpop.f32.mrb[0].mxu0
  %v836 = vadd.f32 %v501, %v835
  %v837 = vpop.f32.mrb[0].mxu0
  %838 = vmatprep.mubr.f32.mxu0 0.0
  %839 = vmatmul.mubr.f32.gmra.mrb[0].mxu0 %v256
  %v840 = vpop.f32.mrb[0].mxu0
  %v841 = vadd.f32 %v506, %v840
  %v842 = vpop.f32.mrb[0].mxu0
  %843 = vmatprep.mubr.f32.mxu0 0.0
  %844 = vmatmul.mubr.f32.gmra.mrb[0].mxu0 %v259
  %v845 = vpop.f32.mrb[0].mxu0
  %v846 = vadd.f32 %v511, %v845
  %v847 = vpop.f32.mrb[0].mxu0
  %848 = vmatprep.mubr.f32.mxu0 0.0
  %849 = vmatmul.mubr.f32.gmra.mrb[0].mxu0 %v262
  %v850 = vpop.f32.mrb[0].mxu0
  %v851 = vadd.f32 %v516, %v850
  %v852 = vpop.f32.mrb[0].mxu0
  %853 = vmatprep.mubr.f32.mxu0 0.0
  %854 = vmatmul.mubr.f32.gmra.mrb[0].mxu0 %v265
  %v855 = vpop.f32.mrb[0].mxu0
  %v856 = vadd.f32 %v521, %v855
  %v857 = vpop.f32.mrb[0].mxu0
  %858 = vmatprep.mubr.f32.mxu0 0.0
  %859 = vmatmul.mubr.f32.gmra.mrb[0].mxu0 %v268
  %v860 = vpop.f32.mrb[0].mxu0
  %v861 = vadd.f32 %v526, %v860
  %v862 = vpop.f32.mrb[0].mxu0
  %863 = vmatprep.mubr.f32.mxu0 0.0
  %864 = vmatmul.mubr.f32.gmra.mrb[0].mxu0 %v271
  %v865 = vpop.f32.mrb[0].mxu0
  %v866 = vadd.f32 %v531, %v865
  %v867 = vpop.f32.mrb[0].mxu0
  %868 = vmatprep.mubr.f32.mxu0 0.0
  %869 = vmatmul.mubr.f32.gmra.mrb[0].mxu0 %v274
  %v870 = vpop.f32.mrb[0].mxu0
  %v871 = vadd.f32 %v536, %v870
  %v872 = vpop.f32.mrb[0].mxu0
  %873 = vmatprep.mubr.f32.mxu0 0.0
  %874 = vmatmul.mubr.f32.gmra.mrb[0].mxu0 %v277
  %v875 = vpop.f32.mrb[0].mxu0
  %v876 = vadd.f32 %v541, %v875
  %v877 = vpop.f32.mrb[0].mxu0
  %878 = vmatprep.mubr.f32.mxu0 0.0
  %879 = vmatmul.mubr.f32.gmra.mrb[0].mxu0 %v280
  %v880 = vpop.f32.mrb[0].mxu0
  %v881 = vadd.f32 %v546, %v880
  %v882 = vpop.f32.mrb[0].mxu0
  %883 = vmatprep.mubr.f32.mxu0 0.0
  %884 = vmatmul.mubr.f32.gmra.mrb[0].mxu0 %v283
  %v885 = vpop.f32.mrb[0].mxu0
  %v886 = vadd.f32 %v551, %v885
  %v887 = vpop.f32.mrb[0].mxu0
  %888 = vmatprep.mubr.f32.mxu0 0.0
  %889 = vmatmul.mubr.f32.gmra.mrb[0].mxu0 %v286
  %v890 = vpop.f32.mrb[0].mxu0
  %v891 = vadd.f32 %v556, %v890
  %v892 = vpop.f32.mrb[0].mxu0
  %893 = vmatprep.mubr.f32.mxu0 0.0
  %894 = vmatmul.mubr.f32.gmra.mrb[0].mxu0 %v289
  %v895 = vpop.f32.mrb[0].mxu0
  %v896 = vadd.f32 %v561, %v895
  %v897 = vpop.f32.mrb[0].mxu0
  %898 = vmatprep.mubr.f32.mxu0 0.0
  %899 = vmatmul.mubr.f32.gmra.mrb[0].mxu0 %v292
  %v900 = vpop.f32.mrb[0].mxu0
  %v901 = vadd.f32 %v566, %v900
  %v902 = vpop.f32.mrb[0].mxu0
  %903 = vmatprep.mubr.f32.mxu0 0.0
  %904 = vmatmul.mubr.f32.gmra.mrb[0].mxu0 %v295
  %v905 = vpop.f32.mrb[0].mxu0
  %v906 = vadd.f32 %v571, %v905
  %v907 = vpop.f32.mrb[0].mxu0
  %908 = vmatprep.mubr.f32.mxu0 0.0
  %909 = vmatmul.mubr.f32.gmra.mrb[0].mxu0 %v298
  %v910 = vpop.f32.mrb[0].mxu0
  %v911 = vadd.f32 %v576, %v910
  %v912 = vpop.f32.mrb[0].mxu0
  %913 = vmatprep.mubr.f32.mxu0 0.0
  %914 = vmatmul.mubr.f32.gmra.mrb[0].mxu0 %v301
  %v915 = vpop.f32.mrb[0].mxu0
  %v916 = vadd.f32 %v581, %v915
  %v917 = vpop.f32.mrb[0].mxu0
  %918 = vmatprep.mubr.f32.mxu0 0.0
  %919 = vmatmul.mubr.f32.gmra.mrb[0].mxu0 %v304
  %v920 = vpop.f32.mrb[0].mxu0
  %v921 = vadd.f32 %v586, %v920
  %v922 = vpop.f32.mrb[0].mxu0
  %923 = vmatprep.mubr.f32.mxu0 0.0
  %924 = vmatmul.mubr.f32.gmra.mrb[0].mxu0 %v307
  %v925 = vpop.f32.mrb[0].mxu0
  %v926 = vadd.f32 %v591, %v925
  %v927 = vpop.f32.mrb[0].mxu0
  %928 = vmatprep.mubr.f32.mxu0 0.0
  %929 = vmatmul.mubr.f32.gmra.mrb[0].mxu0 %v310
  %v930 = vpop.f32.mrb[0].mxu0
  %v931 = vadd.f32 %v596, %v930
  %v932 = vpop.f32.mrb[0].mxu0
  %933 = vmatprep.mubr.f32.mxu0 0.0
  %934 = vmatmul.mubr.f32.gmra.mrb[0].mxu0 %v313
  %v935 = vpop.f32.mrb[0].mxu0
  %v936 = vadd.f32 %v601, %v935
  %v937 = vpop.f32.mrb[0].mxu0
  %938 = vmatprep.mubr.f32.mxu0 0.0
  %939 = vmatmul.mubr.f32.gmra.mrb[0].mxu0 %v316
  %v940 = vpop.f32.mrb[0].mxu0
  %v941 = vadd.f32 %v606, %v940
  %v942 = vpop.f32.mrb[0].mxu0
  %943 = vmatprep.mubr.f32.mxu0 0.0
  %944 = vmatmul.mubr.f32.gmra.mrb[0].mxu0 %v319
  %v945 = vpop.f32.mrb[0].mxu0
  %v946 = vadd.f32 %v611, %v945
  %v947 = vpop.f32.mrb[0].mxu0
  %948 = vmatprep.mubr.f32.mxu0 0.0
  %949 = vmatmul.mubr.f32.gmra.mrb[0].mxu0 %v322
  %v950 = vpop.f32.mrb[0].mxu0
  %v951 = vadd.f32 %v616, %v950
  %v952 = vpop.f32.mrb[0].mxu0
  %953 = vmatprep.mubr.f32.mxu0 0.0
  %954 = vmatmul.mubr.f32.gmra.mrb[0].mxu0 %v325
  %v955 = vpop.f32.mrb[0].mxu0
  %v956 = vadd.f32 %v621, %v955
  %v957 = vpop.f32.mrb[0].mxu0
  %958 = vmatprep.mubr.f32.mxu0 0.0
  %959 = vmatmul.mubr.f32.gmra.mrb[0].mxu0 %v328
  %v960 = vpop.f32.mrb[0].mxu0
  %v961 = vadd.f32 %v626, %v960
  %v962 = vpop.f32.mrb[0].mxu0
  %963 = vmatprep.mubr.f32.mxu0 0.0
  %964 = vmatmul.mubr.f32.gmra.mrb[0].mxu0 %v331
  %v965 = vpop.f32.mrb[0].mxu0
  %v966 = vadd.f32 %v631, %v965
  %v967 = vpop.f32.mrb[0].mxu0
  %968 = vmatprep.mubr.f32.mxu0 0.0
  %969 = vmatmul.mubr.f32.gmra.mrb[0].mxu0 %v334
  %v970 = vpop.f32.mrb[0].mxu0
  %v971 = vadd.f32 %v636, %v970
  %v972 = vpop.f32.mrb[0].mxu0
  %973 = vmatprep.mubr.f32.mxu0 0.0
  %974 = vmatmul.mubr.f32.gmra.mrb[0].mxu0 %v337
  %v975 = vpop.f32.mrb[0].mxu0
  %v976 = vadd.f32 %v641, %v975
  %v977 = vpop.f32.mrb[0].mxu0
  %978 = vmatprep.mubr.f32.mxu0 0.0
  %979 = vmatmul.mubr.f32.gmra.mrb[0].mxu0 %v340
  %v980 = vpop.f32.mrb[0].mxu0
  %v981 = vadd.f32 %v646, %v980
  %v982 = vpop.f32.mrb[0].mxu0
  %983 = vmatprep.mubr.f32.mxu0 0.0
  %984 = vmatmul.mubr.f32.gmra.mrb[0].mxu0 %v343
  %v985 = vpop.f32.mrb[0].mxu0
  %v986 = vadd.f32 %v651, %v985
  %v987 = vpop.f32.mrb[0].mxu0
  %988 = vmatprep.mubr.f32.mxu0 0.0
  %989 = vmatmul.mubr.f32.gmra.mrb[0].mxu0 %v346
  %v990 = vpop.f32.mrb[0].mxu0
  %v991 = vadd.f32 %v656, %v990
  %v992 = vpop.f32.mrb[0].mxu0
  %993 = vmatprep.mubr.f32.mxu0 0.0
  %994 = vmatmul.mubr.f32.gmra.mrb[0].mxu0 %v349
  %v995 = vpop.f32.mrb[0].mxu0
  %v996 = vadd.f32 %v661, %v995
  %v997 = vpop.f32.mrb[0].mxu0
  %998 = vmatprep.mubr.f32.mxu0 0.0
  %999 = vmatmul.mubr.f32.gmra.mrb[0].mxu0 %v352
  %v1000 = vpop.f32.mrb[0].mxu0
  %v1001 = vadd.f32 %v666, %v1000
  %v1002 = vpop.f32.mrb[0].mxu0
  %1003 = vmatprep.mubr.f32.mxu0 0.0
  %1004 = vmatmul.mubr.f32.gmra.mrb[0].mxu0 %v355
  %v1005 = vpop.f32.mrb[0].mxu0
  %v1006 = vadd.f32 %v671, %v1005
  %v1007 = vpop.f32.mrb[0].mxu0
  %1008 = vmatprep.mubr.f32.mxu0 0.0
  %1009 = vmatmul.mubr.f32.gmra.mrb[0].mxu0 %v358
  %v1010 = vpop.f32.mrb[0].mxu0
  %v1011 = vadd.f32 %v676, %v1010
  %v1012 = vpop.f32.mrb[0].mxu0
  %1013 = vmatprep.mubr.f32.mxu0 0.0
  %1014 = vmatmul.mubr.f32.gmra.mrb[0].mxu0 %v361
  %v1015 = vpop.f32.mrb[0].mxu0
  %v1016 = vadd.f32 %v681, %v1015
  %v1017 = vpop.f32.mrb[0].mxu0
  %1018 = vmatprep.mubr.f32.mxu0 0.0
  %1019 = vmatmul.mubr.f32.gmra.mrb[0].mxu0 %v364
  %v1020 = vpop.f32.mrb[0].mxu0
  %v1021 = vadd.f32 %v686, %v1020
  %v1022 = vpop.f32.mrb[0].mxu0
  %1023 = vmatprep.mubr.f32.mxu0 0.0
  %1024 = vmatmul.mubr.f32.gmra.mrb[0].mxu0 %v367
  %v1025 = vpop.f32.mrb[0].mxu0
  %v1026 = vadd.f32 %v691, %v1025
  %v1027 = vpop.f32.mrb[0].mxu0
  %1028 = vmatprep.mubr.f32.mxu0 0.0
  %1029 = vmatmul.mubr.f32.gmra.mrb[0].mxu0 %v370
  %v1030 = vpop.f32.mrb[0].mxu0
  %v1031 = vadd.f32 %v696, %v1030
  %v1032 = vpop.f32.mrb[0].mxu0
  %1033 = vmatprep.mubr.f32.mxu0 0.0
  %1034 = vmatmul.mubr.f32.gmra.mrb[0].mxu0 %v373
  %v1035 = vpop.f32.mrb[0].mxu0
  %v1036 = vadd.f32 %v701, %v1035
  %v1037 = vpop.f32.mrb[0].mxu0
  %1038 = vmatprep.mubr.f32.mxu0 0.0
  %1039 = vmatmul.mubr.f32.gmra.mrb[0].mxu0 %v376
  %v1040 = vpop.f32.mrb[0].mxu0
  %v1041 = vadd.f32 %v706, %v1040
  %v1042 = vpop.f32.mrb[0].mxu0
  %1043 = vmatprep.mubr.f32.mxu0 0.0
  %1044 = vmatmul.mubr.f32.gmra.mrb[0].mxu0 %v379
  %v1045 = vpop.f32.mrb[0].mxu0
  %v1046 = vadd.f32 %v711, %v1045
  %v1047 = vpop.f32.mrb[0].mxu0
  %1048 = vmatprep.mubr.f32.mxu0 0.0
  %1049 = vmatmul.mubr.f32.gmra.mrb[0].mxu0 %v382
  %v1050 = vpop.f32.mrb[0].mxu0
  %v1051 = vadd.f32 %v716, %v1050
  %v1052 = vpop.f32.mrb[0].mxu0
  %1053 = vdwg.mxu0
  %v1054 = vsub.f32 0.0, %v786
  %v1055 = vsub.f32 0.0, %v791
  %v1056 = vsub.f32 0.0, %v796
  %v1057 = vsub.f32 0.0, %v801
  %v1058 = vsub.f32 0.0, %v806
  %v1059 = vsub.f32 0.0, %v811
  %v1060 = vsub.f32 0.0, %v816
  %v1061 = vsub.f32 0.0, %v821
  %v1062 = vsub.f32 0.0, %v826
  %v1063 = vsub.f32 0.0, %v831
  %v1064 = vsub.f32 0.0, %v836
  %v1065 = vsub.f32 0.0, %v841
  %v1066 = vsub.f32 0.0, %v846
  %v1067 = vsub.f32 0.0, %v851
  %v1068 = vsub.f32 0.0, %v856
  %v1069 = vsub.f32 0.0, %v861
  %v1070 = vsub.f32 0.0, %v866
  %v1071 = vsub.f32 0.0, %v871
  %v1072 = vsub.f32 0.0, %v876
  %v1073 = vsub.f32 0.0, %v881
  %v1074 = vsub.f32 0.0, %v886
  %v1075 = vsub.f32 0.0, %v891
  %v1076 = vsub.f32 0.0, %v896
  %v1077 = vsub.f32 0.0, %v901
  %v1078 = vsub.f32 0.0, %v906
  %v1079 = vsub.f32 0.0, %v911
  %v1080 = vsub.f32 0.0, %v916
  %v1081 = vsub.f32 0.0, %v921
  %v1082 = vsub.f32 0.0, %v926
  %v1083 = vsub.f32 0.0, %v931
  %v1084 = vsub.f32 0.0, %v936
  %v1085 = vsub.f32 0.0, %v941
  %v1086 = vsub.f32 0.0, %v946
  %v1087 = vsub.f32 0.0, %v951
  %v1088 = vsub.f32 0.0, %v956
  %v1089 = vsub.f32 0.0, %v961
  %v1090 = vsub.f32 0.0, %v966
  %v1091 = vsub.f32 0.0, %v971
  %v1092 = vsub.f32 0.0, %v976
  %v1093 = vsub.f32 0.0, %v981
  %v1094 = vsub.f32 0.0, %v986
  %v1095 = vsub.f32 0.0, %v991
  %v1096 = vsub.f32 0.0, %v996
  %v1097 = vsub.f32 0.0, %v1001
  %v1098 = vsub.f32 0.0, %v1006
  %v1099 = vsub.f32 0.0, %v1011
  %v1100 = vsub.f32 0.0, %v1016
  %v1101 = vsub.f32 0.0, %v1021
  %v1102 = vsub.f32 0.0, %v1026
  %v1103 = vsub.f32 0.0, %v1031
  %v1104 = vsub.f32 0.0, %v1036
  %v1105 = vsub.f32 0.0, %v1041
  %v1106 = vsub.f32 0.0, %v1046
  %v1107 = vsub.f32 0.0, %v1051
  %v1108 = vmul.f32 %v1054, 1.442695
  %v1109 = vpow.pop %v1108
  %v1110 = vmul.f32 %v1055, 1.442695
  %v1111 = vpow.pop %v1110
  %v1112 = vmul.f32 %v1056, 1.442695
  %v1113 = vpow.pop %v1112
  %v1114 = vmul.f32 %v1057, 1.442695
  %v1115 = vpow.pop %v1114
  %v1116 = vmul.f32 %v1058, 1.442695
  %v1117 = vpow.pop %v1116
  %v1118 = vmul.f32 %v1059, 1.442695
  %v1119 = vpow.pop %v1118
  %v1120 = vmul.f32 %v1060, 1.442695
  %v1121 = vpow.pop %v1120
  %v1122 = vmul.f32 %v1061, 1.442695
  %v1123 = vpow.pop %v1122
  %v1124 = vmul.f32 %v1062, 1.442695
  %v1125 = vpow.pop %v1124
  %v1126 = vmul.f32 %v1063, 1.442695
  %v1127 = vpow.pop %v1126
  %v1128 = vmul.f32 %v1064, 1.442695
  %v1129 = vpow.pop %v1128
  %v1130 = vmul.f32 %v1065, 1.442695
  %v1131 = vpow.pop %v1130
  %v1132 = vmul.f32 %v1066, 1.442695
  %v1133 = vpow.pop %v1132
  %v1134 = vmul.f32 %v1067, 1.442695
  %v1135 = vpow.pop %v1134
  %v1136 = vmul.f32 %v1068, 1.442695
  %v1137 = vpow.pop %v1136
  %v1138 = vmul.f32 %v1069, 1.442695
  %v1139 = vpow.pop %v1138
  %v1140 = vmul.f32 %v1070, 1.442695
  %v1141 = vpow.pop %v1140
  %v1142 = vmul.f32 %v1071, 1.442695
  %v1143 = vpow.pop %v1142
  %v1144 = vmul.f32 %v1072, 1.442695
  %v1145 = vpow.pop %v1144
  %v1146 = vmul.f32 %v1073, 1.442695
  %v1147 = vpow.pop %v1146
  %v1148 = vmul.f32 %v1074, 1.442695
  %v1149 = vpow.pop %v1148
  %v1150 = vmul.f32 %v1075, 1.442695
  %v1151 = vpow.pop %v1150
  %v1152 = vmul.f32 %v1076, 1.442695
  %v1153 = vpow.pop %v1152
  %v1154 = vmul.f32 %v1077, 1.442695
  %v1155 = vpow.pop %v1154
  %v1156 = vmul.f32 %v1078, 1.442695
  %v1157 = vpow.pop %v1156
  %v1158 = vmul.f32 %v1079, 1.442695
  %v1159 = vpow.pop %v1158
  %v1160 = vmul.f32 %v1080, 1.442695
  %v1161 = vpow.pop %v1160
  %v1162 = vmul.f32 %v1081, 1.442695
  %v1163 = vpow.pop %v1162
  %v1164 = vmul.f32 %v1082, 1.442695
  %v1165 = vpow.pop %v1164
  %v1166 = vmul.f32 %v1083, 1.442695
  %v1167 = vpow.pop %v1166
  %v1168 = vmul.f32 %v1084, 1.442695
  %v1169 = vpow.pop %v1168
  %v1170 = vmul.f32 %v1085, 1.442695
  %v1171 = vpow.pop %v1170
  %v1172 = vmul.f32 %v1086, 1.442695
  %v1173 = vpow.pop %v1172
  %v1174 = vmul.f32 %v1087, 1.442695
  %v1175 = vpow.pop %v1174
  %v1176 = vmul.f32 %v1088, 1.442695
  %v1177 = vpow.pop %v1176
  %v1178 = vmul.f32 %v1089, 1.442695
  %v1179 = vpow.pop %v1178
  %v1180 = vmul.f32 %v1090, 1.442695
  %v1181 = vpow.pop %v1180
  %v1182 = vmul.f32 %v1091, 1.442695
  %v1183 = vpow.pop %v1182
  %v1184 = vmul.f32 %v1092, 1.442695
  %v1185 = vpow.pop %v1184
  %v1186 = vmul.f32 %v1093, 1.442695
  %v1187 = vpow.pop %v1186
  %v1188 = vmul.f32 %v1094, 1.442695
  %v1189 = vpow.pop %v1188
  %v1190 = vmul.f32 %v1095, 1.442695
  %v1191 = vpow.pop %v1190
  %v1192 = vmul.f32 %v1096, 1.442695
  %v1193 = vpow.pop %v1192
  %v1194 = vmul.f32 %v1097, 1.442695
  %v1195 = vpow.pop %v1194
  %v1196 = vmul.f32 %v1098, 1.442695
  %v1197 = vpow.pop %v1196
  %v1198 = vmul.f32 %v1099, 1.442695
  %v1199 = vpow.pop %v1198
  %v1200 = vmul.f32 %v1100, 1.442695
  %v1201 = vpow.pop %v1200
  %v1202 = vmul.f32 %v1101, 1.442695
  %v1203 = vpow.pop %v1202
  %v1204 = vmul.f32 %v1102, 1.442695
  %v1205 = vpow.pop %v1204
  %v1206 = vmul.f32 %v1103, 1.442695
  %v1207 = vpow.pop %v1206
  %v1208 = vmul.f32 %v1104, 1.442695
  %v1209 = vpow.pop %v1208
  %v1210 = vmul.f32 %v1105, 1.442695
  %v1211 = vpow.pop %v1210
  %v1212 = vmul.f32 %v1106, 1.442695
  %v1213 = vpow.pop %v1212
  %v1214 = vmul.f32 %v1107, 1.442695
  %v1215 = vpow.pop %v1214
  %v1216 = vadd.f32 %v1109, 1.0
  %v1217 = vadd.f32 %v1111, 1.0
  %v1218 = vadd.f32 %v1113, 1.0
  %v1219 = vadd.f32 %v1115, 1.0
  %v1220 = vadd.f32 %v1117, 1.0
  %v1221 = vadd.f32 %v1119, 1.0
  %v1222 = vadd.f32 %v1121, 1.0
  %v1223 = vadd.f32 %v1123, 1.0
  %v1224 = vadd.f32 %v1125, 1.0
  %v1225 = vadd.f32 %v1127, 1.0
  %v1226 = vadd.f32 %v1129, 1.0
  %v1227 = vadd.f32 %v1131, 1.0
  %v1228 = vadd.f32 %v1133, 1.0
  %v1229 = vadd.f32 %v1135, 1.0
  %v1230 = vadd.f32 %v1137, 1.0
  %v1231 = vadd.f32 %v1139, 1.0
  %v1232 = vadd.f32 %v1141, 1.0
  %v1233 = vadd.f32 %v1143, 1.0
  %v1234 = vadd.f32 %v1145, 1.0
  %v1235 = vadd.f32 %v1147, 1.0
  %v1236 = vadd.f32 %v1149, 1.0
  %v1237 = vadd.f32 %v1151, 1.0
  %v1238 = vadd.f32 %v1153, 1.0
  %v1239 = vadd.f32 %v1155, 1.0
  %v1240 = vadd.f32 %v1157, 1.0
  %v1241 = vadd.f32 %v1159, 1.0
  %v1242 = vadd.f32 %v1161, 1.0
  %v1243 = vadd.f32 %v1163, 1.0
  %v1244 = vadd.f32 %v1165, 1.0
  %v1245 = vadd.f32 %v1167, 1.0
  %v1246 = vadd.f32 %v1169, 1.0
  %v1247 = vadd.f32 %v1171, 1.0
  %v1248 = vadd.f32 %v1173, 1.0
  %v1249 = vadd.f32 %v1175, 1.0
  %v1250 = vadd.f32 %v1177, 1.0
  %v1251 = vadd.f32 %v1179, 1.0
  %v1252 = vadd.f32 %v1181, 1.0
  %v1253 = vadd.f32 %v1183, 1.0
  %v1254 = vadd.f32 %v1185, 1.0
  %v1255 = vadd.f32 %v1187, 1.0
  %v1256 = vadd.f32 %v1189, 1.0
  %v1257 = vadd.f32 %v1191, 1.0
  %v1258 = vadd.f32 %v1193, 1.0
  %v1259 = vadd.f32 %v1195, 1.0
  %v1260 = vadd.f32 %v1197, 1.0
  %v1261 = vadd.f32 %v1199, 1.0
  %v1262 = vadd.f32 %v1201, 1.0
  %v1263 = vadd.f32 %v1203, 1.0
  %v1264 = vadd.f32 %v1205, 1.0
  %v1265 = vadd.f32 %v1207, 1.0
  %v1266 = vadd.f32 %v1209, 1.0
  %v1267 = vadd.f32 %v1211, 1.0
  %v1268 = vadd.f32 %v1213, 1.0
  %v1269 = vadd.f32 %v1215, 1.0
  %v1270 = vrcp.pop %v1216
  %v1271 = vmul.f32 1.0, %v1270
  %v1272 = vrcp.pop %v1217
  %v1273 = vmul.f32 1.0, %v1272
  %v1274 = vrcp.pop %v1218
  %v1275 = vmul.f32 1.0, %v1274
  %v1276 = vrcp.pop %v1219
  %v1277 = vmul.f32 1.0, %v1276
  %v1278 = vrcp.pop %v1220
  %v1279 = vmul.f32 1.0, %v1278
  %v1280 = vrcp.pop %v1221
  %v1281 = vmul.f32 1.0, %v1280
  %v1282 = vrcp.pop %v1222
  %v1283 = vmul.f32 1.0, %v1282
  %v1284 = vrcp.pop %v1223
  %v1285 = vmul.f32 1.0, %v1284
  %v1286 = vrcp.pop %v1224
  %v1287 = vmul.f32 1.0, %v1286
  %v1288 = vrcp.pop %v1225
  %v1289 = vmul.f32 1.0, %v1288
  %v1290 = vrcp.pop %v1226
  %v1291 = vmul.f32 1.0, %v1290
  %v1292 = vrcp.pop %v1227
  %v1293 = vmul.f32 1.0, %v1292
  %v1294 = vrcp.pop %v1228
  %v1295 = vmul.f32 1.0, %v1294
  %v1296 = vrcp.pop %v1229
  %v1297 = vmul.f32 1.0, %v1296
  %v1298 = vrcp.pop %v1230
  %v1299 = vmul.f32 1.0, %v1298
  %v1300 = vrcp.pop %v1231
  %v1301 = vmul.f32 1.0, %v1300
  %v1302 = vrcp.pop %v1232
  %v1303 = vmul.f32 1.0, %v1302
  %v1304 = vrcp.pop %v1233
  %v1305 = vmul.f32 1.0, %v1304
  %v1306 = vrcp.pop %v1234
  %v1307 = vmul.f32 1.0, %v1306
  %v1308 = vrcp.pop %v1235
  %v1309 = vmul.f32 1.0, %v1308
  %v1310 = vrcp.pop %v1236
  %v1311 = vmul.f32 1.0, %v1310
  %v1312 = vrcp.pop %v1237
  %v1313 = vmul.f32 1.0, %v1312
  %v1314 = vrcp.pop %v1238
  %v1315 = vmul.f32 1.0, %v1314
  %v1316 = vrcp.pop %v1239
  %v1317 = vmul.f32 1.0, %v1316
  %v1318 = vrcp.pop %v1240
  %v1319 = vmul.f32 1.0, %v1318
  %v1320 = vrcp.pop %v1241
  %v1321 = vmul.f32 1.0, %v1320
  %v1322 = vrcp.pop %v1242
  %v1323 = vmul.f32 1.0, %v1322
  %v1324 = vrcp.pop %v1243
  %v1325 = vmul.f32 1.0, %v1324
  %v1326 = vrcp.pop %v1244
  %v1327 = vmul.f32 1.0, %v1326
  %v1328 = vrcp.pop %v1245
  %v1329 = vmul.f32 1.0, %v1328
  %v1330 = vrcp.pop %v1246
  %v1331 = vmul.f32 1.0, %v1330
  %v1332 = vrcp.pop %v1247
  %v1333 = vmul.f32 1.0, %v1332
  %v1334 = vrcp.pop %v1248
  %v1335 = vmul.f32 1.0, %v1334
  %v1336 = vrcp.pop %v1249
  %v1337 = vmul.f32 1.0, %v1336
  %v1338 = vrcp.pop %v1250
  %v1339 = vmul.f32 1.0, %v1338
  %v1340 = vrcp.pop %v1251
  %v1341 = vmul.f32 1.0, %v1340
  %v1342 = vrcp.pop %v1252
  %v1343 = vmul.f32 1.0, %v1342
  %v1344 = vrcp.pop %v1253
  %v1345 = vmul.f32 1.0, %v1344
  %v1346 = vrcp.pop %v1254
  %v1347 = vmul.f32 1.0, %v1346
  %v1348 = vrcp.pop %v1255
  %v1349 = vmul.f32 1.0, %v1348
  %v1350 = vrcp.pop %v1256
  %v1351 = vmul.f32 1.0, %v1350
  %v1352 = vrcp.pop %v1257
  %v1353 = vmul.f32 1.0, %v1352
  %v1354 = vrcp.pop %v1258
  %v1355 = vmul.f32 1.0, %v1354
  %v1356 = vrcp.pop %v1259
  %v1357 = vmul.f32 1.0, %v1356
  %v1358 = vrcp.pop %v1260
  %v1359 = vmul.f32 1.0, %v1358
  %v1360 = vrcp.pop %v1261
  %v1361 = vmul.f32 1.0, %v1360
  %v1362 = vrcp.pop %v1262
  %v1363 = vmul.f32 1.0, %v1362
  %v1364 = vrcp.pop %v1263
  %v1365 = vmul.f32 1.0, %v1364
  %v1366 = vrcp.pop %v1264
  %v1367 = vmul.f32 1.0, %v1366
  %v1368 = vrcp.pop %v1265
  %v1369 = vmul.f32 1.0, %v1368
  %v1370 = vrcp.pop %v1266
  %v1371 = vmul.f32 1.0, %v1370
  %v1372 = vrcp.pop %v1267
  %v1373 = vmul.f32 1.0, %v1372
  %v1374 = vrcp.pop %v1268
  %v1375 = vmul.f32 1.0, %v1374
  %v1376 = vrcp.pop %v1269
  %v1377 = vmul.f32 1.0, %v1376
  %vm1378 = vcmask 7168
  %1379 = vst.msk [vmem:[%s3] sm:$0xff] %vm1378, %v1271
  %1380 = vst.msk [vmem:[%s3 + $0x8] sm:$0xff] %vm1378, %v1273
  %1381 = vst.msk [vmem:[%s3 + $0x10] sm:$0xff] %vm1378, %v1275
  %1382 = vst.msk [vmem:[%s3 + $0x18] sm:$0xff] %vm1378, %v1277
  %1383 = vst.msk [vmem:[%s3 + $0x20] sm:$0xff] %vm1378, %v1279
  %1384 = vst.msk [vmem:[%s3 + $0x28] sm:$0xff] %vm1378, %v1281
  %1385 = vst.msk [vmem:[%s3 + $0x30] sm:$0xff] %vm1378, %v1283
  %1386 = vst.msk [vmem:[%s3 + $0x38] sm:$0xff] %vm1378, %v1285
  %1387 = vst.msk [vmem:[%s3 + $0x40] sm:$0xff] %vm1378, %v1287
  %1388 = vst.msk [vmem:[%s3 + $0x48] sm:$0xff] %vm1378, %v1289
  %1389 = vst.msk [vmem:[%s3 + $0x50] sm:$0xff] %vm1378, %v1291
  %1390 = vst.msk [vmem:[%s3 + $0x58] sm:$0xff] %vm1378, %v1293
  %1391 = vst.msk [vmem:[%s3 + $0x60] sm:$0xff] %vm1378, %v1295
  %1392 = vst.msk [vmem:[%s3 + $0x68] sm:$0xff] %vm1378, %v1297
  %1393 = vst.msk [vmem:[%s3 + $0x70] sm:$0xff] %vm1378, %v1299
  %1394 = vst.msk [vmem:[%s3 + $0x78] sm:$0xff] %vm1378, %v1301
  %1395 = vst.msk [vmem:[%s3 + $0x80] sm:$0xff] %vm1378, %v1303
  %1396 = vst.msk [vmem:[%s3 + $0x88] sm:$0xff] %vm1378, %v1305
  %1397 = vst.msk [vmem:[%s3 + $0x90] sm:$0xff] %vm1378, %v1307
  %1398 = vst.msk [vmem:[%s3 + $0x98] sm:$0xff] %vm1378, %v1309
  %1399 = vst.msk [vmem:[%s3 + $0xa0] sm:$0xff] %vm1378, %v1311
  %1400 = vst.msk [vmem:[%s3 + $0xa8] sm:$0xff] %vm1378, %v1313
  %1401 = vst.msk [vmem:[%s3 + $0xb0] sm:$0xff] %vm1378, %v1315
  %1402 = vst.msk [vmem:[%s3 + $0xb8] sm:$0xff] %vm1378, %v1317
  %1403 = vst.msk [vmem:[%s3 + $0xc0] sm:$0xff] %vm1378, %v1319
  %1404 = vst.msk [vmem:[%s3 + $0xc8] sm:$0xff] %vm1378, %v1321
  %1405 = vst.msk [vmem:[%s3 + $0xd0] sm:$0xff] %vm1378, %v1323
  %1406 = vst.msk [vmem:[%s3 + $0xd8] sm:$0xff] %vm1378, %v1325
  %1407 = vst.msk [vmem:[%s3 + $0xe0] sm:$0xff] %vm1378, %v1327
  %1408 = vst.msk [vmem:[%s3 + $0xe8] sm:$0xff] %vm1378, %v1329
  %1409 = vst.msk [vmem:[%s3 + $0xf0] sm:$0xff] %vm1378, %v1331
  %1410 = vst.msk [vmem:[%s3 + $0xf8] sm:$0xff] %vm1378, %v1333
  %1411 = vst.msk [vmem:[%s3 + $0x100] sm:$0xff] %vm1378, %v1335
  %1412 = vst.msk [vmem:[%s3 + $0x108] sm:$0xff] %vm1378, %v1337
  %1413 = vst.msk [vmem:[%s3 + $0x110] sm:$0xff] %vm1378, %v1339
  %1414 = vst.msk [vmem:[%s3 + $0x118] sm:$0xff] %vm1378, %v1341
  %1415 = vst.msk [vmem:[%s3 + $0x120] sm:$0xff] %vm1378, %v1343
  %1416 = vst.msk [vmem:[%s3 + $0x128] sm:$0xff] %vm1378, %v1345
  %1417 = vst.msk [vmem:[%s3 + $0x130] sm:$0xff] %vm1378, %v1347
  %1418 = vst.msk [vmem:[%s3 + $0x138] sm:$0xff] %vm1378, %v1349
  %1419 = vst.msk [vmem:[%s3 + $0x140] sm:$0xff] %vm1378, %v1351
  %1420 = vst.msk [vmem:[%s3 + $0x148] sm:$0xff] %vm1378, %v1353
  %1421 = vst.msk [vmem:[%s3 + $0x150] sm:$0xff] %vm1378, %v1355
  %1422 = vst.msk [vmem:[%s3 + $0x158] sm:$0xff] %vm1378, %v1357
  %1423 = vst.msk [vmem:[%s3 + $0x160] sm:$0xff] %vm1378, %v1359
  %1424 = vst.msk [vmem:[%s3 + $0x168] sm:$0xff] %vm1378, %v1361
  %1425 = vst.msk [vmem:[%s3 + $0x170] sm:$0xff] %vm1378, %v1363
  %1426 = vst.msk [vmem:[%s3 + $0x178] sm:$0xff] %vm1378, %v1365
  %1427 = vst.msk [vmem:[%s3 + $0x180] sm:$0xff] %vm1378, %v1367
  %1428 = vst.msk [vmem:[%s3 + $0x188] sm:$0xff] %vm1378, %v1369
  %1429 = vst.msk [vmem:[%s3 + $0x190] sm:$0xff] %vm1378, %v1371
  %1430 = vst.msk [vmem:[%s3 + $0x198] sm:$0xff] %vm1378, %v1373
  %1431 = vst.msk [vmem:[%s3 + $0x1a0] sm:$0xff] %vm1378, %v1375
  %1432 = vst.msk [vmem:[%s3 + $0x1a8] sm:$0xff] %vm1378, %v1377
  // Predicated region
  $region14: #{autoencoder_forward.11} parent=0 // pred_check
    _
  $region15: #{autoencoder_forward.11} parent=0 // pred_check_branch
    %1434 = sbr.rel (0) target = $region17
  $region16: #{autoencoder_forward.11} parent=0 // pred_region
    _
  $region17: #{autoencoder_forward.11} parent=0 // pred_fallthru
    _
  // Predicated region
  $region18: #{autoencoder_forward.11} parent=0 // pred_check
    _
  $region19: #{autoencoder_forward.11} parent=0 // pred_check_branch
    %1436 = sbr.rel (0) target = $region21
  $region20: #{autoencoder_forward.11} parent=0 // pred_region
    _
  $region21: #{autoencoder_forward.11} parent=0 // pred_fallthru
    _

</llo_original>
